<compile_context>
chip_gen: v7x
topology: tpu7x:2x2x1
jax: 0.10.0
libtpu: 0.0.40
codegen_flags: <defaults>
</compile_context>

<pallas_src>
import jax
import jax.numpy as jnp
from jax.experimental import pallas as pl
from jax.experimental.pallas import tpu as pltpu

EPS = 1e-5  # PyTorch BatchNorm1d default


def _pad_up(d, m=128):
    """Round a feature width up to a multiple of 128 lanes."""
    return ((int(d) + m - 1) // m) * m


# ---------------------------------------------------------------------------
# Packed-parameter layout (static; the module architecture is fixed).
# All "narrow" widths (out_dim*4, out_dim*2, out_dim) are zero-padded to 128
# lanes so every GEMM output and the final store are lane-dense.  The padded
# columns stay exactly zero through Linear(+0 cols/bias), BN (0-mean/0-var
# columns stay 0) and ReLU, and feed zero weight rows downstream.
# ---------------------------------------------------------------------------
# Row layout of the packed 128-lane weight slab (bf16, shape (1024, 128)).
_W128_ROWS = {
    "img3": (0, 256),    # Linear(256      -> out*4)
    "rob0": (256, 256),  # Linear(232->256 -> out*4)   (K zero-padded)
    "rob1": (512, 128),  # Linear(out*4    -> out*4)
    "com0": (640, 128),  # Linear(out*4    -> out*2)
    "com1": (768, 128),  # Linear(out*2    -> out*2)
    "com2": (896, 128),  # Linear(out*2    -> out)
}
_W128_TOTAL = 1024

# Row layout of the packed 128-lane scalar-param slab (f32, shape (12, 128)):
# bias row per layer; BN layers also have gamma at +1 and beta at +2.
_P128_ROWS = {"img3": 0, "rob0": 1, "rob1": 4, "com0": 5, "com1": 8, "com2": 11}
_P128_TOTAL = 12


# ---------------------------------------------------------------------------
# Fused kernel: whole forward pass in one pallas_call (grid = ()).
# ---------------------------------------------------------------------------
def _fused_forward_kernel(img_ref, rob_ref,
                          w_img0_hbm, w_img1_hbm,       # pl.ANY (HBM) refs
                          w256_ref, w128_ref,           # VMEM weight slabs
                          p1024_ref, p512_ref, p256_ref, p128_ref,
                          o_ref,
                          w_img0_buf, w_img1_buf, dma_sem):
    # Kick off streaming of the two big image-encoder weights immediately so
    # the HBM transfer overlaps the robot-state chain and the first MXU
    # weight pushes.
    cp0 = pltpu.make_async_copy(w_img0_hbm, w_img0_buf, dma_sem.at[0])
    cp1 = pltpu.make_async_copy(w_img1_hbm, w_img1_buf, dma_sem.at[1])
    cp0.start()
    cp1.start()

    def linear(x, w, b):
        return jnp.dot(x.astype(jnp.bfloat16), w,
                       preferred_element_type=jnp.float32) + b

    def bn_relu(y, gamma, beta):
        # Training-mode BatchNorm1d: batch mean, biased batch variance.
        mean = jnp.mean(y, axis=0, keepdims=True)
        var = jnp.mean(y * y, axis=0, keepdims=True) - mean * mean
        scale = gamma * jax.lax.rsqrt(var + EPS)
        return jnp.maximum((y - mean) * scale + beta, 0.0)

    def w128(name):
        r0, n = _W128_ROWS[name]
        return w128_ref[r0:r0 + n, :]

    def p128(name, k=0):
        r = _P128_ROWS[name] + k
        return p128_ref[r:r + 1, :]

    # ---- robot_state_encoder (small weights already VMEM-resident; runs
    # while the big image-encoder weights stream from HBM) -------------------
    r = rob_ref[...]
    r = linear(r, w128("rob0"), p128("rob0"))
    r = bn_relu(r, p128("rob0", 1), p128("rob0", 2))
    enc_rob = linear(r, w128("rob1"), p128("rob1"))

    # ---- image_encoder ------------------------------------------------------
    h = img_ref[...]
    cp0.wait()
    h = linear(h, w_img0_buf[...], p1024_ref[0:1, :])
    h = bn_relu(h, p1024_ref[1:2, :], p1024_ref[2:3, :])
    cp1.wait()
    h = linear(h, w_img1_buf[...], p512_ref[0:1, :])
    h = bn_relu(h, p512_ref[1:2, :], p512_ref[2:3, :])
    h = linear(h, w256_ref[...], p256_ref[0:1, :])
    h = bn_relu(h, p256_ref[1:2, :], p256_ref[2:3, :])
    enc_img = linear(h, w128("img3"), p128("img3"))

    # ---- combinator( relu(enc_img + enc_rob) ) ------------------------------
    c = jnp.maximum(enc_img + enc_rob, 0.0)
    c = linear(c, w128("com0"), p128("com0"))
    c = bn_relu(c, p128("com0", 1), p128("com0", 2))
    c = linear(c, w128("com1"), p128("com1"))
    c = bn_relu(c, p128("com1", 1), p128("com1", 2))
    c = linear(c, w128("com2"), p128("com2"))

    o_ref[...] = c.astype(o_ref.dtype)


# ---------------------------------------------------------------------------
# Wrapper (handles any batch size; stack samples to amortise weight streaming)
# ---------------------------------------------------------------------------
def behavior_cloning_forward(params, img_features, robot_states, out_dim):
    B = img_features.shape[0]
    img_in_pad = params["w_img0"].shape[0]
    rob_in_pad = _W128_ROWS["rob0"][1]

    pad_i = img_in_pad - img_features.shape[1]
    pad_r = rob_in_pad - robot_states.shape[1]
    if pad_i:
        img_features = jnp.pad(img_features, ((0, 0), (0, pad_i)))
    if pad_r:
        robot_states = jnp.pad(robot_states, ((0, 0), (0, pad_r)))

    weight_elems = (img_in_pad * 1024 + 1024 * 512 + 512 * 256
                    + _W128_TOTAL * 128)
    scalar_elems = 3 * 1024 + 3 * 512 + 3 * 256 + _P128_TOTAL * 128
    cost = pl.CostEstimate(
        flops=2 * B * weight_elems,
        transcendentals=1024 + 512 + 256 + 3 * 128,       # rsqrt per BN feature
        bytes_accessed=(2 * weight_elems + 4 * scalar_elems
                        + 4 * B * (img_in_pad + rob_in_pad + 128)),
    )

    vmem = pl.BlockSpec(memory_space=pltpu.MemorySpace.VMEM)
    hbm = pl.BlockSpec(memory_space=pl.ANY)

    out_padded = pl.pallas_call(
        _fused_forward_kernel,
        out_shape=jax.ShapeDtypeStruct((B, 128), jnp.float32),
        in_specs=[vmem, vmem, hbm, hbm, vmem, vmem, vmem, vmem, vmem, vmem],
        out_specs=vmem,
        scratch_shapes=[
            pltpu.VMEM((img_in_pad, 1024), jnp.bfloat16),   # img layer-0 weight
            pltpu.VMEM((1024, 512), jnp.bfloat16),          # img layer-1 weight
            pltpu.SemaphoreType.DMA((2,)),
        ],
        cost_estimate=cost,
    )(img_features, robot_states,
      params["w_img0"], params["w_img1"], params["w256"], params["w128"],
      params["p1024"], params["p512"], params["p256"], params["p128"])

    return out_padded[:, :out_dim]


# ---------------------------------------------------------------------------
# Pure-JAX reference (same bf16 weights / f32 accumulation) for sanity check
# ---------------------------------------------------------------------------
def _reference_forward(params, img_features, robot_states, out_dim):
    img_in_pad = params["w_img0"].shape[0]
    rob_in_pad = _W128_ROWS["rob0"][1]
    img = jnp.pad(img_features, ((0, 0), (0, img_in_pad - img_features.shape[1])))
    rob = jnp.pad(robot_states, ((0, 0), (0, rob_in_pad - robot_states.shape[1])))

    def linear(x, w, b):
        return jnp.dot(x.astype(jnp.bfloat16), w,
                       preferred_element_type=jnp.float32) + b

    def bn_relu(y, gamma, beta):
        mean = jnp.mean(y, axis=0, keepdims=True)
        var = jnp.mean(y * y, axis=0, keepdims=True) - mean * mean
        return jnp.maximum((y - mean) * (gamma * jax.lax.rsqrt(var + EPS)) + beta, 0.0)

    w128, p128 = params["w128"], params["p128"]

    def wslab(name):
        r0, n = _W128_ROWS[name]
        return w128[r0:r0 + n, :]

    def prow(name, k=0):
        r = _P128_ROWS[name] + k
        return p128[r:r + 1, :]

    r = linear(rob, wslab("rob0"), prow("rob0"))
    r = bn_relu(r, prow("rob0", 1), prow("rob0", 2))
    enc_rob = linear(r, wslab("rob1"), prow("rob1"))

    h = linear(img, params["w_img0"], params["p1024"][0:1, :])
    h = bn_relu(h, params["p1024"][1:2, :], params["p1024"][2:3, :])
    h = linear(h, params["w_img1"], params["p512"][0:1, :])
    h = bn_relu(h, params["p512"][1:2, :], params["p512"][2:3, :])
    h = linear(h, params["w256"], params["p256"][0:1, :])
    h = bn_relu(h, params["p256"][1:2, :], params["p256"][2:3, :])
    enc_img = linear(h, wslab("img3"), prow("img3"))

    c = jnp.maximum(enc_img + enc_rob, 0.0)
    c = linear(c, wslab("com0"), prow("com0"))
    c = bn_relu(c, prow("com0", 1), prow("com0", 2))
    c = linear(c, wslab("com1"), prow("com1"))
    c = bn_relu(c, prow("com1", 1), prow("com1", 2))
    c = linear(c, wslab("com2"), prow("com2"))
    return c[:, :out_dim]


# ---------------------------------------------------------------------------
# Parameter construction: pad + bf16-cast + pack ONCE (outside the call path).
# ---------------------------------------------------------------------------
def init_params(key, in_dim, out_dim):
    img_in = in_dim - 58 * 4
    rob_in = 58 * 4
    d4, d2 = out_dim * 4, out_dim * 2
    assert d4 <= 128, "packed 128-lane layout assumes out_dim * 4 <= 128"

    img_in_pad = _pad_up(img_in)
    rob_in_pad = _pad_up(rob_in)
    assert rob_in_pad == _W128_ROWS["rob0"][1]

    keys = iter(jax.random.split(key, 9))

    def linear(d_in, d_out, p_in, p_out):
        # PyTorch nn.Linear default init using the TRUE fan_in; padded
        # rows/cols are exact zeros so padded lanes stay zero end-to-end.
        kw, kb = jax.random.split(next(keys))
        bound = 1.0 / float(d_in) ** 0.5
        w = jax.random.uniform(kw, (d_in, d_out), jnp.float32, -bound, bound)
        b = jax.random.uniform(kb, (d_out,), jnp.float32, -bound, bound)
        w = jnp.pad(w, ((0, p_in - d_in), (0, p_out - d_out))).astype(jnp.bfloat16)
        b = jnp.pad(b, (0, p_out - d_out))
        return w, b

    def bn(p_out):
        # Fresh BatchNorm1d affine: gamma = 1, beta = 0 (pad values irrelevant:
        # padded activation columns are exactly zero before and after BN).
        return jnp.ones((p_out,), jnp.float32), jnp.zeros((p_out,), jnp.float32)

    # image_encoder
    w_img0, b_img0 = linear(img_in, 1024, img_in_pad, 1024); g_img0, be_img0 = bn(1024)
    w_img1, b_img1 = linear(1024, 512, 1024, 512);           g_img1, be_img1 = bn(512)
    w_img2, b_img2 = linear(512, 256, 512, 256);             g_img2, be_img2 = bn(256)
    w_img3, b_img3 = linear(256, d4, 256, 128)
    # robot_state_encoder (K padded 232 -> 256)
    w_rob0, b_rob0 = linear(rob_in, d4, rob_in_pad, 128);    g_rob0, be_rob0 = bn(128)
    w_rob1, b_rob1 = linear(d4, d4, 128, 128)
    # combinator
    w_com0, b_com0 = linear(d4, d2, 128, 128);               g_com0, be_com0 = bn(128)
    w_com1, b_com1 = linear(d2, d2, 128, 128);               g_com1, be_com1 = bn(128)
    w_com2, b_com2 = linear(d2, out_dim, 128, 128)

    w128 = jnp.concatenate([w_img3, w_rob0, w_rob1, w_com0, w_com1, w_com2], axis=0)
    assert w128.shape == (_W128_TOTAL, 128)

    p128 = jnp.stack([b_img3,
                      b_rob0, g_rob0, be_rob0,
                      b_rob1,
                      b_com0, g_com0, be_com0,
                      b_com1, g_com1, be_com1,
                      b_com2])
    assert p128.shape == (_P128_TOTAL, 128)

    return {
        "w_img0": w_img0,                                  # (img_in_pad, 1024) bf16, streamed
        "w_img1": w_img1,                                  # (1024, 512) bf16, streamed
        "w256": w_img2,                                    # (512, 256) bf16
        "w128": w128,                                      # (1024, 128) bf16, 6 packed layers
        "p1024": jnp.stack([b_img0, g_img0, be_img0]),     # (3, 1024) f32
        "p512": jnp.stack([b_img1, g_img1, be_img1]),      # (3, 512)  f32
        "p256": jnp.stack([b_img2, g_img2, be_img2]),      # (3, 256)  f32
        "p128": p128,                                      # (12, 128) f32
    }


# ---------------------------------------------------------------------------
# Main
# ---------------------------------------------------------------------------
if __name__ == "__main__":
    B = 8
    OUT_DIM = 8
    IN_DIM = 58 * 4 + 256          # image-feature dim = 256, robot dim = 232

    key = jax.random.PRNGKey(0)
    k_param, k_img, k_rob = jax.random.split(key, 3)

    params = init_params(k_param, IN_DIM, OUT_DIM)
    img_features = jax.random.normal(k_img, (B, IN_DIM - 58 * 4), jnp.float32)
    robot_states = jax.random.normal(k_rob, (B, 58 * 4), jnp.float32)

    out = behavior_cloning_forward(params, img_features, robot_states, OUT_DIM)
    out = jax.block_until_ready(out)
    assert out.shape == (B, OUT_DIM), out.shape
    assert bool(jnp.all(jnp.isfinite(out)))

    ref = _reference_forward(params, img_features, robot_states, OUT_DIM)
    max_err = float(jnp.max(jnp.abs(out - ref)))
    assert max_err < 3e-2, f"kernel/reference mismatch: {max_err}"

    print("KERNEL_OK")
</pallas_src>

<mosaic_0001>
module attributes {stable_mosaic.version = 11 : i64} {
  func.func @_fused_forward_kernel(%arg0: memref<8x256xf32, #tpu.memory_space<vmem>>, %arg1: memref<8x256xf32, #tpu.memory_space<vmem>>, %arg2: memref<256x1024xbf16, #tpu.memory_space<any>>, %arg3: memref<1024x512xbf16, #tpu.memory_space<any>>, %arg4: memref<512x256xbf16, #tpu.memory_space<vmem>>, %arg5: memref<1024x128xbf16, #tpu.memory_space<vmem>>, %arg6: memref<3x1024xf32, #tpu.memory_space<vmem>>, %arg7: memref<3x512xf32, #tpu.memory_space<vmem>>, %arg8: memref<3x256xf32, #tpu.memory_space<vmem>>, %arg9: memref<12x128xf32, #tpu.memory_space<vmem>>, %arg10: memref<8x128xf32, #tpu.memory_space<vmem>>, %arg11: memref<256x1024xbf16, #tpu.memory_space<vmem>>, %arg12: memref<1024x512xbf16, #tpu.memory_space<vmem>>, %arg13: memref<2x!tpu.dma_semaphore, #tpu.memory_space<semaphore_mem>>) attributes {dimension_semantics = [], scalar_prefetch = 0 : i64, scratch_operands = 3 : i64, tpu.core_type = #tpu.core_type<tc>} {
    %c0_i32 = arith.constant 0 : i32
    %0 = tpu.memref_slice %arg13[%c0_i32] : memref<2x!tpu.dma_semaphore, #tpu.memory_space<semaphore_mem>> -> memref<1x!tpu.dma_semaphore, #tpu.memory_space<semaphore_mem>>
    %1 = tpu.memref_squeeze %0 : memref<1x!tpu.dma_semaphore, #tpu.memory_space<semaphore_mem>> -> memref<!tpu.dma_semaphore, #tpu.memory_space<semaphore_mem>>
    tpu.enqueue_dma source(%arg2 : memref<256x1024xbf16, #tpu.memory_space<any>>) target(%arg11 : memref<256x1024xbf16, #tpu.memory_space<vmem>>) target_semaphore(%1 : memref<!tpu.dma_semaphore, #tpu.memory_space<semaphore_mem>>)
    %c1_i32 = arith.constant 1 : i32
    %2 = tpu.memref_slice %arg13[%c1_i32] : memref<2x!tpu.dma_semaphore, #tpu.memory_space<semaphore_mem>> -> memref<1x!tpu.dma_semaphore, #tpu.memory_space<semaphore_mem>>
    %3 = tpu.memref_squeeze %2 : memref<1x!tpu.dma_semaphore, #tpu.memory_space<semaphore_mem>> -> memref<!tpu.dma_semaphore, #tpu.memory_space<semaphore_mem>>
    tpu.enqueue_dma source(%arg3 : memref<1024x512xbf16, #tpu.memory_space<any>>) target(%arg12 : memref<1024x512xbf16, #tpu.memory_space<vmem>>) target_semaphore(%3 : memref<!tpu.dma_semaphore, #tpu.memory_space<semaphore_mem>>)
    %c0 = arith.constant 0 : index
    %c0_0 = arith.constant 0 : index
    %4 = vector.load %arg1[%c0, %c0_0] : memref<8x256xf32, #tpu.memory_space<vmem>>, vector<8x256xf32>
    %c256 = arith.constant 256 : index
    %c0_1 = arith.constant 0 : index
    %5 = vector.load %arg5[%c256, %c0_1] : memref<1024x128xbf16, #tpu.memory_space<vmem>>, vector<256x128xbf16>
    %c1 = arith.constant 1 : index
    %c0_2 = arith.constant 0 : index
    %6 = vector.load %arg9[%c1, %c0_2] : memref<12x128xf32, #tpu.memory_space<vmem>>, vector<1x128xf32>
    %7 = arith.truncf %4 : vector<8x256xf32> to vector<8x256xbf16>
    %cst = arith.constant dense<0.000000e+00> : vector<8x128xf32>
    %8 = tpu.matmul %7, %5, %cst {dimension_numbers = #tpu.dot_dimension_numbers<[1], [0], [0], [1], [0, 0, 1, 1], [], []>} : vector<8x256xbf16>, vector<256x128xbf16>, vector<8x128xf32> -> vector<8x128xf32>
    %9 = vector.broadcast %6 : vector<1x128xf32> to vector<8x128xf32>
    %10 = arith.addf %8, %9 : vector<8x128xf32>
    %c2 = arith.constant 2 : index
    %c0_3 = arith.constant 0 : index
    %11 = vector.load %arg9[%c2, %c0_3] : memref<12x128xf32, #tpu.memory_space<vmem>>, vector<1x128xf32>
    %c3 = arith.constant 3 : index
    %c0_4 = arith.constant 0 : index
    %12 = vector.load %arg9[%c3, %c0_4] : memref<12x128xf32, #tpu.memory_space<vmem>>, vector<1x128xf32>
    %cst_5 = arith.constant dense<0.000000e+00> : vector<128xf32>
    %13 = vector.multi_reduction <add>, %10, %cst_5 [0] : vector<8x128xf32> to vector<128xf32>
    %14 = vector.shape_cast %13 : vector<128xf32> to vector<1x128xf32>
    %cst_6 = arith.constant 8.000000e+00 : f32
    %15 = vector.broadcast %cst_6 : f32 to vector<1x128xf32>
    %16 = arith.divf %14, %15 : vector<1x128xf32>
    %17 = arith.mulf %10, %10 : vector<8x128xf32>
    %cst_7 = arith.constant dense<0.000000e+00> : vector<128xf32>
    %18 = vector.multi_reduction <add>, %17, %cst_7 [0] : vector<8x128xf32> to vector<128xf32>
    %19 = vector.shape_cast %18 : vector<128xf32> to vector<1x128xf32>
    %cst_8 = arith.constant 8.000000e+00 : f32
    %20 = vector.broadcast %cst_8 : f32 to vector<1x128xf32>
    %21 = arith.divf %19, %20 : vector<1x128xf32>
    %22 = arith.mulf %16, %16 : vector<1x128xf32>
    %23 = arith.subf %21, %22 : vector<1x128xf32>
    %cst_9 = arith.constant 9.99999974E-6 : f32
    %24 = vector.broadcast %cst_9 : f32 to vector<1x128xf32>
    %25 = arith.addf %23, %24 : vector<1x128xf32>
    %26 = math.rsqrt %25 : vector<1x128xf32>
    %27 = arith.mulf %11, %26 : vector<1x128xf32>
    %28 = vector.broadcast %16 : vector<1x128xf32> to vector<8x128xf32>
    %29 = arith.subf %10, %28 : vector<8x128xf32>
    %30 = vector.broadcast %27 : vector<1x128xf32> to vector<8x128xf32>
    %31 = arith.mulf %29, %30 : vector<8x128xf32>
    %32 = vector.broadcast %12 : vector<1x128xf32> to vector<8x128xf32>
    %33 = arith.addf %31, %32 : vector<8x128xf32>
    %cst_10 = arith.constant 0.000000e+00 : f32
    %34 = vector.broadcast %cst_10 : f32 to vector<8x128xf32>
    %35 = arith.maximumf %33, %34 : vector<8x128xf32>
    %c512 = arith.constant 512 : index
    %c0_11 = arith.constant 0 : index
    %36 = vector.load %arg5[%c512, %c0_11] : memref<1024x128xbf16, #tpu.memory_space<vmem>>, vector<128x128xbf16>
    %c4 = arith.constant 4 : index
    %c0_12 = arith.constant 0 : index
    %37 = vector.load %arg9[%c4, %c0_12] : memref<12x128xf32, #tpu.memory_space<vmem>>, vector<1x128xf32>
    %38 = arith.truncf %35 : vector<8x128xf32> to vector<8x128xbf16>
    %cst_13 = arith.constant dense<0.000000e+00> : vector<8x128xf32>
    %39 = tpu.matmul %38, %36, %cst_13 {dimension_numbers = #tpu.dot_dimension_numbers<[1], [0], [0], [1], [0, 0, 1, 1], [], []>} : vector<8x128xbf16>, vector<128x128xbf16>, vector<8x128xf32> -> vector<8x128xf32>
    %40 = vector.broadcast %37 : vector<1x128xf32> to vector<8x128xf32>
    %41 = arith.addf %39, %40 : vector<8x128xf32>
    %c0_14 = arith.constant 0 : index
    %c0_15 = arith.constant 0 : index
    %42 = vector.load %arg0[%c0_14, %c0_15] : memref<8x256xf32, #tpu.memory_space<vmem>>, vector<8x256xf32>
    %c0_i32_16 = arith.constant 0 : i32
    %43 = tpu.memref_slice %arg13[%c0_i32_16] : memref<2x!tpu.dma_semaphore, #tpu.memory_space<semaphore_mem>> -> memref<1x!tpu.dma_semaphore, #tpu.memory_space<semaphore_mem>>
    %44 = tpu.memref_squeeze %43 : memref<1x!tpu.dma_semaphore, #tpu.memory_space<semaphore_mem>> -> memref<!tpu.dma_semaphore, #tpu.memory_space<semaphore_mem>>
    tpu.wait_dma2 semaphore(%44 : memref<!tpu.dma_semaphore, #tpu.memory_space<semaphore_mem>>) src(%arg2 : memref<256x1024xbf16, #tpu.memory_space<any>>) dst(%arg11 : memref<256x1024xbf16, #tpu.memory_space<vmem>>)
    %c0_17 = arith.constant 0 : index
    %c0_18 = arith.constant 0 : index
    %45 = vector.load %arg11[%c0_17, %c0_18] : memref<256x1024xbf16, #tpu.memory_space<vmem>>, vector<256x1024xbf16>
    %c0_19 = arith.constant 0 : index
    %c0_20 = arith.constant 0 : index
    %46 = vector.load %arg6[%c0_19, %c0_20] : memref<3x1024xf32, #tpu.memory_space<vmem>>, vector<1x1024xf32>
    %47 = arith.truncf %42 : vector<8x256xf32> to vector<8x256xbf16>
    %cst_21 = arith.constant dense<0.000000e+00> : vector<8x1024xf32>
    %48 = tpu.matmul %47, %45, %cst_21 {dimension_numbers = #tpu.dot_dimension_numbers<[1], [0], [0], [1], [0, 0, 1, 1], [], []>} : vector<8x256xbf16>, vector<256x1024xbf16>, vector<8x1024xf32> -> vector<8x1024xf32>
    %49 = vector.broadcast %46 : vector<1x1024xf32> to vector<8x1024xf32>
    %50 = arith.addf %48, %49 : vector<8x1024xf32>
    %c1_22 = arith.constant 1 : index
    %c0_23 = arith.constant 0 : index
    %51 = vector.load %arg6[%c1_22, %c0_23] : memref<3x1024xf32, #tpu.memory_space<vmem>>, vector<1x1024xf32>
    %c2_24 = arith.constant 2 : index
    %c0_25 = arith.constant 0 : index
    %52 = vector.load %arg6[%c2_24, %c0_25] : memref<3x1024xf32, #tpu.memory_space<vmem>>, vector<1x1024xf32>
    %cst_26 = arith.constant dense<0.000000e+00> : vector<1024xf32>
    %53 = vector.multi_reduction <add>, %50, %cst_26 [0] : vector<8x1024xf32> to vector<1024xf32>
    %54 = vector.shape_cast %53 : vector<1024xf32> to vector<1x1024xf32>
    %cst_27 = arith.constant 8.000000e+00 : f32
    %55 = vector.broadcast %cst_27 : f32 to vector<1x1024xf32>
    %56 = arith.divf %54, %55 : vector<1x1024xf32>
    %57 = arith.mulf %50, %50 : vector<8x1024xf32>
    %cst_28 = arith.constant dense<0.000000e+00> : vector<1024xf32>
    %58 = vector.multi_reduction <add>, %57, %cst_28 [0] : vector<8x1024xf32> to vector<1024xf32>
    %59 = vector.shape_cast %58 : vector<1024xf32> to vector<1x1024xf32>
    %cst_29 = arith.constant 8.000000e+00 : f32
    %60 = vector.broadcast %cst_29 : f32 to vector<1x1024xf32>
    %61 = arith.divf %59, %60 : vector<1x1024xf32>
    %62 = arith.mulf %56, %56 : vector<1x1024xf32>
    %63 = arith.subf %61, %62 : vector<1x1024xf32>
    %cst_30 = arith.constant 9.99999974E-6 : f32
    %64 = vector.broadcast %cst_30 : f32 to vector<1x1024xf32>
    %65 = arith.addf %63, %64 : vector<1x1024xf32>
    %66 = math.rsqrt %65 : vector<1x1024xf32>
    %67 = arith.mulf %51, %66 : vector<1x1024xf32>
    %68 = vector.broadcast %56 : vector<1x1024xf32> to vector<8x1024xf32>
    %69 = arith.subf %50, %68 : vector<8x1024xf32>
    %70 = vector.broadcast %67 : vector<1x1024xf32> to vector<8x1024xf32>
    %71 = arith.mulf %69, %70 : vector<8x1024xf32>
    %72 = vector.broadcast %52 : vector<1x1024xf32> to vector<8x1024xf32>
    %73 = arith.addf %71, %72 : vector<8x1024xf32>
    %cst_31 = arith.constant 0.000000e+00 : f32
    %74 = vector.broadcast %cst_31 : f32 to vector<8x1024xf32>
    %75 = arith.maximumf %73, %74 : vector<8x1024xf32>
    %c1_i32_32 = arith.constant 1 : i32
    %76 = tpu.memref_slice %arg13[%c1_i32_32] : memref<2x!tpu.dma_semaphore, #tpu.memory_space<semaphore_mem>> -> memref<1x!tpu.dma_semaphore, #tpu.memory_space<semaphore_mem>>
    %77 = tpu.memref_squeeze %76 : memref<1x!tpu.dma_semaphore, #tpu.memory_space<semaphore_mem>> -> memref<!tpu.dma_semaphore, #tpu.memory_space<semaphore_mem>>
    tpu.wait_dma2 semaphore(%77 : memref<!tpu.dma_semaphore, #tpu.memory_space<semaphore_mem>>) src(%arg3 : memref<1024x512xbf16, #tpu.memory_space<any>>) dst(%arg12 : memref<1024x512xbf16, #tpu.memory_space<vmem>>)
    %c0_33 = arith.constant 0 : index
    %c0_34 = arith.constant 0 : index
    %78 = vector.load %arg12[%c0_33, %c0_34] : memref<1024x512xbf16, #tpu.memory_space<vmem>>, vector<1024x512xbf16>
    %c0_35 = arith.constant 0 : index
    %c0_36 = arith.constant 0 : index
    %79 = vector.load %arg7[%c0_35, %c0_36] : memref<3x512xf32, #tpu.memory_space<vmem>>, vector<1x512xf32>
    %80 = arith.truncf %75 : vector<8x1024xf32> to vector<8x1024xbf16>
    %cst_37 = arith.constant dense<0.000000e+00> : vector<8x512xf32>
    %81 = tpu.matmul %80, %78, %cst_37 {dimension_numbers = #tpu.dot_dimension_numbers<[1], [0], [0], [1], [0, 0, 1, 1], [], []>} : vector<8x1024xbf16>, vector<1024x512xbf16>, vector<8x512xf32> -> vector<8x512xf32>
    %82 = vector.broadcast %79 : vector<1x512xf32> to vector<8x512xf32>
    %83 = arith.addf %81, %82 : vector<8x512xf32>
    %c1_38 = arith.constant 1 : index
    %c0_39 = arith.constant 0 : index
    %84 = vector.load %arg7[%c1_38, %c0_39] : memref<3x512xf32, #tpu.memory_space<vmem>>, vector<1x512xf32>
    %c2_40 = arith.constant 2 : index
    %c0_41 = arith.constant 0 : index
    %85 = vector.load %arg7[%c2_40, %c0_41] : memref<3x512xf32, #tpu.memory_space<vmem>>, vector<1x512xf32>
    %cst_42 = arith.constant dense<0.000000e+00> : vector<512xf32>
    %86 = vector.multi_reduction <add>, %83, %cst_42 [0] : vector<8x512xf32> to vector<512xf32>
    %87 = vector.shape_cast %86 : vector<512xf32> to vector<1x512xf32>
    %cst_43 = arith.constant 8.000000e+00 : f32
    %88 = vector.broadcast %cst_43 : f32 to vector<1x512xf32>
    %89 = arith.divf %87, %88 : vector<1x512xf32>
    %90 = arith.mulf %83, %83 : vector<8x512xf32>
    %cst_44 = arith.constant dense<0.000000e+00> : vector<512xf32>
    %91 = vector.multi_reduction <add>, %90, %cst_44 [0] : vector<8x512xf32> to vector<512xf32>
    %92 = vector.shape_cast %91 : vector<512xf32> to vector<1x512xf32>
    %cst_45 = arith.constant 8.000000e+00 : f32
    %93 = vector.broadcast %cst_45 : f32 to vector<1x512xf32>
    %94 = arith.divf %92, %93 : vector<1x512xf32>
    %95 = arith.mulf %89, %89 : vector<1x512xf32>
    %96 = arith.subf %94, %95 : vector<1x512xf32>
    %cst_46 = arith.constant 9.99999974E-6 : f32
    %97 = vector.broadcast %cst_46 : f32 to vector<1x512xf32>
    %98 = arith.addf %96, %97 : vector<1x512xf32>
    %99 = math.rsqrt %98 : vector<1x512xf32>
    %100 = arith.mulf %84, %99 : vector<1x512xf32>
    %101 = vector.broadcast %89 : vector<1x512xf32> to vector<8x512xf32>
    %102 = arith.subf %83, %101 : vector<8x512xf32>
    %103 = vector.broadcast %100 : vector<1x512xf32> to vector<8x512xf32>
    %104 = arith.mulf %102, %103 : vector<8x512xf32>
    %105 = vector.broadcast %85 : vector<1x512xf32> to vector<8x512xf32>
    %106 = arith.addf %104, %105 : vector<8x512xf32>
    %cst_47 = arith.constant 0.000000e+00 : f32
    %107 = vector.broadcast %cst_47 : f32 to vector<8x512xf32>
    %108 = arith.maximumf %106, %107 : vector<8x512xf32>
    %c0_48 = arith.constant 0 : index
    %c0_49 = arith.constant 0 : index
    %109 = vector.load %arg4[%c0_48, %c0_49] : memref<512x256xbf16, #tpu.memory_space<vmem>>, vector<512x256xbf16>
    %c0_50 = arith.constant 0 : index
    %c0_51 = arith.constant 0 : index
    %110 = vector.load %arg8[%c0_50, %c0_51] : memref<3x256xf32, #tpu.memory_space<vmem>>, vector<1x256xf32>
    %111 = arith.truncf %108 : vector<8x512xf32> to vector<8x512xbf16>
    %cst_52 = arith.constant dense<0.000000e+00> : vector<8x256xf32>
    %112 = tpu.matmul %111, %109, %cst_52 {dimension_numbers = #tpu.dot_dimension_numbers<[1], [0], [0], [1], [0, 0, 1, 1], [], []>} : vector<8x512xbf16>, vector<512x256xbf16>, vector<8x256xf32> -> vector<8x256xf32>
    %113 = vector.broadcast %110 : vector<1x256xf32> to vector<8x256xf32>
    %114 = arith.addf %112, %113 : vector<8x256xf32>
    %c1_53 = arith.constant 1 : index
    %c0_54 = arith.constant 0 : index
    %115 = vector.load %arg8[%c1_53, %c0_54] : memref<3x256xf32, #tpu.memory_space<vmem>>, vector<1x256xf32>
    %c2_55 = arith.constant 2 : index
    %c0_56 = arith.constant 0 : index
    %116 = vector.load %arg8[%c2_55, %c0_56] : memref<3x256xf32, #tpu.memory_space<vmem>>, vector<1x256xf32>
    %cst_57 = arith.constant dense<0.000000e+00> : vector<256xf32>
    %117 = vector.multi_reduction <add>, %114, %cst_57 [0] : vector<8x256xf32> to vector<256xf32>
    %118 = vector.shape_cast %117 : vector<256xf32> to vector<1x256xf32>
    %cst_58 = arith.constant 8.000000e+00 : f32
    %119 = vector.broadcast %cst_58 : f32 to vector<1x256xf32>
    %120 = arith.divf %118, %119 : vector<1x256xf32>
    %121 = arith.mulf %114, %114 : vector<8x256xf32>
    %cst_59 = arith.constant dense<0.000000e+00> : vector<256xf32>
    %122 = vector.multi_reduction <add>, %121, %cst_59 [0] : vector<8x256xf32> to vector<256xf32>
    %123 = vector.shape_cast %122 : vector<256xf32> to vector<1x256xf32>
    %cst_60 = arith.constant 8.000000e+00 : f32
    %124 = vector.broadcast %cst_60 : f32 to vector<1x256xf32>
    %125 = arith.divf %123, %124 : vector<1x256xf32>
    %126 = arith.mulf %120, %120 : vector<1x256xf32>
    %127 = arith.subf %125, %126 : vector<1x256xf32>
    %cst_61 = arith.constant 9.99999974E-6 : f32
    %128 = vector.broadcast %cst_61 : f32 to vector<1x256xf32>
    %129 = arith.addf %127, %128 : vector<1x256xf32>
    %130 = math.rsqrt %129 : vector<1x256xf32>
    %131 = arith.mulf %115, %130 : vector<1x256xf32>
    %132 = vector.broadcast %120 : vector<1x256xf32> to vector<8x256xf32>
    %133 = arith.subf %114, %132 : vector<8x256xf32>
    %134 = vector.broadcast %131 : vector<1x256xf32> to vector<8x256xf32>
    %135 = arith.mulf %133, %134 : vector<8x256xf32>
    %136 = vector.broadcast %116 : vector<1x256xf32> to vector<8x256xf32>
    %137 = arith.addf %135, %136 : vector<8x256xf32>
    %cst_62 = arith.constant 0.000000e+00 : f32
    %138 = vector.broadcast %cst_62 : f32 to vector<8x256xf32>
    %139 = arith.maximumf %137, %138 : vector<8x256xf32>
    %c0_63 = arith.constant 0 : index
    %c0_64 = arith.constant 0 : index
    %140 = vector.load %arg5[%c0_63, %c0_64] : memref<1024x128xbf16, #tpu.memory_space<vmem>>, vector<256x128xbf16>
    %c0_65 = arith.constant 0 : index
    %c0_66 = arith.constant 0 : index
    %141 = vector.load %arg9[%c0_65, %c0_66] : memref<12x128xf32, #tpu.memory_space<vmem>>, vector<1x128xf32>
    %142 = arith.truncf %139 : vector<8x256xf32> to vector<8x256xbf16>
    %cst_67 = arith.constant dense<0.000000e+00> : vector<8x128xf32>
    %143 = tpu.matmul %142, %140, %cst_67 {dimension_numbers = #tpu.dot_dimension_numbers<[1], [0], [0], [1], [0, 0, 1, 1], [], []>} : vector<8x256xbf16>, vector<256x128xbf16>, vector<8x128xf32> -> vector<8x128xf32>
    %144 = vector.broadcast %141 : vector<1x128xf32> to vector<8x128xf32>
    %145 = arith.addf %143, %144 : vector<8x128xf32>
    %146 = arith.addf %145, %41 : vector<8x128xf32>
    %cst_68 = arith.constant 0.000000e+00 : f32
    %147 = vector.broadcast %cst_68 : f32 to vector<8x128xf32>
    %148 = arith.maximumf %146, %147 : vector<8x128xf32>
    %c640 = arith.constant 640 : index
    %c0_69 = arith.constant 0 : index
    %149 = vector.load %arg5[%c640, %c0_69] : memref<1024x128xbf16, #tpu.memory_space<vmem>>, vector<128x128xbf16>
    %c5 = arith.constant 5 : index
    %c0_70 = arith.constant 0 : index
    %150 = vector.load %arg9[%c5, %c0_70] : memref<12x128xf32, #tpu.memory_space<vmem>>, vector<1x128xf32>
    %151 = arith.truncf %148 : vector<8x128xf32> to vector<8x128xbf16>
    %cst_71 = arith.constant dense<0.000000e+00> : vector<8x128xf32>
    %152 = tpu.matmul %151, %149, %cst_71 {dimension_numbers = #tpu.dot_dimension_numbers<[1], [0], [0], [1], [0, 0, 1, 1], [], []>} : vector<8x128xbf16>, vector<128x128xbf16>, vector<8x128xf32> -> vector<8x128xf32>
    %153 = vector.broadcast %150 : vector<1x128xf32> to vector<8x128xf32>
    %154 = arith.addf %152, %153 : vector<8x128xf32>
    %c6 = arith.constant 6 : index
    %c0_72 = arith.constant 0 : index
    %155 = vector.load %arg9[%c6, %c0_72] : memref<12x128xf32, #tpu.memory_space<vmem>>, vector<1x128xf32>
    %c7 = arith.constant 7 : index
    %c0_73 = arith.constant 0 : index
    %156 = vector.load %arg9[%c7, %c0_73] : memref<12x128xf32, #tpu.memory_space<vmem>>, vector<1x128xf32>
    %cst_74 = arith.constant dense<0.000000e+00> : vector<128xf32>
    %157 = vector.multi_reduction <add>, %154, %cst_74 [0] : vector<8x128xf32> to vector<128xf32>
    %158 = vector.shape_cast %157 : vector<128xf32> to vector<1x128xf32>
    %cst_75 = arith.constant 8.000000e+00 : f32
    %159 = vector.broadcast %cst_75 : f32 to vector<1x128xf32>
    %160 = arith.divf %158, %159 : vector<1x128xf32>
    %161 = arith.mulf %154, %154 : vector<8x128xf32>
    %cst_76 = arith.constant dense<0.000000e+00> : vector<128xf32>
    %162 = vector.multi_reduction <add>, %161, %cst_76 [0] : vector<8x128xf32> to vector<128xf32>
    %163 = vector.shape_cast %162 : vector<128xf32> to vector<1x128xf32>
    %cst_77 = arith.constant 8.000000e+00 : f32
    %164 = vector.broadcast %cst_77 : f32 to vector<1x128xf32>
    %165 = arith.divf %163, %164 : vector<1x128xf32>
    %166 = arith.mulf %160, %160 : vector<1x128xf32>
    %167 = arith.subf %165, %166 : vector<1x128xf32>
    %cst_78 = arith.constant 9.99999974E-6 : f32
    %168 = vector.broadcast %cst_78 : f32 to vector<1x128xf32>
    %169 = arith.addf %167, %168 : vector<1x128xf32>
    %170 = math.rsqrt %169 : vector<1x128xf32>
    %171 = arith.mulf %155, %170 : vector<1x128xf32>
    %172 = vector.broadcast %160 : vector<1x128xf32> to vector<8x128xf32>
    %173 = arith.subf %154, %172 : vector<8x128xf32>
    %174 = vector.broadcast %171 : vector<1x128xf32> to vector<8x128xf32>
    %175 = arith.mulf %173, %174 : vector<8x128xf32>
    %176 = vector.broadcast %156 : vector<1x128xf32> to vector<8x128xf32>
    %177 = arith.addf %175, %176 : vector<8x128xf32>
    %cst_79 = arith.constant 0.000000e+00 : f32
    %178 = vector.broadcast %cst_79 : f32 to vector<8x128xf32>
    %179 = arith.maximumf %177, %178 : vector<8x128xf32>
    %c768 = arith.constant 768 : index
    %c0_80 = arith.constant 0 : index
    %180 = vector.load %arg5[%c768, %c0_80] : memref<1024x128xbf16, #tpu.memory_space<vmem>>, vector<128x128xbf16>
    %c8 = arith.constant 8 : index
    %c0_81 = arith.constant 0 : index
    %181 = vector.load %arg9[%c8, %c0_81] : memref<12x128xf32, #tpu.memory_space<vmem>>, vector<1x128xf32>
    %182 = arith.truncf %179 : vector<8x128xf32> to vector<8x128xbf16>
    %cst_82 = arith.constant dense<0.000000e+00> : vector<8x128xf32>
    %183 = tpu.matmul %182, %180, %cst_82 {dimension_numbers = #tpu.dot_dimension_numbers<[1], [0], [0], [1], [0, 0, 1, 1], [], []>} : vector<8x128xbf16>, vector<128x128xbf16>, vector<8x128xf32> -> vector<8x128xf32>
    %184 = vector.broadcast %181 : vector<1x128xf32> to vector<8x128xf32>
    %185 = arith.addf %183, %184 : vector<8x128xf32>
    %c9 = arith.constant 9 : index
    %c0_83 = arith.constant 0 : index
    %186 = vector.load %arg9[%c9, %c0_83] : memref<12x128xf32, #tpu.memory_space<vmem>>, vector<1x128xf32>
    %c10 = arith.constant 10 : index
    %c0_84 = arith.constant 0 : index
    %187 = vector.load %arg9[%c10, %c0_84] : memref<12x128xf32, #tpu.memory_space<vmem>>, vector<1x128xf32>
    %cst_85 = arith.constant dense<0.000000e+00> : vector<128xf32>
    %188 = vector.multi_reduction <add>, %185, %cst_85 [0] : vector<8x128xf32> to vector<128xf32>
    %189 = vector.shape_cast %188 : vector<128xf32> to vector<1x128xf32>
    %cst_86 = arith.constant 8.000000e+00 : f32
    %190 = vector.broadcast %cst_86 : f32 to vector<1x128xf32>
    %191 = arith.divf %189, %190 : vector<1x128xf32>
    %192 = arith.mulf %185, %185 : vector<8x128xf32>
    %cst_87 = arith.constant dense<0.000000e+00> : vector<128xf32>
    %193 = vector.multi_reduction <add>, %192, %cst_87 [0] : vector<8x128xf32> to vector<128xf32>
    %194 = vector.shape_cast %193 : vector<128xf32> to vector<1x128xf32>
    %cst_88 = arith.constant 8.000000e+00 : f32
    %195 = vector.broadcast %cst_88 : f32 to vector<1x128xf32>
    %196 = arith.divf %194, %195 : vector<1x128xf32>
    %197 = arith.mulf %191, %191 : vector<1x128xf32>
    %198 = arith.subf %196, %197 : vector<1x128xf32>
    %cst_89 = arith.constant 9.99999974E-6 : f32
    %199 = vector.broadcast %cst_89 : f32 to vector<1x128xf32>
    %200 = arith.addf %198, %199 : vector<1x128xf32>
    %201 = math.rsqrt %200 : vector<1x128xf32>
    %202 = arith.mulf %186, %201 : vector<1x128xf32>
    %203 = vector.broadcast %191 : vector<1x128xf32> to vector<8x128xf32>
    %204 = arith.subf %185, %203 : vector<8x128xf32>
    %205 = vector.broadcast %202 : vector<1x128xf32> to vector<8x128xf32>
    %206 = arith.mulf %204, %205 : vector<8x128xf32>
    %207 = vector.broadcast %187 : vector<1x128xf32> to vector<8x128xf32>
    %208 = arith.addf %206, %207 : vector<8x128xf32>
    %cst_90 = arith.constant 0.000000e+00 : f32
    %209 = vector.broadcast %cst_90 : f32 to vector<8x128xf32>
    %210 = arith.maximumf %208, %209 : vector<8x128xf32>
    %c896 = arith.constant 896 : index
    %c0_91 = arith.constant 0 : index
    %211 = vector.load %arg5[%c896, %c0_91] : memref<1024x128xbf16, #tpu.memory_space<vmem>>, vector<128x128xbf16>
    %c11 = arith.constant 11 : index
    %c0_92 = arith.constant 0 : index
    %212 = vector.load %arg9[%c11, %c0_92] : memref<12x128xf32, #tpu.memory_space<vmem>>, vector<1x128xf32>
    %213 = arith.truncf %210 : vector<8x128xf32> to vector<8x128xbf16>
    %cst_93 = arith.constant dense<0.000000e+00> : vector<8x128xf32>
    %214 = tpu.matmul %213, %211, %cst_93 {dimension_numbers = #tpu.dot_dimension_numbers<[1], [0], [0], [1], [0, 0, 1, 1], [], []>} : vector<8x128xbf16>, vector<128x128xbf16>, vector<8x128xf32> -> vector<8x128xf32>
    %215 = vector.broadcast %212 : vector<1x128xf32> to vector<8x128xf32>
    %216 = arith.addf %214, %215 : vector<8x128xf32>
    %c0_94 = arith.constant 0 : index
    %c0_95 = arith.constant 0 : index
    %217 = vector.load %arg10[%c0_94, %c0_95] : memref<8x128xf32, #tpu.memory_space<vmem>>, vector<8x128xf32>
    tpu.vector_store %arg10[%c0_94, %c0_95], %216 {strides = array<i32>} : memref<8x128xf32, #tpu.memory_space<vmem>>, vector<8x128xf32>,
    return
  }
}

</mosaic_0001>

<llo_original>
// kernel: tpu_custom_call.1
$region0: #{tpu_custom_call.1}
  #allocation0 [shape = 'u32[]', space=smem, size = 0x4, offset = 0x4, fixed_abs, tag = 'smem constant byte address 0x4 - core index']
  #allocation1 [shape = 'u32[144,128]{1,0:T(1,128)}', space=vmem, size = 0x12000, scoped, tag = 'internal scratch']
  #allocation2 [shape = 'bf16[256,1024]{1,0:T(16,128)(2,1)}', space=vmem, size = 0x80000, scoped, tag = 'scratch operand']
  #allocation3 [shape = 'bf16[1024,512]{1,0:T(16,128)(2,1)}', space=vmem, size = 0x100000, scoped, tag = 'scratch operand']
  #allocation4 [shape = 's32[2]{0}', space=sflag, size = 0x8, scoped, tag = 'scratch operand']
  #allocation17 [shape = 's32[]', space=sflag, size = 0x4, offset = 0, fixed_abs, tag = 'sflag constant byte address 0x0 - dummy sync flag']
  #allocation19 [shape = 's32[]', space=sflag, size = 0x4, offset = 0, fixed_abs, tag = 'sflag constant byte address 0x0 - dummy sync flag']
  %s0 = inlined_call_operand.hbm [shape: f32[8,256], index: 0, kind: input, shape index: {}]
  %s1 = inlined_call_operand.hbm [shape: f32[8,256], index: 1, kind: input, shape index: {}]
  %s2 = inlined_call_operand.hbm [shape: bf16[256,1024], index: 2, kind: input, shape index: {}]
  %s3 = inlined_call_operand.hbm [shape: bf16[1024,512], index: 3, kind: input, shape index: {}]
  %s4 = inlined_call_operand.hbm [shape: bf16[512,256], index: 4, kind: input, shape index: {}]
  %s5 = inlined_call_operand.hbm [shape: bf16[1024,128], index: 5, kind: input, shape index: {}]
  %s6 = inlined_call_operand.hbm [shape: f32[3,1024], index: 6, kind: input, shape index: {}]
  %s7 = inlined_call_operand.vmem [shape: f32[3,512], index: 7, kind: input, shape index: {}]
  %s8 = inlined_call_operand.hbm [shape: f32[3,256], index: 8, kind: input, shape index: {}]
  %s9 = inlined_call_operand.vmem [shape: f32[12,128], index: 9, kind: input, shape index: {}]
  %s10 = inlined_call_operand.hbm [shape: f32[8,128], index: 10, kind: output, shape index: {}]
  %s11 = sld [smem:[#allocation0]]
  $region66: #{tpu_custom_call.1} parent=0
    _
  %s13 = ssub.s32 1, %s11
  %s14 = scalar_select 0, %s13, %s11
  $region1: #{tpu_custom_call.1} parent=0
    #allocation5 [shape = 'u8[8192]{0}', space=vmem, size = 0x2000, scoped, tag = 'input window, operand 0, single buffered']
    #allocation6 [shape = 's32[1]{0}', space=sflag, size = 0x4, scoped, tag = 'scoped memory for tpu_custom_call.1']
    #allocation7 [shape = 's32[1]{0}', space=sflag, size = 0x4, scoped, tag = 'scoped memory for tpu_custom_call.1']
    #allocation8 [shape = 'u8[8192]{0}', space=vmem, size = 0x2000, scoped, tag = 'input window, operand 1, single buffered']
    #allocation9 [shape = 's32[1]{0}', space=sflag, size = 0x4, scoped, tag = 'scoped memory for tpu_custom_call.1']
    #allocation10 [shape = 'u8[262144]{0}', space=vmem, size = 0x40000, scoped, tag = 'input window, operand 4, single buffered']
    #allocation11 [shape = 'u8[262144]{0}', space=vmem, size = 0x40000, scoped, tag = 'input window, operand 5, single buffered']
    #allocation12 [shape = 's32[1]{0}', space=sflag, size = 0x4, scoped, tag = 'scoped memory for tpu_custom_call.1']
    #allocation13 [shape = 'u8[16384]{0}', space=vmem, size = 0x4000, scoped, tag = 'input window, operand 6, single buffered']
    #allocation14 [shape = 'u8[4096]{0}', space=vmem, size = 0x1000, scoped, tag = 'input window, operand 8, single buffered']
    #allocation15 [shape = 's32[1]{0}', space=sflag, size = 0x4, scoped, tag = 'scoped memory for tpu_custom_call.1']
    #allocation16 [shape = 'u8[4096]{0}', space=vmem, size = 0x1000, scoped, tag = 'output window, operand 0, single buffered']
    #allocation18 [shape = 'u32[9]{0}', space=smem, size = 0x24, scoped, tag = 'DMA stride descriptor']
    #allocation20 [shape = 'u32[9]{0}', space=smem, size = 0x24, scoped, tag = 'DMA stride descriptor']
    %15 = vsyncpa [#allocation6], 0
    %16 = vsyncpa [#allocation9], 0
    %17 = vsyncpa [#allocation12], 0
    %18 = vsyncpa [#allocation15], 0
    %19 = vsyncpa [#allocation7], 0
    // Predicated region
    $region2: #{tpu_custom_call.1} parent=1 // pred_check
      _
    $region3: #{tpu_custom_call.1} parent=1 // pred_check_branch
      %21 = sbr.rel (0) target = $region5
    $region4: #{tpu_custom_call.1} parent=1 // pred_region
      %s23 = ssub.s32 256, 256
      %24 = vsyncadd [#allocation6], %s23
      %s26 = sshll.u32 [#allocation5], 4
      %s27 = int_to_ptr.vmem [resolvable:$true] %s26
      %29 = dma.hbm_to_vmem [thread:$0]  %s0, 256, %s27, [#allocation6]
    $region5: #{tpu_custom_call.1} parent=1 // pred_fallthru
      _
    // Predicated region
    $region6: #{tpu_custom_call.1} parent=1 // pred_check
      _
    $region7: #{tpu_custom_call.1} parent=1 // pred_check_branch
      %31 = sbr.rel (0) target = $region9
    $region8: #{tpu_custom_call.1} parent=1 // pred_region
      %s33 = ssub.s32 256, 256
      %34 = vsyncadd [#allocation9], %s33
      %s36 = sshll.u32 [#allocation8], 4
      %s37 = int_to_ptr.vmem [resolvable:$true] %s36
      %39 = dma.hbm_to_vmem [thread:$0]  %s1, 256, %s37, [#allocation9]
    $region9: #{tpu_custom_call.1} parent=1 // pred_fallthru
      _
    // Predicated region
    $region10: #{tpu_custom_call.1} parent=1 // pred_check
      _
    $region11: #{tpu_custom_call.1} parent=1 // pred_check_branch
      %41 = sbr.rel (0) target = $region13
    $region12: #{tpu_custom_call.1} parent=1 // pred_region
      %s43 = ssub.s32 8192, 8192
      %44 = vsyncadd [#allocation9], %s43
      %s45 = sshll.u32 [#allocation10], 4
      %s46 = int_to_ptr.vmem [resolvable:$true] %s45
      %51 = dma.hbm_to_vmem [thread:$0]  %s4, 8192, %s46, [#allocation9], 128, 128, 8
    $region13: #{tpu_custom_call.1} parent=1 // pred_fallthru
      _
    // Predicated region
    $region14: #{tpu_custom_call.1} parent=1 // pred_check
      _
    $region15: #{tpu_custom_call.1} parent=1 // pred_check_branch
      %53 = sbr.rel (0) target = $region17
    $region16: #{tpu_custom_call.1} parent=1 // pred_region
      %s55 = ssub.s32 8192, 8192
      %56 = vsyncadd [#allocation12], %s55
      %s57 = sshll.u32 [#allocation11], 4
      %s58 = int_to_ptr.vmem [resolvable:$true] %s57
      %63 = dma.hbm_to_vmem [thread:$0]  %s5, 8192, %s58, [#allocation12], 64, 64, 4
    $region17: #{tpu_custom_call.1} parent=1 // pred_fallthru
      _
    // Predicated region
    $region18: #{tpu_custom_call.1} parent=1 // pred_check
      _
    $region19: #{tpu_custom_call.1} parent=1 // pred_check_branch
      %65 = sbr.rel (0) target = $region21
    $region20: #{tpu_custom_call.1} parent=1 // pred_region
      %s67 = ssub.s32 512, 512
      %68 = vsyncadd [#allocation12], %s67
      %s70 = sshll.u32 [#allocation13], 4
      %s71 = int_to_ptr.vmem [resolvable:$true] %s70
      %73 = dma.hbm_to_vmem [thread:$0]  %s6, 512, %s71, [#allocation12]
    $region21: #{tpu_custom_call.1} parent=1 // pred_fallthru
      _
    // Predicated region
    $region22: #{tpu_custom_call.1} parent=1 // pred_check
      _
    $region23: #{tpu_custom_call.1} parent=1 // pred_check_branch
      %75 = sbr.rel (0) target = $region25
    $region24: #{tpu_custom_call.1} parent=1 // pred_region
      _
    $region25: #{tpu_custom_call.1} parent=1 // pred_fallthru
      _
    // Predicated region
    $region26: #{tpu_custom_call.1} parent=1 // pred_check
      _
    $region27: #{tpu_custom_call.1} parent=1 // pred_check_branch
      %77 = sbr.rel (0) target = $region29
    $region28: #{tpu_custom_call.1} parent=1 // pred_region
      %s79 = ssub.s32 128, 128
      %80 = vsyncadd [#allocation15], %s79
      %s82 = sshll.u32 [#allocation14], 4
      %s83 = int_to_ptr.vmem [resolvable:$true] %s82
      %85 = dma.hbm_to_vmem [thread:$0]  %s8, 128, %s83, [#allocation15]
    $region29: #{tpu_custom_call.1} parent=1 // pred_fallthru
      _
    // Predicated region
    $region30: #{tpu_custom_call.1} parent=1 // pred_check
      _
    $region31: #{tpu_custom_call.1} parent=1 // pred_check_branch
      %87 = sbr.rel (0) target = $region33
    $region32: #{tpu_custom_call.1} parent=1 // pred_region
      _
    $region33: #{tpu_custom_call.1} parent=1 // pred_fallthru
      _
    // Predicated region
    $region34: #{tpu_custom_call.1} parent=1 // pred_check
      _
    $region35: #{tpu_custom_call.1} parent=1 // pred_check_branch
      %89 = sbr.rel (0) target = $region37
    $region36: #{tpu_custom_call.1} parent=1 // pred_region
      %90 = dma.done [#allocation6], 256
    $region37: #{tpu_custom_call.1} parent=1 // pred_fallthru
      _
    // Predicated region
    $region38: #{tpu_custom_call.1} parent=1 // pred_check
      _
    $region39: #{tpu_custom_call.1} parent=1 // pred_check_branch
      %92 = sbr.rel (0) target = $region41
    $region40: #{tpu_custom_call.1} parent=1 // pred_region
      %93 = dma.done [#allocation9], 256
    $region41: #{tpu_custom_call.1} parent=1 // pred_fallthru
      _
    // Predicated region
    $region42: #{tpu_custom_call.1} parent=1 // pred_check
      _
    $region43: #{tpu_custom_call.1} parent=1 // pred_check_branch
      %95 = sbr.rel (0) target = $region45
    $region44: #{tpu_custom_call.1} parent=1 // pred_region
      %96 = dma.done [#allocation9], 8192
    $region45: #{tpu_custom_call.1} parent=1 // pred_fallthru
      _
    // Predicated region
    $region46: #{tpu_custom_call.1} parent=1 // pred_check
      _
    $region47: #{tpu_custom_call.1} parent=1 // pred_check_branch
      %98 = sbr.rel (0) target = $region49
    $region48: #{tpu_custom_call.1} parent=1 // pred_region
      %99 = dma.done [#allocation12], 8192
    $region49: #{tpu_custom_call.1} parent=1 // pred_fallthru
      _
    // Predicated region
    $region50: #{tpu_custom_call.1} parent=1 // pred_check
      _
    $region51: #{tpu_custom_call.1} parent=1 // pred_check_branch
      %101 = sbr.rel (0) target = $region53
    $region52: #{tpu_custom_call.1} parent=1 // pred_region
      %102 = dma.done [#allocation12], 512
    $region53: #{tpu_custom_call.1} parent=1 // pred_fallthru
      _
    // Predicated region
    $region54: #{tpu_custom_call.1} parent=1 // pred_check
      _
    $region55: #{tpu_custom_call.1} parent=1 // pred_check_branch
      %104 = sbr.rel (0) target = $region57
    $region56: #{tpu_custom_call.1} parent=1 // pred_region
      %105 = dma.done [#allocation15], 128
    $region57: #{tpu_custom_call.1} parent=1 // pred_fallthru
      _
    %s108 = sshll.u32 1, 14
    %s109 = sxor.u32 4294967295, %s108
    %s111 = sld [smem:[#allocation0]]
    %s112 = sadd.s32 2, %s111
    %s114 = sshll.u32 7, 26
    %s115 = sxor.u32 4294967295, %s114
    %s116 = sand.u32 0, %s115
    %s117 = sshll.u32 %s112, 26
    %s118 = sor.u32 %s116, %s117
    %s119 = sshll.u32 [#allocation2], 4
    %s120 = int_to_ptr.vmem [resolvable:$true] %s119
    %123 = sst [smem:[#allocation18]] 1024
    %s124 = scalar_lea.smem [#allocation18], 1
    %125 = sst [smem:[%s124]] 1024
    %s126 = scalar_lea.smem [#allocation18], 2
    %127 = sst [smem:[%s126]] 8
    %s128 = scalar_lea.smem [#allocation18], 3
    %129 = sst [smem:[%s128]] 64
    %s130 = scalar_lea.smem [#allocation18], 4
    %131 = sst [smem:[%s130]] 128
    %s132 = scalar_lea.smem [#allocation18], 5
    %133 = sst [smem:[%s132]] 2
    %s134 = scalar_lea.smem [#allocation18], 6
    %135 = sst [smem:[%s134]] 512
    %s136 = scalar_lea.smem [#allocation18], 7
    %137 = sst [smem:[%s136]] 64
    %s138 = scalar_lea.smem [#allocation18], 8
    %139 = sst [smem:[%s138]] 4
    %141 = dma.general %s2, 16384, %s120, [#allocation4], [#allocation17], [#allocation18], %s118, 0
    %s142 = scalar_lea.sflag [#allocation4], 1
    %s144 = sshll.u32 1, 14
    %s145 = sxor.u32 4294967295, %s144
    %s147 = sadd.s32 2, %s111
    %s149 = sshll.u32 7, 26
    %s150 = sxor.u32 4294967295, %s149
    %s151 = sand.u32 0, %s150
    %s152 = sshll.u32 %s147, 26
    %s153 = sor.u32 %s151, %s152
    %s154 = sshll.u32 [#allocation3], 4
    %s155 = int_to_ptr.vmem [resolvable:$true] %s154
    %158 = sst [smem:[#allocation20]] 512
    %s159 = scalar_lea.smem [#allocation20], 1
    %160 = sst [smem:[%s159]] 512
    %s161 = scalar_lea.smem [#allocation20], 2
    %162 = sst [smem:[%s161]] 4
    %s163 = scalar_lea.smem [#allocation20], 3
    %164 = sst [smem:[%s163]] 64
    %s165 = scalar_lea.smem [#allocation20], 4
    %166 = sst [smem:[%s165]] 128
    %s167 = scalar_lea.smem [#allocation20], 5
    %168 = sst [smem:[%s167]] 2
    %s169 = scalar_lea.smem [#allocation20], 6
    %170 = sst [smem:[%s169]] 256
    %s171 = scalar_lea.smem [#allocation20], 7
    %172 = sst [smem:[%s171]] 64
    %s173 = scalar_lea.smem [#allocation20], 8
    %174 = sst [smem:[%s173]] 4
    %176 = dma.general %s3, 32768, %s155, %s142, [#allocation19], [#allocation20], %s153, 0
    %v177 = vld [vmem:[#allocation8] sm:$0xff]
    %v178 = vld [vmem:[#allocation8 + $0x8] sm:$0xff]
    %v179 = vld [vmem:[#allocation11 + $0x80] sm:$0xf]
    %v180 = vld [vmem:[#allocation11 + $0x84] sm:$0xf]
    %v181 = vld [vmem:[#allocation11 + $0x88] sm:$0xf]
    %v182 = vld [vmem:[#allocation11 + $0x8c] sm:$0xf]
    %v183 = vld [vmem:[#allocation11 + $0x90] sm:$0xf]
    %v184 = vld [vmem:[#allocation11 + $0x94] sm:$0xf]
    %v185 = vld [vmem:[#allocation11 + $0x98] sm:$0xf]
    %v186 = vld [vmem:[#allocation11 + $0x9c] sm:$0xf]
    %v187 = vld [vmem:[#allocation11 + $0xa0] sm:$0xf]
    %v188 = vld [vmem:[#allocation11 + $0xa4] sm:$0xf]
    %v189 = vld [vmem:[#allocation11 + $0xa8] sm:$0xf]
    %v190 = vld [vmem:[#allocation11 + $0xac] sm:$0xf]
    %v191 = vld [vmem:[#allocation11 + $0xb0] sm:$0xf]
    %v192 = vld [vmem:[#allocation11 + $0xb4] sm:$0xf]
    %v193 = vld [vmem:[#allocation11 + $0xb8] sm:$0xf]
    %v194 = vld [vmem:[#allocation11 + $0xbc] sm:$0xf]
    %v195 = vld [vmem:[#allocation11 + $0xc0] sm:$0xf]
    %v196 = vld [vmem:[#allocation11 + $0xc4] sm:$0xf]
    %v197 = vld [vmem:[#allocation11 + $0xc8] sm:$0xf]
    %v198 = vld [vmem:[#allocation11 + $0xcc] sm:$0xf]
    %v199 = vld [vmem:[#allocation11 + $0xd0] sm:$0xf]
    %v200 = vld [vmem:[#allocation11 + $0xd4] sm:$0xf]
    %v201 = vld [vmem:[#allocation11 + $0xd8] sm:$0xf]
    %v202 = vld [vmem:[#allocation11 + $0xdc] sm:$0xf]
    %v203 = vld [vmem:[#allocation11 + $0xe0] sm:$0xf]
    %v204 = vld [vmem:[#allocation11 + $0xe4] sm:$0xf]
    %v205 = vld [vmem:[#allocation11 + $0xe8] sm:$0xf]
    %v206 = vld [vmem:[#allocation11 + $0xec] sm:$0xf]
    %v207 = vld [vmem:[#allocation11 + $0xf0] sm:$0xf]
    %v208 = vld [vmem:[#allocation11 + $0xf4] sm:$0xf]
    %v209 = vld [vmem:[#allocation11 + $0xf8] sm:$0xf]
    %v210 = vld [vmem:[#allocation11 + $0xfc] sm:$0xf]
    %v211 = vld [vmem:[%s9 + $0x1] sm:$0x1]
    %v212 = vpack.c.bf16 %v177, %v177
    %v213 = vpack.c.bf16 %v178, %v178
    %v214 = vlaneseq
    %v215 = vshrl.u32 %v214, 7
    %v216 = vsub.s32 0, %v215
    %v217 = vrot.slane %v211, %v216
    %v250 = vunpack.c.l.b16 %v179
    %v251 = vunpack.c.l.b16 %v180
    %v252 = vunpack.c.l.b16 %v181
    %v253 = vunpack.c.l.b16 %v182
    %v254 = vunpack.c.l.b16 %v183
    %v255 = vunpack.c.l.b16 %v184
    %v256 = vunpack.c.l.b16 %v185
    %v257 = vunpack.c.l.b16 %v186
    %v258 = vunpack.c.l.b16 %v187
    %v259 = vunpack.c.l.b16 %v188
    %v260 = vunpack.c.l.b16 %v189
    %v261 = vunpack.c.l.b16 %v190
    %v262 = vunpack.c.l.b16 %v191
    %v263 = vunpack.c.l.b16 %v192
    %v264 = vunpack.c.l.b16 %v193
    %v265 = vunpack.c.l.b16 %v194
    %v266 = vunpack.c.l.b16 %v195
    %v267 = vunpack.c.l.b16 %v196
    %v268 = vunpack.c.l.b16 %v197
    %v269 = vunpack.c.l.b16 %v198
    %v270 = vunpack.c.l.b16 %v199
    %v271 = vunpack.c.l.b16 %v200
    %v272 = vunpack.c.l.b16 %v201
    %v273 = vunpack.c.l.b16 %v202
    %v274 = vunpack.c.l.b16 %v203
    %v275 = vunpack.c.l.b16 %v204
    %v276 = vunpack.c.l.b16 %v205
    %v277 = vunpack.c.l.b16 %v206
    %v278 = vunpack.c.l.b16 %v207
    %v279 = vunpack.c.l.b16 %v208
    %v280 = vunpack.c.l.b16 %v209
    %v281 = vunpack.c.l.b16 %v210
    %v282 = vpack.c.b16 %v251, %v250
    %v283 = vpack.c.b16 %v253, %v252
    %v284 = vpack.c.b16 %v255, %v254
    %v285 = vpack.c.b16 %v257, %v256
    %v286 = vpack.c.b16 %v259, %v258
    %v287 = vpack.c.b16 %v261, %v260
    %v288 = vpack.c.b16 %v263, %v262
    %v289 = vpack.c.b16 %v265, %v264
    %v290 = vpack.c.b16 %v267, %v266
    %v291 = vpack.c.b16 %v269, %v268
    %v292 = vpack.c.b16 %v271, %v270
    %v293 = vpack.c.b16 %v273, %v272
    %v294 = vpack.c.b16 %v275, %v274
    %v295 = vpack.c.b16 %v277, %v276
    %v296 = vpack.c.b16 %v279, %v278
    %v297 = vpack.c.b16 %v281, %v280
    %314 = vmatprep.subr.bf16.mxu0 0
    %315 = vmatpush1.bf16.msra.mxu0 %v282
    %316 = vmatprep.subr.bf16.mxu0 0
    %317 = vmatpush1.bf16.msra.mxu0 %v283
    %318 = vmatprep.subr.bf16.mxu0 0
    %319 = vmatpush1.bf16.msra.mxu0 %v284
    %320 = vmatprep.subr.bf16.mxu0 0
    %321 = vmatpush1.bf16.msra.mxu0 %v285
    %322 = vmatprep.subr.bf16.mxu0 0
    %323 = vmatpush1.bf16.msra.mxu0 %v286
    %324 = vmatprep.subr.bf16.mxu0 0
    %325 = vmatpush1.bf16.msra.mxu0 %v287
    %326 = vmatprep.subr.bf16.mxu0 0
    %327 = vmatpush1.bf16.msra.mxu0 %v288
    %328 = vmatprep.subr.bf16.mxu0 0
    %329 = vmatpush1.bf16.msra.mxu0 %v289
    %330 = vmatprep.subr.bf16.mxu0 0
    %331 = vmatpush1.bf16.msra.mxu0 %v290
    %332 = vmatprep.subr.bf16.mxu0 0
    %333 = vmatpush1.bf16.msra.mxu0 %v291
    %334 = vmatprep.subr.bf16.mxu0 0
    %335 = vmatpush1.bf16.msra.mxu0 %v292
    %336 = vmatprep.subr.bf16.mxu0 0
    %337 = vmatpush1.bf16.msra.mxu0 %v293
    %338 = vmatprep.subr.bf16.mxu0 0
    %339 = vmatpush1.bf16.msra.mxu0 %v294
    %340 = vmatprep.subr.bf16.mxu0 0
    %341 = vmatpush1.bf16.msra.mxu0 %v295
    %342 = vmatprep.subr.bf16.mxu0 0
    %343 = vmatpush1.bf16.msra.mxu0 %v296
    %344 = vmatprep.subr.bf16.mxu0 0
    %345 = vmatpush1.bf16.msra.mxu0 %v297
    %346 = vmatprep.mubr.bf16.mxu0 %v213
    %347 = vmatmul.mubr.bf16.gmra.mrb[0].mxu0 %v212
    %v348 = vpop.f32.mrb[0].mxu0
    %v349 = vadd.f32 %v217, %v348
    %v350 = vpop.f32.mrb[0].mxu0
    %v351 = vpop.f32.mrb[0].mxu0
    %v352 = vpop.f32.mrb[0].mxu0
    %353 = vdwg.mxu0
    %v354 = vld [vmem:[%s9 + $0x2] sm:$0x1]
    %v355 = vld [vmem:[%s9 + $0x3] sm:$0x1]
    %v356 = vrot.slane %v349, 4
    %v357 = vadd.f32 %v349, %v356
    %v358 = vrot.slane %v357, 2
    %v359 = vadd.f32 %v357, %v358
    %v360 = vrot.slane %v359, 1
    %v361 = vadd.f32 %v359, %v360
    %v362 = vrcp.pop 8.0
    %v363 = vmul.f32 %v361, %v362
    %v364 = vmul.f32 %v349, %v349
    %v365 = vrot.slane %v364, 4
    %v366 = vadd.f32 %v364, %v365
    %v367 = vrot.slane %v366, 2
    %v368 = vadd.f32 %v366, %v367
    %v369 = vrot.slane %v368, 1
    %v370 = vadd.f32 %v368, %v369
    %v371 = vmul.f32 %v370, %v362
    %v372 = vmul.f32 %v363, %v363
    %v373 = vsub.f32 %v371, %v372
    %v374 = vadd.f32 %v373, 1e-05
    %v375 = vrsqrt.pop %v374
    %v376 = vmul.f32 %v354, %v375
    %v377 = vsub.f32 %v349, %v363
    %v378 = vlaneseq
    %v379 = vshrl.u32 %v378, 7
    %v380 = vsub.s32 0, %v379
    %v381 = vrot.slane %v376, %v380
    %v382 = vmul.f32 %v377, %v381
    %v383 = vlaneseq
    %v384 = vshrl.u32 %v383, 7
    %v385 = vsub.s32 0, %v384
    %v386 = vrot.slane %v355, %v385
    %v387 = vadd.f32 %v382, %v386
    %v388 = vmax.f32 %v387, 0.0
    %v389 = vld [vmem:[#allocation11 + $0x100] sm:$0xf]
    %v390 = vld [vmem:[#allocation11 + $0x104] sm:$0xf]
    %v391 = vld [vmem:[#allocation11 + $0x108] sm:$0xf]
    %v392 = vld [vmem:[#allocation11 + $0x10c] sm:$0xf]
    %v393 = vld [vmem:[#allocation11 + $0x110] sm:$0xf]
    %v394 = vld [vmem:[#allocation11 + $0x114] sm:$0xf]
    %v395 = vld [vmem:[#allocation11 + $0x118] sm:$0xf]
    %v396 = vld [vmem:[#allocation11 + $0x11c] sm:$0xf]
    %v397 = vld [vmem:[#allocation11 + $0x120] sm:$0xf]
    %v398 = vld [vmem:[#allocation11 + $0x124] sm:$0xf]
    %v399 = vld [vmem:[#allocation11 + $0x128] sm:$0xf]
    %v400 = vld [vmem:[#allocation11 + $0x12c] sm:$0xf]
    %v401 = vld [vmem:[#allocation11 + $0x130] sm:$0xf]
    %v402 = vld [vmem:[#allocation11 + $0x134] sm:$0xf]
    %v403 = vld [vmem:[#allocation11 + $0x138] sm:$0xf]
    %v404 = vld [vmem:[#allocation11 + $0x13c] sm:$0xf]
    %v405 = vld [vmem:[%s9 + $0x4] sm:$0x1]
    %v406 = vpack.c.bf16 %v388, %v388
    %v407 = vlaneseq
    %v408 = vshrl.u32 %v407, 7
    %v409 = vsub.s32 0, %v408
    %v410 = vrot.slane %v405, %v409
    %v427 = vunpack.c.l.b16 %v389
    %v428 = vunpack.c.l.b16 %v390
    %v429 = vunpack.c.l.b16 %v391
    %v430 = vunpack.c.l.b16 %v392
    %v431 = vunpack.c.l.b16 %v393
    %v432 = vunpack.c.l.b16 %v394
    %v433 = vunpack.c.l.b16 %v395
    %v434 = vunpack.c.l.b16 %v396
    %v435 = vunpack.c.l.b16 %v397
    %v436 = vunpack.c.l.b16 %v398
    %v437 = vunpack.c.l.b16 %v399
    %v438 = vunpack.c.l.b16 %v400
    %v439 = vunpack.c.l.b16 %v401
    %v440 = vunpack.c.l.b16 %v402
    %v441 = vunpack.c.l.b16 %v403
    %v442 = vunpack.c.l.b16 %v404
    %v443 = vpack.c.b16 %v428, %v427
    %v444 = vpack.c.b16 %v430, %v429
    %v445 = vpack.c.b16 %v432, %v431
    %v446 = vpack.c.b16 %v434, %v433
    %v447 = vpack.c.b16 %v436, %v435
    %v448 = vpack.c.b16 %v438, %v437
    %v449 = vpack.c.b16 %v440, %v439
    %v450 = vpack.c.b16 %v442, %v441
    %459 = vmatprep.subr.bf16.mxu0 0
    %460 = vmatpush1.bf16.msra.mxu0 %v443
    %461 = vmatprep.subr.bf16.mxu0 0
    %462 = vmatpush1.bf16.msra.mxu0 %v444
    %463 = vmatprep.subr.bf16.mxu0 0
    %464 = vmatpush1.bf16.msra.mxu0 %v445
    %465 = vmatprep.subr.bf16.mxu0 0
    %466 = vmatpush1.bf16.msra.mxu0 %v446
    %467 = vmatprep.subr.bf16.mxu0 0
    %468 = vmatpush1.bf16.msra.mxu0 %v447
    %469 = vmatprep.subr.bf16.mxu0 0
    %470 = vmatpush1.bf16.msra.mxu0 %v448
    %471 = vmatprep.subr.bf16.mxu0 0
    %472 = vmatpush1.bf16.msra.mxu0 %v449
    %473 = vmatprep.subr.bf16.mxu0 0
    %474 = vmatpush1.bf16.msra.mxu0 %v450
    %475 = vmatprep.subr.bf16.mxu0 0
    %476 = vmatpush1.bf16.msra.mxu0 0
    %477 = vmatprep.subr.bf16.mxu0 0
    %478 = vmatpush1.bf16.msra.mxu0 0
    %479 = vmatprep.subr.bf16.mxu0 0
    %480 = vmatpush1.bf16.msra.mxu0 0
    %481 = vmatprep.subr.bf16.mxu0 0
    %482 = vmatpush1.bf16.msra.mxu0 0
    %483 = vmatprep.subr.bf16.mxu0 0
    %484 = vmatpush1.bf16.msra.mxu0 0
    %485 = vmatprep.subr.bf16.mxu0 0
    %486 = vmatpush1.bf16.msra.mxu0 0
    %487 = vmatprep.subr.bf16.mxu0 0
    %488 = vmatpush1.bf16.msra.mxu0 0
    %489 = vmatprep.subr.bf16.mxu0 0
    %490 = vmatpush1.bf16.msra.mxu0 0
    %491 = vmatprep.mubr.bf16.mxu0 0
    %492 = vmatmul.mubr.bf16.gmra.mrb[0].mxu0 %v406
    %v493 = vpop.f32.mrb[0].mxu0
    %v494 = vadd.f32 %v410, %v493
    %v495 = vpop.f32.mrb[0].mxu0
    %v496 = vpop.f32.mrb[0].mxu0
    %v497 = vpop.f32.mrb[0].mxu0
    %498 = vdwg.mxu0
    %v499 = vld [vmem:[#allocation5] sm:$0xff]
    %v500 = vld [vmem:[#allocation5 + $0x8] sm:$0xff]
    %s501 = smul.u32 4, 32
    %s502 = smul.u32 %s501, 8
    %s503 = sshll.u32 %s502, 4
    %504 = dma.done [#allocation4], %s503
    %v505 = vld [vmem:[#allocation2] sm:$0xff]
    %v506 = vld [vmem:[#allocation2 + $0x8] sm:$0xff]
    %v507 = vld [vmem:[#allocation2 + $0x10] sm:$0xff]
    %v508 = vld [vmem:[#allocation2 + $0x18] sm:$0xff]
    %v509 = vld [vmem:[#allocation2 + $0x20] sm:$0xff]
    %v510 = vld [vmem:[#allocation2 + $0x28] sm:$0xff]
    %v511 = vld [vmem:[#allocation2 + $0x30] sm:$0xff]
    %v512 = vld [vmem:[#allocation2 + $0x38] sm:$0xff]
    %v513 = vld [vmem:[#allocation2 + $0x40] sm:$0xff]
    %v514 = vld [vmem:[#allocation2 + $0x48] sm:$0xff]
    %v515 = vld [vmem:[#allocation2 + $0x50] sm:$0xff]
    %v516 = vld [vmem:[#allocation2 + $0x58] sm:$0xff]
    %v517 = vld [vmem:[#allocation2 + $0x60] sm:$0xff]
    %v518 = vld [vmem:[#allocation2 + $0x68] sm:$0xff]
    %v519 = vld [vmem:[#allocation2 + $0x70] sm:$0xff]
    %v520 = vld [vmem:[#allocation2 + $0x78] sm:$0xff]
    %v521 = vld [vmem:[#allocation2 + $0x80] sm:$0xff]
    %v522 = vld [vmem:[#allocation2 + $0x88] sm:$0xff]
    %v523 = vld [vmem:[#allocation2 + $0x90] sm:$0xff]
    %v524 = vld [vmem:[#allocation2 + $0x98] sm:$0xff]
    %v525 = vld [vmem:[#allocation2 + $0xa0] sm:$0xff]
    %v526 = vld [vmem:[#allocation2 + $0xa8] sm:$0xff]
    %v527 = vld [vmem:[#allocation2 + $0xb0] sm:$0xff]
    %v528 = vld [vmem:[#allocation2 + $0xb8] sm:$0xff]
    %v529 = vld [vmem:[#allocation2 + $0xc0] sm:$0xff]
    %v530 = vld [vmem:[#allocation2 + $0xc8] sm:$0xff]
    %v531 = vld [vmem:[#allocation2 + $0xd0] sm:$0xff]
    %v532 = vld [vmem:[#allocation2 + $0xd8] sm:$0xff]
    %v533 = vld [vmem:[#allocation2 + $0xe0] sm:$0xff]
    %v534 = vld [vmem:[#allocation2 + $0xe8] sm:$0xff]
    %v535 = vld [vmem:[#allocation2 + $0xf0] sm:$0xff]
    %v536 = vld [vmem:[#allocation2 + $0xf8] sm:$0xff]
    %v537 = vld [vmem:[#allocation2 + $0x100] sm:$0xff]
    %v538 = vld [vmem:[#allocation2 + $0x108] sm:$0xff]
    %v539 = vld [vmem:[#allocation2 + $0x110] sm:$0xff]
    %v540 = vld [vmem:[#allocation2 + $0x118] sm:$0xff]
    %v541 = vld [vmem:[#allocation2 + $0x120] sm:$0xff]
    %v542 = vld [vmem:[#allocation2 + $0x128] sm:$0xff]
    %v543 = vld [vmem:[#allocation2 + $0x130] sm:$0xff]
    %v544 = vld [vmem:[#allocation2 + $0x138] sm:$0xff]
    %v545 = vld [vmem:[#allocation2 + $0x140] sm:$0xff]
    %v546 = vld [vmem:[#allocation2 + $0x148] sm:$0xff]
    %v547 = vld [vmem:[#allocation2 + $0x150] sm:$0xff]
    %v548 = vld [vmem:[#allocation2 + $0x158] sm:$0xff]
    %v549 = vld [vmem:[#allocation2 + $0x160] sm:$0xff]
    %v550 = vld [vmem:[#allocation2 + $0x168] sm:$0xff]
    %v551 = vld [vmem:[#allocation2 + $0x170] sm:$0xff]
    %v552 = vld [vmem:[#allocation2 + $0x178] sm:$0xff]
    %v553 = vld [vmem:[#allocation2 + $0x180] sm:$0xff]
    %v554 = vld [vmem:[#allocation2 + $0x188] sm:$0xff]
    %v555 = vld [vmem:[#allocation2 + $0x190] sm:$0xff]
    %v556 = vld [vmem:[#allocation2 + $0x198] sm:$0xff]
    %v557 = vld [vmem:[#allocation2 + $0x1a0] sm:$0xff]
    %v558 = vld [vmem:[#allocation2 + $0x1a8] sm:$0xff]
    %v559 = vld [vmem:[#allocation2 + $0x1b0] sm:$0xff]
    %v560 = vld [vmem:[#allocation2 + $0x1b8] sm:$0xff]
    %v561 = vld [vmem:[#allocation2 + $0x1c0] sm:$0xff]
    %v562 = vld [vmem:[#allocation2 + $0x1c8] sm:$0xff]
    %v563 = vld [vmem:[#allocation2 + $0x1d0] sm:$0xff]
    %v564 = vld [vmem:[#allocation2 + $0x1d8] sm:$0xff]
    %v565 = vld [vmem:[#allocation2 + $0x1e0] sm:$0xff]
    %v566 = vld [vmem:[#allocation2 + $0x1e8] sm:$0xff]
    %v567 = vld [vmem:[#allocation2 + $0x1f0] sm:$0xff]
    %v568 = vld [vmem:[#allocation2 + $0x1f8] sm:$0xff]
    %v569 = vld [vmem:[#allocation2 + $0x200] sm:$0xff]
    %v570 = vld [vmem:[#allocation2 + $0x208] sm:$0xff]
    %v571 = vld [vmem:[#allocation2 + $0x210] sm:$0xff]
    %v572 = vld [vmem:[#allocation2 + $0x218] sm:$0xff]
    %v573 = vld [vmem:[#allocation2 + $0x220] sm:$0xff]
    %v574 = vld [vmem:[#allocation2 + $0x228] sm:$0xff]
    %v575 = vld [vmem:[#allocation2 + $0x230] sm:$0xff]
    %v576 = vld [vmem:[#allocation2 + $0x238] sm:$0xff]
    %v577 = vld [vmem:[#allocation2 + $0x240] sm:$0xff]
    %v578 = vld [vmem:[#allocation2 + $0x248] sm:$0xff]
    %v579 = vld [vmem:[#allocation2 + $0x250] sm:$0xff]
    %v580 = vld [vmem:[#allocation2 + $0x258] sm:$0xff]
    %v581 = vld [vmem:[#allocation2 + $0x260] sm:$0xff]
    %v582 = vld [vmem:[#allocation2 + $0x268] sm:$0xff]
    %v583 = vld [vmem:[#allocation2 + $0x270] sm:$0xff]
    %v584 = vld [vmem:[#allocation2 + $0x278] sm:$0xff]
    %v585 = vld [vmem:[#allocation2 + $0x280] sm:$0xff]
    %v586 = vld [vmem:[#allocation2 + $0x288] sm:$0xff]
    %v587 = vld [vmem:[#allocation2 + $0x290] sm:$0xff]
    %v588 = vld [vmem:[#allocation2 + $0x298] sm:$0xff]
    %v589 = vld [vmem:[#allocation2 + $0x2a0] sm:$0xff]
    %v590 = vld [vmem:[#allocation2 + $0x2a8] sm:$0xff]
    %v591 = vld [vmem:[#allocation2 + $0x2b0] sm:$0xff]
    %v592 = vld [vmem:[#allocation2 + $0x2b8] sm:$0xff]
    %v593 = vld [vmem:[#allocation2 + $0x2c0] sm:$0xff]
    %v594 = vld [vmem:[#allocation2 + $0x2c8] sm:$0xff]
    %v595 = vld [vmem:[#allocation2 + $0x2d0] sm:$0xff]
    %v596 = vld [vmem:[#allocation2 + $0x2d8] sm:$0xff]
    %v597 = vld [vmem:[#allocation2 + $0x2e0] sm:$0xff]
    %v598 = vld [vmem:[#allocation2 + $0x2e8] sm:$0xff]
    %v599 = vld [vmem:[#allocation2 + $0x2f0] sm:$0xff]
    %v600 = vld [vmem:[#allocation2 + $0x2f8] sm:$0xff]
    %v601 = vld [vmem:[#allocation2 + $0x300] sm:$0xff]
    %v602 = vld [vmem:[#allocation2 + $0x308] sm:$0xff]
    %v603 = vld [vmem:[#allocation2 + $0x310] sm:$0xff]
    %v604 = vld [vmem:[#allocation2 + $0x318] sm:$0xff]
    %v605 = vld [vmem:[#allocation2 + $0x320] sm:$0xff]
    %v606 = vld [vmem:[#allocation2 + $0x328] sm:$0xff]
    %v607 = vld [vmem:[#allocation2 + $0x330] sm:$0xff]
    %v608 = vld [vmem:[#allocation2 + $0x338] sm:$0xff]
    %v609 = vld [vmem:[#allocation2 + $0x340] sm:$0xff]
    %v610 = vld [vmem:[#allocation2 + $0x348] sm:$0xff]
    %v611 = vld [vmem:[#allocation2 + $0x350] sm:$0xff]
    %v612 = vld [vmem:[#allocation2 + $0x358] sm:$0xff]
    %v613 = vld [vmem:[#allocation2 + $0x360] sm:$0xff]
    %v614 = vld [vmem:[#allocation2 + $0x368] sm:$0xff]
    %v615 = vld [vmem:[#allocation2 + $0x370] sm:$0xff]
    %v616 = vld [vmem:[#allocation2 + $0x378] sm:$0xff]
    %v617 = vld [vmem:[#allocation2 + $0x380] sm:$0xff]
    %v618 = vld [vmem:[#allocation2 + $0x388] sm:$0xff]
    %v619 = vld [vmem:[#allocation2 + $0x390] sm:$0xff]
    %v620 = vld [vmem:[#allocation2 + $0x398] sm:$0xff]
    %v621 = vld [vmem:[#allocation2 + $0x3a0] sm:$0xff]
    %v622 = vld [vmem:[#allocation2 + $0x3a8] sm:$0xff]
    %v623 = vld [vmem:[#allocation2 + $0x3b0] sm:$0xff]
    %v624 = vld [vmem:[#allocation2 + $0x3b8] sm:$0xff]
    %v625 = vld [vmem:[#allocation2 + $0x3c0] sm:$0xff]
    %v626 = vld [vmem:[#allocation2 + $0x3c8] sm:$0xff]
    %v627 = vld [vmem:[#allocation2 + $0x3d0] sm:$0xff]
    %v628 = vld [vmem:[#allocation2 + $0x3d8] sm:$0xff]
    %v629 = vld [vmem:[#allocation2 + $0x3e0] sm:$0xff]
    %v630 = vld [vmem:[#allocation2 + $0x3e8] sm:$0xff]
    %v631 = vld [vmem:[#allocation2 + $0x3f0] sm:$0xff]
    %v632 = vld [vmem:[#allocation2 + $0x3f8] sm:$0xff]
    %v633 = vld [vmem:[#allocation13] ss:$4 sm:$0xff]
    %v634 = vpack.c.bf16 %v499, %v499
    %v635 = vpack.c.bf16 %v500, %v500
    %v637 = vlaneseq
    %v638 = vshrl.u32 %v637, 7
    %v639 = vsub.s32 0, %v638
    %v640 = vrot.slane %v633, %v639
    %v641 = vlaneseq
    %v642 = vshrl.u32 %v641, 7
    %v643 = vsub.s32 1, %v642
    %v644 = vrot.slane %v633, %v643
    %v645 = vlaneseq
    %v646 = vshrl.u32 %v645, 7
    %v647 = vsub.s32 2, %v646
    %v648 = vrot.slane %v633, %v647
    %v649 = vlaneseq
    %v650 = vshrl.u32 %v649, 7
    %v651 = vsub.s32 3, %v650
    %v652 = vrot.slane %v633, %v651
    %v653 = vlaneseq
    %v654 = vshrl.u32 %v653, 7
    %v655 = vsub.s32 4, %v654
    %v656 = vrot.slane %v633, %v655
    %v657 = vlaneseq
    %v658 = vshrl.u32 %v657, 7
    %v659 = vsub.s32 5, %v658
    %v660 = vrot.slane %v633, %v659
    %v661 = vlaneseq
    %v662 = vshrl.u32 %v661, 7
    %v663 = vsub.s32 6, %v662
    %v664 = vrot.slane %v633, %v663
    %v665 = vlaneseq
    %v666 = vshrl.u32 %v665, 7
    %v667 = vsub.s32 7, %v666
    %v668 = vrot.slane %v633, %v667
    %677 = vmatprep.subr.bf16.mxu0 %v506
    %678 = vmatpush1.bf16.msra.mxu0 %v505
    %679 = vmatprep.subr.bf16.mxu0 %v514
    %680 = vmatpush1.bf16.msra.mxu0 %v513
    %681 = vmatprep.subr.bf16.mxu0 %v522
    %682 = vmatpush1.bf16.msra.mxu0 %v521
    %683 = vmatprep.subr.bf16.mxu0 %v530
    %684 = vmatpush1.bf16.msra.mxu0 %v529
    %685 = vmatprep.subr.bf16.mxu0 %v538
    %686 = vmatpush1.bf16.msra.mxu0 %v537
    %687 = vmatprep.subr.bf16.mxu0 %v546
    %688 = vmatpush1.bf16.msra.mxu0 %v545
    %689 = vmatprep.subr.bf16.mxu0 %v554
    %690 = vmatpush1.bf16.msra.mxu0 %v553
    %691 = vmatprep.subr.bf16.mxu0 %v562
    %692 = vmatpush1.bf16.msra.mxu0 %v561
    %693 = vmatprep.subr.bf16.mxu0 %v570
    %694 = vmatpush1.bf16.msra.mxu0 %v569
    %695 = vmatprep.subr.bf16.mxu0 %v578
    %696 = vmatpush1.bf16.msra.mxu0 %v577
    %697 = vmatprep.subr.bf16.mxu0 %v586
    %698 = vmatpush1.bf16.msra.mxu0 %v585
    %699 = vmatprep.subr.bf16.mxu0 %v594
    %700 = vmatpush1.bf16.msra.mxu0 %v593
    %701 = vmatprep.subr.bf16.mxu0 %v602
    %702 = vmatpush1.bf16.msra.mxu0 %v601
    %703 = vmatprep.subr.bf16.mxu0 %v610
    %704 = vmatpush1.bf16.msra.mxu0 %v609
    %705 = vmatprep.subr.bf16.mxu0 %v618
    %706 = vmatpush1.bf16.msra.mxu0 %v617
    %707 = vmatprep.subr.bf16.mxu0 %v626
    %708 = vmatpush1.bf16.msra.mxu0 %v625
    %709 = vmatprep.mubr.bf16.mxu0 %v635
    %710 = vmatmul.mubr.bf16.gmra.mrb[0].mxu0 %v634
    %v711 = vpop.f32.mrb[0].mxu0
    %v712 = vadd.f32 %v640, %v711
    %v713 = vpop.f32.mrb[0].mxu0
    %v714 = vadd.f32 %v644, %v713
    %v715 = vpop.f32.mrb[0].mxu0
    %v716 = vpop.f32.mrb[0].mxu0
    %717 = vdwg.mxu0
    %718 = vmatprep.subr.bf16.mxu0 %v508
    %719 = vmatpush1.bf16.msra.mxu0 %v507
    %720 = vmatprep.subr.bf16.mxu0 %v516
    %721 = vmatpush1.bf16.msra.mxu0 %v515
    %722 = vmatprep.subr.bf16.mxu0 %v524
    %723 = vmatpush1.bf16.msra.mxu0 %v523
    %724 = vmatprep.subr.bf16.mxu0 %v532
    %725 = vmatpush1.bf16.msra.mxu0 %v531
    %726 = vmatprep.subr.bf16.mxu0 %v540
    %727 = vmatpush1.bf16.msra.mxu0 %v539
    %728 = vmatprep.subr.bf16.mxu0 %v548
    %729 = vmatpush1.bf16.msra.mxu0 %v547
    %730 = vmatprep.subr.bf16.mxu0 %v556
    %731 = vmatpush1.bf16.msra.mxu0 %v555
    %732 = vmatprep.subr.bf16.mxu0 %v564
    %733 = vmatpush1.bf16.msra.mxu0 %v563
    %734 = vmatprep.subr.bf16.mxu0 %v572
    %735 = vmatpush1.bf16.msra.mxu0 %v571
    %736 = vmatprep.subr.bf16.mxu0 %v580
    %737 = vmatpush1.bf16.msra.mxu0 %v579
    %738 = vmatprep.subr.bf16.mxu0 %v588
    %739 = vmatpush1.bf16.msra.mxu0 %v587
    %740 = vmatprep.subr.bf16.mxu0 %v596
    %741 = vmatpush1.bf16.msra.mxu0 %v595
    %742 = vmatprep.subr.bf16.mxu0 %v604
    %743 = vmatpush1.bf16.msra.mxu0 %v603
    %744 = vmatprep.subr.bf16.mxu0 %v612
    %745 = vmatpush1.bf16.msra.mxu0 %v611
    %746 = vmatprep.subr.bf16.mxu0 %v620
    %747 = vmatpush1.bf16.msra.mxu0 %v619
    %748 = vmatprep.subr.bf16.mxu0 %v628
    %749 = vmatpush1.bf16.msra.mxu0 %v627
    %750 = vmatprep.mubr.bf16.mxu0 %v635
    %751 = vmatmul.mubr.bf16.gmra.mrb[0].mxu0 %v634
    %v752 = vpop.f32.mrb[0].mxu0
    %v753 = vadd.f32 %v648, %v752
    %v754 = vpop.f32.mrb[0].mxu0
    %v755 = vadd.f32 %v652, %v754
    %v756 = vpop.f32.mrb[0].mxu0
    %v757 = vpop.f32.mrb[0].mxu0
    %758 = vdwg.mxu0
    %759 = vmatprep.subr.bf16.mxu0 %v510
    %760 = vmatpush1.bf16.msra.mxu0 %v509
    %761 = vmatprep.subr.bf16.mxu0 %v518
    %762 = vmatpush1.bf16.msra.mxu0 %v517
    %763 = vmatprep.subr.bf16.mxu0 %v526
    %764 = vmatpush1.bf16.msra.mxu0 %v525
    %765 = vmatprep.subr.bf16.mxu0 %v534
    %766 = vmatpush1.bf16.msra.mxu0 %v533
    %767 = vmatprep.subr.bf16.mxu0 %v542
    %768 = vmatpush1.bf16.msra.mxu0 %v541
    %769 = vmatprep.subr.bf16.mxu0 %v550
    %770 = vmatpush1.bf16.msra.mxu0 %v549
    %771 = vmatprep.subr.bf16.mxu0 %v558
    %772 = vmatpush1.bf16.msra.mxu0 %v557
    %773 = vmatprep.subr.bf16.mxu0 %v566
    %774 = vmatpush1.bf16.msra.mxu0 %v565
    %775 = vmatprep.subr.bf16.mxu0 %v574
    %776 = vmatpush1.bf16.msra.mxu0 %v573
    %777 = vmatprep.subr.bf16.mxu0 %v582
    %778 = vmatpush1.bf16.msra.mxu0 %v581
    %779 = vmatprep.subr.bf16.mxu0 %v590
    %780 = vmatpush1.bf16.msra.mxu0 %v589
    %781 = vmatprep.subr.bf16.mxu0 %v598
    %782 = vmatpush1.bf16.msra.mxu0 %v597
    %783 = vmatprep.subr.bf16.mxu0 %v606
    %784 = vmatpush1.bf16.msra.mxu0 %v605
    %785 = vmatprep.subr.bf16.mxu0 %v614
    %786 = vmatpush1.bf16.msra.mxu0 %v613
    %787 = vmatprep.subr.bf16.mxu0 %v622
    %788 = vmatpush1.bf16.msra.mxu0 %v621
    %789 = vmatprep.subr.bf16.mxu0 %v630
    %790 = vmatpush1.bf16.msra.mxu0 %v629
    %791 = vmatprep.mubr.bf16.mxu0 %v635
    %792 = vmatmul.mubr.bf16.gmra.mrb[0].mxu0 %v634
    %v793 = vpop.f32.mrb[0].mxu0
    %v794 = vadd.f32 %v656, %v793
    %v795 = vpop.f32.mrb[0].mxu0
    %v796 = vadd.f32 %v660, %v795
    %v797 = vpop.f32.mrb[0].mxu0
    %v798 = vpop.f32.mrb[0].mxu0
    %799 = vdwg.mxu0
    %800 = vmatprep.subr.bf16.mxu0 %v512
    %801 = vmatpush1.bf16.msra.mxu0 %v511
    %802 = vmatprep.subr.bf16.mxu0 %v520
    %803 = vmatpush1.bf16.msra.mxu0 %v519
    %804 = vmatprep.subr.bf16.mxu0 %v528
    %805 = vmatpush1.bf16.msra.mxu0 %v527
    %806 = vmatprep.subr.bf16.mxu0 %v536
    %807 = vmatpush1.bf16.msra.mxu0 %v535
    %808 = vmatprep.subr.bf16.mxu0 %v544
    %809 = vmatpush1.bf16.msra.mxu0 %v543
    %810 = vmatprep.subr.bf16.mxu0 %v552
    %811 = vmatpush1.bf16.msra.mxu0 %v551
    %812 = vmatprep.subr.bf16.mxu0 %v560
    %813 = vmatpush1.bf16.msra.mxu0 %v559
    %814 = vmatprep.subr.bf16.mxu0 %v568
    %815 = vmatpush1.bf16.msra.mxu0 %v567
    %816 = vmatprep.subr.bf16.mxu0 %v576
    %817 = vmatpush1.bf16.msra.mxu0 %v575
    %818 = vmatprep.subr.bf16.mxu0 %v584
    %819 = vmatpush1.bf16.msra.mxu0 %v583
    %820 = vmatprep.subr.bf16.mxu0 %v592
    %821 = vmatpush1.bf16.msra.mxu0 %v591
    %822 = vmatprep.subr.bf16.mxu0 %v600
    %823 = vmatpush1.bf16.msra.mxu0 %v599
    %824 = vmatprep.subr.bf16.mxu0 %v608
    %825 = vmatpush1.bf16.msra.mxu0 %v607
    %826 = vmatprep.subr.bf16.mxu0 %v616
    %827 = vmatpush1.bf16.msra.mxu0 %v615
    %828 = vmatprep.subr.bf16.mxu0 %v624
    %829 = vmatpush1.bf16.msra.mxu0 %v623
    %830 = vmatprep.subr.bf16.mxu0 %v632
    %831 = vmatpush1.bf16.msra.mxu0 %v631
    %832 = vmatprep.mubr.bf16.mxu0 %v635
    %833 = vmatmul.mubr.bf16.gmra.mrb[0].mxu0 %v634
    %v834 = vpop.f32.mrb[0].mxu0
    %v835 = vadd.f32 %v664, %v834
    %v836 = vpop.f32.mrb[0].mxu0
    %v837 = vadd.f32 %v668, %v836
    %v838 = vpop.f32.mrb[0].mxu0
    %v839 = vpop.f32.mrb[0].mxu0
    %840 = vdwg.mxu0
    %s841 = scalar_lea.vmem [#allocation13], 1
    %v842 = vld [vmem:[%s841] ss:$4 sm:$0xff]
    %s843 = scalar_lea.vmem [#allocation13], 2
    %v844 = vld [vmem:[%s843] ss:$4 sm:$0xff]
    %v845 = vrot.slane %v712, 4
    %v846 = vadd.f32 %v712, %v845
    %v847 = vrot.slane %v846, 2
    %v848 = vadd.f32 %v846, %v847
    %v849 = vrot.slane %v848, 1
    %v850 = vadd.f32 %v848, %v849
    %v851 = vrot.slane %v714, 4
    %v852 = vadd.f32 %v714, %v851
    %v853 = vrot.slane %v852, 2
    %v854 = vadd.f32 %v852, %v853
    %v855 = vrot.slane %v854, 1
    %v856 = vadd.f32 %v854, %v855
    %v857 = vrot.slane %v753, 4
    %v858 = vadd.f32 %v753, %v857
    %v859 = vrot.slane %v858, 2
    %v860 = vadd.f32 %v858, %v859
    %v861 = vrot.slane %v860, 1
    %v862 = vadd.f32 %v860, %v861
    %v863 = vrot.slane %v755, 4
    %v864 = vadd.f32 %v755, %v863
    %v865 = vrot.slane %v864, 2
    %v866 = vadd.f32 %v864, %v865
    %v867 = vrot.slane %v866, 1
    %v868 = vadd.f32 %v866, %v867
    %v869 = vrot.slane %v794, 4
    %v870 = vadd.f32 %v794, %v869
    %v871 = vrot.slane %v870, 2
    %v872 = vadd.f32 %v870, %v871
    %v873 = vrot.slane %v872, 1
    %v874 = vadd.f32 %v872, %v873
    %v875 = vrot.slane %v796, 4
    %v876 = vadd.f32 %v796, %v875
    %v877 = vrot.slane %v876, 2
    %v878 = vadd.f32 %v876, %v877
    %v879 = vrot.slane %v878, 1
    %v880 = vadd.f32 %v878, %v879
    %v881 = vrot.slane %v835, 4
    %v882 = vadd.f32 %v835, %v881
    %v883 = vrot.slane %v882, 2
    %v884 = vadd.f32 %v882, %v883
    %v885 = vrot.slane %v884, 1
    %v886 = vadd.f32 %v884, %v885
    %v887 = vrot.slane %v837, 4
    %v888 = vadd.f32 %v837, %v887
    %v889 = vrot.slane %v888, 2
    %v890 = vadd.f32 %v888, %v889
    %v891 = vrot.slane %v890, 1
    %v892 = vadd.f32 %v890, %v891
    %v893 = vmul.f32 %v850, %v362
    %v894 = vmul.f32 %v856, %v362
    %v895 = vmul.f32 %v862, %v362
    %v896 = vmul.f32 %v868, %v362
    %v897 = vmul.f32 %v874, %v362
    %v898 = vmul.f32 %v880, %v362
    %v899 = vmul.f32 %v886, %v362
    %v900 = vmul.f32 %v892, %v362
    %v901 = vmul.f32 %v712, %v712
    %v902 = vmul.f32 %v714, %v714
    %v903 = vmul.f32 %v753, %v753
    %v904 = vmul.f32 %v755, %v755
    %v905 = vmul.f32 %v794, %v794
    %v906 = vmul.f32 %v796, %v796
    %v907 = vmul.f32 %v835, %v835
    %v908 = vmul.f32 %v837, %v837
    %v909 = vrot.slane %v901, 4
    %v910 = vadd.f32 %v901, %v909
    %v911 = vrot.slane %v910, 2
    %v912 = vadd.f32 %v910, %v911
    %v913 = vrot.slane %v912, 1
    %v914 = vadd.f32 %v912, %v913
    %v915 = vrot.slane %v902, 4
    %v916 = vadd.f32 %v902, %v915
    %v917 = vrot.slane %v916, 2
    %v918 = vadd.f32 %v916, %v917
    %v919 = vrot.slane %v918, 1
    %v920 = vadd.f32 %v918, %v919
    %v921 = vrot.slane %v903, 4
    %v922 = vadd.f32 %v903, %v921
    %v923 = vrot.slane %v922, 2
    %v924 = vadd.f32 %v922, %v923
    %v925 = vrot.slane %v924, 1
    %v926 = vadd.f32 %v924, %v925
    %v927 = vrot.slane %v904, 4
    %v928 = vadd.f32 %v904, %v927
    %v929 = vrot.slane %v928, 2
    %v930 = vadd.f32 %v928, %v929
    %v931 = vrot.slane %v930, 1
    %v932 = vadd.f32 %v930, %v931
    %v933 = vrot.slane %v905, 4
    %v934 = vadd.f32 %v905, %v933
    %v935 = vrot.slane %v934, 2
    %v936 = vadd.f32 %v934, %v935
    %v937 = vrot.slane %v936, 1
    %v938 = vadd.f32 %v936, %v937
    %v939 = vrot.slane %v906, 4
    %v940 = vadd.f32 %v906, %v939
    %v941 = vrot.slane %v940, 2
    %v942 = vadd.f32 %v940, %v941
    %v943 = vrot.slane %v942, 1
    %v944 = vadd.f32 %v942, %v943
    %v945 = vrot.slane %v907, 4
    %v946 = vadd.f32 %v907, %v945
    %v947 = vrot.slane %v946, 2
    %v948 = vadd.f32 %v946, %v947
    %v949 = vrot.slane %v948, 1
    %v950 = vadd.f32 %v948, %v949
    %v951 = vrot.slane %v908, 4
    %v952 = vadd.f32 %v908, %v951
    %v953 = vrot.slane %v952, 2
    %v954 = vadd.f32 %v952, %v953
    %v955 = vrot.slane %v954, 1
    %v956 = vadd.f32 %v954, %v955
    %v957 = vmul.f32 %v914, %v362
    %v958 = vmul.f32 %v920, %v362
    %v959 = vmul.f32 %v926, %v362
    %v960 = vmul.f32 %v932, %v362
    %v961 = vmul.f32 %v938, %v362
    %v962 = vmul.f32 %v944, %v362
    %v963 = vmul.f32 %v950, %v362
    %v964 = vmul.f32 %v956, %v362
    %v965 = vmul.f32 %v893, %v893
    %v966 = vmul.f32 %v894, %v894
    %v967 = vmul.f32 %v895, %v895
    %v968 = vmul.f32 %v896, %v896
    %v969 = vmul.f32 %v897, %v897
    %v970 = vmul.f32 %v898, %v898
    %v971 = vmul.f32 %v899, %v899
    %v972 = vmul.f32 %v900, %v900
    %v973 = vsub.f32 %v957, %v965
    %v974 = vsub.f32 %v958, %v966
    %v975 = vsub.f32 %v959, %v967
    %v976 = vsub.f32 %v960, %v968
    %v977 = vsub.f32 %v961, %v969
    %v978 = vsub.f32 %v962, %v970
    %v979 = vsub.f32 %v963, %v971
    %v980 = vsub.f32 %v964, %v972
    %v981 = vadd.f32 %v973, 1e-05
    %v982 = vadd.f32 %v974, 1e-05
    %v983 = vadd.f32 %v975, 1e-05
    %v984 = vadd.f32 %v976, 1e-05
    %v985 = vadd.f32 %v977, 1e-05
    %v986 = vadd.f32 %v978, 1e-05
    %v987 = vadd.f32 %v979, 1e-05
    %v988 = vadd.f32 %v980, 1e-05
    %v989 = vrsqrt.pop %v981
    %v990 = vrsqrt.pop %v982
    %v991 = vrsqrt.pop %v983
    %v992 = vrsqrt.pop %v984
    %v993 = vrsqrt.pop %v985
    %v994 = vrsqrt.pop %v986
    %v995 = vrsqrt.pop %v987
    %v996 = vrsqrt.pop %v988
    %v1005 = vcombine.low %v989, %v990
    %v1006 = vcombine.low %v991, %v992
    %v1007 = vcombine.low %v993, %v994
    %v1008 = vcombine.low %v995, %v996
    %v1010 = vunpack.c.l.s4 1966171168
    %v1011 = vunpack.c.0.s8 %v1010
    %v1012 = vlaneseq
    %v1013 = vshrl.u32 %v1012, 7
    %v1014 = vsub.s32 %v1011, %v1013
    %v1015 = vrot.slane %v1005, %v1014
    %v1017 = vunpack.c.l.s4 1966171168
    %v1018 = vunpack.c.0.s8 %v1017
    %v1019 = vlaneseq
    %v1020 = vshrl.u32 %v1019, 7
    %v1021 = vsub.s32 %v1018, %v1020
    %v1022 = vrot.slane %v1006, %v1021
    %v1024 = vunpack.c.l.s4 1966171168
    %v1025 = vunpack.c.0.s8 %v1024
    %v1026 = vlaneseq
    %v1027 = vshrl.u32 %v1026, 7
    %v1028 = vsub.s32 %v1025, %v1027
    %v1029 = vrot.slane %v1007, %v1028
    %v1031 = vunpack.c.l.s4 1966171168
    %v1032 = vunpack.c.0.s8 %v1031
    %v1033 = vlaneseq
    %v1034 = vshrl.u32 %v1033, 7
    %v1035 = vsub.s32 %v1032, %v1034
    %v1036 = vrot.slane %v1008, %v1035
    %v1037 = vcombine.low %v1015, %v1022
    %v1038 = vcombine.low %v1029, %v1036
    %v1040 = vunpack.c.l.s4 1966171168
    %v1041 = vunpack.c.0.s8 %v1040
    %v1042 = vlaneseq
    %v1043 = vshrl.u32 %v1042, 7
    %v1044 = vsub.s32 %v1041, %v1043
    %v1045 = vrot.slane %v1037, %v1044
    %v1047 = vunpack.c.l.s4 1966171168
    %v1048 = vunpack.c.0.s8 %v1047
    %v1049 = vlaneseq
    %v1050 = vshrl.u32 %v1049, 7
    %v1051 = vsub.s32 %v1048, %v1050
    %v1052 = vrot.slane %v1038, %v1051
    %v1053 = vcombine.low %v1045, %v1052
    %v1055 = vmul.f32 %v842, %v1053
    %v1056 = vsub.f32 %v712, %v893
    %v1057 = vsub.f32 %v714, %v894
    %v1058 = vsub.f32 %v753, %v895
    %v1059 = vsub.f32 %v755, %v896
    %v1060 = vsub.f32 %v794, %v897
    %v1061 = vsub.f32 %v796, %v898
    %v1062 = vsub.f32 %v835, %v899
    %v1063 = vsub.f32 %v837, %v900
    %v1065 = vlaneseq
    %v1066 = vshrl.u32 %v1065, 7
    %v1067 = vsub.s32 0, %v1066
    %v1068 = vrot.slane %v1055, %v1067
    %v1069 = vlaneseq
    %v1070 = vshrl.u32 %v1069, 7
    %v1071 = vsub.s32 1, %v1070
    %v1072 = vrot.slane %v1055, %v1071
    %v1073 = vlaneseq
    %v1074 = vshrl.u32 %v1073, 7
    %v1075 = vsub.s32 2, %v1074
    %v1076 = vrot.slane %v1055, %v1075
    %v1077 = vlaneseq
    %v1078 = vshrl.u32 %v1077, 7
    %v1079 = vsub.s32 3, %v1078
    %v1080 = vrot.slane %v1055, %v1079
    %v1081 = vlaneseq
    %v1082 = vshrl.u32 %v1081, 7
    %v1083 = vsub.s32 4, %v1082
    %v1084 = vrot.slane %v1055, %v1083
    %v1085 = vlaneseq
    %v1086 = vshrl.u32 %v1085, 7
    %v1087 = vsub.s32 5, %v1086
    %v1088 = vrot.slane %v1055, %v1087
    %v1089 = vlaneseq
    %v1090 = vshrl.u32 %v1089, 7
    %v1091 = vsub.s32 6, %v1090
    %v1092 = vrot.slane %v1055, %v1091
    %v1093 = vlaneseq
    %v1094 = vshrl.u32 %v1093, 7
    %v1095 = vsub.s32 7, %v1094
    %v1096 = vrot.slane %v1055, %v1095
    %v1105 = vmul.f32 %v1056, %v1068
    %v1106 = vmul.f32 %v1057, %v1072
    %v1107 = vmul.f32 %v1058, %v1076
    %v1108 = vmul.f32 %v1059, %v1080
    %v1109 = vmul.f32 %v1060, %v1084
    %v1110 = vmul.f32 %v1061, %v1088
    %v1111 = vmul.f32 %v1062, %v1092
    %v1112 = vmul.f32 %v1063, %v1096
    %v1114 = vlaneseq
    %v1115 = vshrl.u32 %v1114, 7
    %v1116 = vsub.s32 0, %v1115
    %v1117 = vrot.slane %v844, %v1116
    %v1118 = vlaneseq
    %v1119 = vshrl.u32 %v1118, 7
    %v1120 = vsub.s32 1, %v1119
    %v1121 = vrot.slane %v844, %v1120
    %v1122 = vlaneseq
    %v1123 = vshrl.u32 %v1122, 7
    %v1124 = vsub.s32 2, %v1123
    %v1125 = vrot.slane %v844, %v1124
    %v1126 = vlaneseq
    %v1127 = vshrl.u32 %v1126, 7
    %v1128 = vsub.s32 3, %v1127
    %v1129 = vrot.slane %v844, %v1128
    %v1130 = vlaneseq
    %v1131 = vshrl.u32 %v1130, 7
    %v1132 = vsub.s32 4, %v1131
    %v1133 = vrot.slane %v844, %v1132
    %v1134 = vlaneseq
    %v1135 = vshrl.u32 %v1134, 7
    %v1136 = vsub.s32 5, %v1135
    %v1137 = vrot.slane %v844, %v1136
    %v1138 = vlaneseq
    %v1139 = vshrl.u32 %v1138, 7
    %v1140 = vsub.s32 6, %v1139
    %v1141 = vrot.slane %v844, %v1140
    %v1142 = vlaneseq
    %v1143 = vshrl.u32 %v1142, 7
    %v1144 = vsub.s32 7, %v1143
    %v1145 = vrot.slane %v844, %v1144
    %v1154 = vadd.f32 %v1105, %v1117
    %v1155 = vadd.f32 %v1106, %v1121
    %v1156 = vadd.f32 %v1107, %v1125
    %v1157 = vadd.f32 %v1108, %v1129
    %v1158 = vadd.f32 %v1109, %v1133
    %v1159 = vadd.f32 %v1110, %v1137
    %v1160 = vadd.f32 %v1111, %v1141
    %v1161 = vadd.f32 %v1112, %v1145
    %v1162 = vmax.f32 %v1154, 0.0
    %v1163 = vmax.f32 %v1155, 0.0
    %v1164 = vmax.f32 %v1156, 0.0
    %v1165 = vmax.f32 %v1157, 0.0
    %v1166 = vmax.f32 %v1158, 0.0
    %v1167 = vmax.f32 %v1159, 0.0
    %v1168 = vmax.f32 %v1160, 0.0
    %v1169 = vmax.f32 %v1161, 0.0
    %s1170 = smul.u32 4, 128
    %s1171 = smul.u32 %s1170, 4
    %s1172 = sshll.u32 %s1171, 4
    %1173 = dma.done %s142, %s1172
    %v1174 = vld [vmem:[#allocation3] sm:$0xff]
    %v1175 = vld [vmem:[#allocation3 + $0x8] sm:$0xff]
    %v1176 = vld [vmem:[#allocation3 + $0x10] sm:$0xff]
    %v1177 = vld [vmem:[#allocation3 + $0x18] sm:$0xff]
    %v1178 = vld [vmem:[#allocation3 + $0x20] sm:$0xff]
    %v1179 = vld [vmem:[#allocation3 + $0x28] sm:$0xff]
    %v1180 = vld [vmem:[#allocation3 + $0x30] sm:$0xff]
    %v1181 = vld [vmem:[#allocation3 + $0x38] sm:$0xff]
    %v1182 = vld [vmem:[#allocation3 + $0x40] sm:$0xff]
    %v1183 = vld [vmem:[#allocation3 + $0x48] sm:$0xff]
    %v1184 = vld [vmem:[#allocation3 + $0x50] sm:$0xff]
    %v1185 = vld [vmem:[#allocation3 + $0x58] sm:$0xff]
    %v1186 = vld [vmem:[#allocation3 + $0x60] sm:$0xff]
    %v1187 = vld [vmem:[#allocation3 + $0x68] sm:$0xff]
    %v1188 = vld [vmem:[#allocation3 + $0x70] sm:$0xff]
    %v1189 = vld [vmem:[#allocation3 + $0x78] sm:$0xff]
    %v1190 = vld [vmem:[#allocation3 + $0x80] sm:$0xff]
    %v1191 = vld [vmem:[#allocation3 + $0x88] sm:$0xff]
    %v1192 = vld [vmem:[#allocation3 + $0x90] sm:$0xff]
    %v1193 = vld [vmem:[#allocation3 + $0x98] sm:$0xff]
    %v1194 = vld [vmem:[#allocation3 + $0xa0] sm:$0xff]
    %v1195 = vld [vmem:[#allocation3 + $0xa8] sm:$0xff]
    %v1196 = vld [vmem:[#allocation3 + $0xb0] sm:$0xff]
    %v1197 = vld [vmem:[#allocation3 + $0xb8] sm:$0xff]
    %v1198 = vld [vmem:[#allocation3 + $0xc0] sm:$0xff]
    %v1199 = vld [vmem:[#allocation3 + $0xc8] sm:$0xff]
    %v1200 = vld [vmem:[#allocation3 + $0xd0] sm:$0xff]
    %v1201 = vld [vmem:[#allocation3 + $0xd8] sm:$0xff]
    %v1202 = vld [vmem:[#allocation3 + $0xe0] sm:$0xff]
    %v1203 = vld [vmem:[#allocation3 + $0xe8] sm:$0xff]
    %v1204 = vld [vmem:[#allocation3 + $0xf0] sm:$0xff]
    %v1205 = vld [vmem:[#allocation3 + $0xf8] sm:$0xff]
    %v1206 = vld [vmem:[#allocation3 + $0x100] sm:$0xff]
    %v1207 = vld [vmem:[#allocation3 + $0x108] sm:$0xff]
    %v1208 = vld [vmem:[#allocation3 + $0x110] sm:$0xff]
    %v1209 = vld [vmem:[#allocation3 + $0x118] sm:$0xff]
    %v1210 = vld [vmem:[#allocation3 + $0x120] sm:$0xff]
    %v1211 = vld [vmem:[#allocation3 + $0x128] sm:$0xff]
    %v1212 = vld [vmem:[#allocation3 + $0x130] sm:$0xff]
    %v1213 = vld [vmem:[#allocation3 + $0x138] sm:$0xff]
    %v1214 = vld [vmem:[#allocation3 + $0x140] sm:$0xff]
    %v1215 = vld [vmem:[#allocation3 + $0x148] sm:$0xff]
    %v1216 = vld [vmem:[#allocation3 + $0x150] sm:$0xff]
    %v1217 = vld [vmem:[#allocation3 + $0x158] sm:$0xff]
    %v1218 = vld [vmem:[#allocation3 + $0x160] sm:$0xff]
    %v1219 = vld [vmem:[#allocation3 + $0x168] sm:$0xff]
    %v1220 = vld [vmem:[#allocation3 + $0x170] sm:$0xff]
    %v1221 = vld [vmem:[#allocation3 + $0x178] sm:$0xff]
    %v1222 = vld [vmem:[#allocation3 + $0x180] sm:$0xff]
    %v1223 = vld [vmem:[#allocation3 + $0x188] sm:$0xff]
    %v1224 = vld [vmem:[#allocation3 + $0x190] sm:$0xff]
    %v1225 = vld [vmem:[#allocation3 + $0x198] sm:$0xff]
    %v1226 = vld [vmem:[#allocation3 + $0x1a0] sm:$0xff]
    %v1227 = vld [vmem:[#allocation3 + $0x1a8] sm:$0xff]
    %v1228 = vld [vmem:[#allocation3 + $0x1b0] sm:$0xff]
    %v1229 = vld [vmem:[#allocation3 + $0x1b8] sm:$0xff]
    %v1230 = vld [vmem:[#allocation3 + $0x1c0] sm:$0xff]
    %v1231 = vld [vmem:[#allocation3 + $0x1c8] sm:$0xff]
    %v1232 = vld [vmem:[#allocation3 + $0x1d0] sm:$0xff]
    %v1233 = vld [vmem:[#allocation3 + $0x1d8] sm:$0xff]
    %v1234 = vld [vmem:[#allocation3 + $0x1e0] sm:$0xff]
    %v1235 = vld [vmem:[#allocation3 + $0x1e8] sm:$0xff]
    %v1236 = vld [vmem:[#allocation3 + $0x1f0] sm:$0xff]
    %v1237 = vld [vmem:[#allocation3 + $0x1f8] sm:$0xff]
    %v1238 = vld [vmem:[#allocation3 + $0x200] sm:$0xff]
    %v1239 = vld [vmem:[#allocation3 + $0x208] sm:$0xff]
    %v1240 = vld [vmem:[#allocation3 + $0x210] sm:$0xff]
    %v1241 = vld [vmem:[#allocation3 + $0x218] sm:$0xff]
    %v1242 = vld [vmem:[#allocation3 + $0x220] sm:$0xff]
    %v1243 = vld [vmem:[#allocation3 + $0x228] sm:$0xff]
    %v1244 = vld [vmem:[#allocation3 + $0x230] sm:$0xff]
    %v1245 = vld [vmem:[#allocation3 + $0x238] sm:$0xff]
    %v1246 = vld [vmem:[#allocation3 + $0x240] sm:$0xff]
    %v1247 = vld [vmem:[#allocation3 + $0x248] sm:$0xff]
    %v1248 = vld [vmem:[#allocation3 + $0x250] sm:$0xff]
    %v1249 = vld [vmem:[#allocation3 + $0x258] sm:$0xff]
    %v1250 = vld [vmem:[#allocation3 + $0x260] sm:$0xff]
    %v1251 = vld [vmem:[#allocation3 + $0x268] sm:$0xff]
    %v1252 = vld [vmem:[#allocation3 + $0x270] sm:$0xff]
    %v1253 = vld [vmem:[#allocation3 + $0x278] sm:$0xff]
    %v1254 = vld [vmem:[#allocation3 + $0x280] sm:$0xff]
    %v1255 = vld [vmem:[#allocation3 + $0x288] sm:$0xff]
    %v1256 = vld [vmem:[#allocation3 + $0x290] sm:$0xff]
    %v1257 = vld [vmem:[#allocation3 + $0x298] sm:$0xff]
    %v1258 = vld [vmem:[#allocation3 + $0x2a0] sm:$0xff]
    %v1259 = vld [vmem:[#allocation3 + $0x2a8] sm:$0xff]
    %v1260 = vld [vmem:[#allocation3 + $0x2b0] sm:$0xff]
    %v1261 = vld [vmem:[#allocation3 + $0x2b8] sm:$0xff]
    %v1262 = vld [vmem:[#allocation3 + $0x2c0] sm:$0xff]
    %v1263 = vld [vmem:[#allocation3 + $0x2c8] sm:$0xff]
    %v1264 = vld [vmem:[#allocation3 + $0x2d0] sm:$0xff]
    %v1265 = vld [vmem:[#allocation3 + $0x2d8] sm:$0xff]
    %v1266 = vld [vmem:[#allocation3 + $0x2e0] sm:$0xff]
    %v1267 = vld [vmem:[#allocation3 + $0x2e8] sm:$0xff]
    %v1268 = vld [vmem:[#allocation3 + $0x2f0] sm:$0xff]
    %v1269 = vld [vmem:[#allocation3 + $0x2f8] sm:$0xff]
    %v1270 = vld [vmem:[#allocation3 + $0x300] sm:$0xff]
    %v1271 = vld [vmem:[#allocation3 + $0x308] sm:$0xff]
    %v1272 = vld [vmem:[#allocation3 + $0x310] sm:$0xff]
    %v1273 = vld [vmem:[#allocation3 + $0x318] sm:$0xff]
    %v1274 = vld [vmem:[#allocation3 + $0x320] sm:$0xff]
    %v1275 = vld [vmem:[#allocation3 + $0x328] sm:$0xff]
    %v1276 = vld [vmem:[#allocation3 + $0x330] sm:$0xff]
    %v1277 = vld [vmem:[#allocation3 + $0x338] sm:$0xff]
    %v1278 = vld [vmem:[#allocation3 + $0x340] sm:$0xff]
    %v1279 = vld [vmem:[#allocation3 + $0x348] sm:$0xff]
    %v1280 = vld [vmem:[#allocation3 + $0x350] sm:$0xff]
    %v1281 = vld [vmem:[#allocation3 + $0x358] sm:$0xff]
    %v1282 = vld [vmem:[#allocation3 + $0x360] sm:$0xff]
    %v1283 = vld [vmem:[#allocation3 + $0x368] sm:$0xff]
    %v1284 = vld [vmem:[#allocation3 + $0x370] sm:$0xff]
    %v1285 = vld [vmem:[#allocation3 + $0x378] sm:$0xff]
    %v1286 = vld [vmem:[#allocation3 + $0x380] sm:$0xff]
    %v1287 = vld [vmem:[#allocation3 + $0x388] sm:$0xff]
    %v1288 = vld [vmem:[#allocation3 + $0x390] sm:$0xff]
    %v1289 = vld [vmem:[#allocation3 + $0x398] sm:$0xff]
    %v1290 = vld [vmem:[#allocation3 + $0x3a0] sm:$0xff]
    %v1291 = vld [vmem:[#allocation3 + $0x3a8] sm:$0xff]
    %v1292 = vld [vmem:[#allocation3 + $0x3b0] sm:$0xff]
    %v1293 = vld [vmem:[#allocation3 + $0x3b8] sm:$0xff]
    %v1294 = vld [vmem:[#allocation3 + $0x3c0] sm:$0xff]
    %v1295 = vld [vmem:[#allocation3 + $0x3c8] sm:$0xff]
    %v1296 = vld [vmem:[#allocation3 + $0x3d0] sm:$0xff]
    %v1297 = vld [vmem:[#allocation3 + $0x3d8] sm:$0xff]
    %v1298 = vld [vmem:[#allocation3 + $0x3e0] sm:$0xff]
    %v1299 = vld [vmem:[#allocation3 + $0x3e8] sm:$0xff]
    %v1300 = vld [vmem:[#allocation3 + $0x3f0] sm:$0xff]
    %v1301 = vld [vmem:[#allocation3 + $0x3f8] sm:$0xff]
    %v1302 = vld [vmem:[#allocation3 + $0x400] sm:$0xff]
    %v1303 = vld [vmem:[#allocation3 + $0x408] sm:$0xff]
    %v1304 = vld [vmem:[#allocation3 + $0x410] sm:$0xff]
    %v1305 = vld [vmem:[#allocation3 + $0x418] sm:$0xff]
    %v1306 = vld [vmem:[#allocation3 + $0x420] sm:$0xff]
    %v1307 = vld [vmem:[#allocation3 + $0x428] sm:$0xff]
    %v1308 = vld [vmem:[#allocation3 + $0x430] sm:$0xff]
    %v1309 = vld [vmem:[#allocation3 + $0x438] sm:$0xff]
    %v1310 = vld [vmem:[#allocation3 + $0x440] sm:$0xff]
    %v1311 = vld [vmem:[#allocation3 + $0x448] sm:$0xff]
    %v1312 = vld [vmem:[#allocation3 + $0x450] sm:$0xff]
    %v1313 = vld [vmem:[#allocation3 + $0x458] sm:$0xff]
    %v1314 = vld [vmem:[#allocation3 + $0x460] sm:$0xff]
    %v1315 = vld [vmem:[#allocation3 + $0x468] sm:$0xff]
    %v1316 = vld [vmem:[#allocation3 + $0x470] sm:$0xff]
    %v1317 = vld [vmem:[#allocation3 + $0x478] sm:$0xff]
    %v1318 = vld [vmem:[#allocation3 + $0x480] sm:$0xff]
    %v1319 = vld [vmem:[#allocation3 + $0x488] sm:$0xff]
    %v1320 = vld [vmem:[#allocation3 + $0x490] sm:$0xff]
    %v1321 = vld [vmem:[#allocation3 + $0x498] sm:$0xff]
    %v1322 = vld [vmem:[#allocation3 + $0x4a0] sm:$0xff]
    %v1323 = vld [vmem:[#allocation3 + $0x4a8] sm:$0xff]
    %v1324 = vld [vmem:[#allocation3 + $0x4b0] sm:$0xff]
    %v1325 = vld [vmem:[#allocation3 + $0x4b8] sm:$0xff]
    %v1326 = vld [vmem:[#allocation3 + $0x4c0] sm:$0xff]
    %v1327 = vld [vmem:[#allocation3 + $0x4c8] sm:$0xff]
    %v1328 = vld [vmem:[#allocation3 + $0x4d0] sm:$0xff]
    %v1329 = vld [vmem:[#allocation3 + $0x4d8] sm:$0xff]
    %v1330 = vld [vmem:[#allocation3 + $0x4e0] sm:$0xff]
    %v1331 = vld [vmem:[#allocation3 + $0x4e8] sm:$0xff]
    %v1332 = vld [vmem:[#allocation3 + $0x4f0] sm:$0xff]
    %v1333 = vld [vmem:[#allocation3 + $0x4f8] sm:$0xff]
    %v1334 = vld [vmem:[#allocation3 + $0x500] sm:$0xff]
    %v1335 = vld [vmem:[#allocation3 + $0x508] sm:$0xff]
    %v1336 = vld [vmem:[#allocation3 + $0x510] sm:$0xff]
    %v1337 = vld [vmem:[#allocation3 + $0x518] sm:$0xff]
    %v1338 = vld [vmem:[#allocation3 + $0x520] sm:$0xff]
    %v1339 = vld [vmem:[#allocation3 + $0x528] sm:$0xff]
    %v1340 = vld [vmem:[#allocation3 + $0x530] sm:$0xff]
    %v1341 = vld [vmem:[#allocation3 + $0x538] sm:$0xff]
    %v1342 = vld [vmem:[#allocation3 + $0x540] sm:$0xff]
    %v1343 = vld [vmem:[#allocation3 + $0x548] sm:$0xff]
    %v1344 = vld [vmem:[#allocation3 + $0x550] sm:$0xff]
    %v1345 = vld [vmem:[#allocation3 + $0x558] sm:$0xff]
    %v1346 = vld [vmem:[#allocation3 + $0x560] sm:$0xff]
    %v1347 = vld [vmem:[#allocation3 + $0x568] sm:$0xff]
    %v1348 = vld [vmem:[#allocation3 + $0x570] sm:$0xff]
    %v1349 = vld [vmem:[#allocation3 + $0x578] sm:$0xff]
    %v1350 = vld [vmem:[#allocation3 + $0x580] sm:$0xff]
    %v1351 = vld [vmem:[#allocation3 + $0x588] sm:$0xff]
    %v1352 = vld [vmem:[#allocation3 + $0x590] sm:$0xff]
    %v1353 = vld [vmem:[#allocation3 + $0x598] sm:$0xff]
    %v1354 = vld [vmem:[#allocation3 + $0x5a0] sm:$0xff]
    %v1355 = vld [vmem:[#allocation3 + $0x5a8] sm:$0xff]
    %v1356 = vld [vmem:[#allocation3 + $0x5b0] sm:$0xff]
    %v1357 = vld [vmem:[#allocation3 + $0x5b8] sm:$0xff]
    %v1358 = vld [vmem:[#allocation3 + $0x5c0] sm:$0xff]
    %v1359 = vld [vmem:[#allocation3 + $0x5c8] sm:$0xff]
    %v1360 = vld [vmem:[#allocation3 + $0x5d0] sm:$0xff]
    %v1361 = vld [vmem:[#allocation3 + $0x5d8] sm:$0xff]
    %v1362 = vld [vmem:[#allocation3 + $0x5e0] sm:$0xff]
    %v1363 = vld [vmem:[#allocation3 + $0x5e8] sm:$0xff]
    %v1364 = vld [vmem:[#allocation3 + $0x5f0] sm:$0xff]
    %v1365 = vld [vmem:[#allocation3 + $0x5f8] sm:$0xff]
    %v1366 = vld [vmem:[#allocation3 + $0x600] sm:$0xff]
    %v1367 = vld [vmem:[#allocation3 + $0x608] sm:$0xff]
    %v1368 = vld [vmem:[#allocation3 + $0x610] sm:$0xff]
    %v1369 = vld [vmem:[#allocation3 + $0x618] sm:$0xff]
    %v1370 = vld [vmem:[#allocation3 + $0x620] sm:$0xff]
    %v1371 = vld [vmem:[#allocation3 + $0x628] sm:$0xff]
    %v1372 = vld [vmem:[#allocation3 + $0x630] sm:$0xff]
    %v1373 = vld [vmem:[#allocation3 + $0x638] sm:$0xff]
    %v1374 = vld [vmem:[#allocation3 + $0x640] sm:$0xff]
    %v1375 = vld [vmem:[#allocation3 + $0x648] sm:$0xff]
    %v1376 = vld [vmem:[#allocation3 + $0x650] sm:$0xff]
    %v1377 = vld [vmem:[#allocation3 + $0x658] sm:$0xff]
    %v1378 = vld [vmem:[#allocation3 + $0x660] sm:$0xff]
    %v1379 = vld [vmem:[#allocation3 + $0x668] sm:$0xff]
    %v1380 = vld [vmem:[#allocation3 + $0x670] sm:$0xff]
    %v1381 = vld [vmem:[#allocation3 + $0x678] sm:$0xff]
    %v1382 = vld [vmem:[#allocation3 + $0x680] sm:$0xff]
    %v1383 = vld [vmem:[#allocation3 + $0x688] sm:$0xff]
    %v1384 = vld [vmem:[#allocation3 + $0x690] sm:$0xff]
    %v1385 = vld [vmem:[#allocation3 + $0x698] sm:$0xff]
    %v1386 = vld [vmem:[#allocation3 + $0x6a0] sm:$0xff]
    %v1387 = vld [vmem:[#allocation3 + $0x6a8] sm:$0xff]
    %v1388 = vld [vmem:[#allocation3 + $0x6b0] sm:$0xff]
    %v1389 = vld [vmem:[#allocation3 + $0x6b8] sm:$0xff]
    %v1390 = vld [vmem:[#allocation3 + $0x6c0] sm:$0xff]
    %v1391 = vld [vmem:[#allocation3 + $0x6c8] sm:$0xff]
    %v1392 = vld [vmem:[#allocation3 + $0x6d0] sm:$0xff]
    %v1393 = vld [vmem:[#allocation3 + $0x6d8] sm:$0xff]
    %v1394 = vld [vmem:[#allocation3 + $0x6e0] sm:$0xff]
    %v1395 = vld [vmem:[#allocation3 + $0x6e8] sm:$0xff]
    %v1396 = vld [vmem:[#allocation3 + $0x6f0] sm:$0xff]
    %v1397 = vld [vmem:[#allocation3 + $0x6f8] sm:$0xff]
    %v1398 = vld [vmem:[#allocation3 + $0x700] sm:$0xff]
    %v1399 = vld [vmem:[#allocation3 + $0x708] sm:$0xff]
    %v1400 = vld [vmem:[#allocation3 + $0x710] sm:$0xff]
    %v1401 = vld [vmem:[#allocation3 + $0x718] sm:$0xff]
    %v1402 = vld [vmem:[#allocation3 + $0x720] sm:$0xff]
    %v1403 = vld [vmem:[#allocation3 + $0x728] sm:$0xff]
    %v1404 = vld [vmem:[#allocation3 + $0x730] sm:$0xff]
    %v1405 = vld [vmem:[#allocation3 + $0x738] sm:$0xff]
    %v1406 = vld [vmem:[#allocation3 + $0x740] sm:$0xff]
    %v1407 = vld [vmem:[#allocation3 + $0x748] sm:$0xff]
    %v1408 = vld [vmem:[#allocation3 + $0x750] sm:$0xff]
    %v1409 = vld [vmem:[#allocation3 + $0x758] sm:$0xff]
    %v1410 = vld [vmem:[#allocation3 + $0x760] sm:$0xff]
    %v1411 = vld [vmem:[#allocation3 + $0x768] sm:$0xff]
    %v1412 = vld [vmem:[#allocation3 + $0x770] sm:$0xff]
    %v1413 = vld [vmem:[#allocation3 + $0x778] sm:$0xff]
    %v1414 = vld [vmem:[#allocation3 + $0x780] sm:$0xff]
    %v1415 = vld [vmem:[#allocation3 + $0x788] sm:$0xff]
    %v1416 = vld [vmem:[#allocation3 + $0x790] sm:$0xff]
    %v1417 = vld [vmem:[#allocation3 + $0x798] sm:$0xff]
    %v1418 = vld [vmem:[#allocation3 + $0x7a0] sm:$0xff]
    %v1419 = vld [vmem:[#allocation3 + $0x7a8] sm:$0xff]
    %v1420 = vld [vmem:[#allocation3 + $0x7b0] sm:$0xff]
    %v1421 = vld [vmem:[#allocation3 + $0x7b8] sm:$0xff]
    %v1422 = vld [vmem:[#allocation3 + $0x7c0] sm:$0xff]
    %v1423 = vld [vmem:[#allocation3 + $0x7c8] sm:$0xff]
    %v1424 = vld [vmem:[#allocation3 + $0x7d0] sm:$0xff]
    %v1425 = vld [vmem:[#allocation3 + $0x7d8] sm:$0xff]
    %v1426 = vld [vmem:[#allocation3 + $0x7e0] sm:$0xff]
    %v1427 = vld [vmem:[#allocation3 + $0x7e8] sm:$0xff]
    %v1428 = vld [vmem:[#allocation3 + $0x7f0] sm:$0xff]
    %v1429 = vld [vmem:[#allocation3 + $0x7f8] sm:$0xff]
    %v1430 = vld [vmem:[%s7] ss:$4 sm:$0xf]
    %v1431 = vpack.c.bf16 %v1162, %v1162
    %v1432 = vpack.c.bf16 %v1163, %v1163
    %v1433 = vpack.c.bf16 %v1164, %v1164
    %v1434 = vpack.c.bf16 %v1165, %v1165
    %v1435 = vpack.c.bf16 %v1166, %v1166
    %v1436 = vpack.c.bf16 %v1167, %v1167
    %v1437 = vpack.c.bf16 %v1168, %v1168
    %v1438 = vpack.c.bf16 %v1169, %v1169
    %v1440 = vlaneseq
    %v1441 = vshrl.u32 %v1440, 7
    %v1442 = vsub.s32 0, %v1441
    %v1443 = vrot.slane %v1430, %v1442
    %v1444 = vlaneseq
    %v1445 = vshrl.u32 %v1444, 7
    %v1446 = vsub.s32 1, %v1445
    %v1447 = vrot.slane %v1430, %v1446
    %v1448 = vlaneseq
    %v1449 = vshrl.u32 %v1448, 7
    %v1450 = vsub.s32 2, %v1449
    %v1451 = vrot.slane %v1430, %v1450
    %v1452 = vlaneseq
    %v1453 = vshrl.u32 %v1452, 7
    %v1454 = vsub.s32 3, %v1453
    %v1455 = vrot.slane %v1430, %v1454
    %1460 = vmatprep.subr.bf16.mxu0 %v1175
    %1461 = vmatpush1.bf16.msra.mxu0 %v1174
    %1462 = vmatprep.subr.bf16.mxu0 %v1179
    %1463 = vmatpush1.bf16.msra.mxu0 %v1178
    %1464 = vmatprep.subr.bf16.mxu0 %v1183
    %1465 = vmatpush1.bf16.msra.mxu0 %v1182
    %1466 = vmatprep.subr.bf16.mxu0 %v1187
    %1467 = vmatpush1.bf16.msra.mxu0 %v1186
    %1468 = vmatprep.subr.bf16.mxu0 %v1191
    %1469 = vmatpush1.bf16.msra.mxu0 %v1190
    %1470 = vmatprep.subr.bf16.mxu0 %v1195
    %1471 = vmatpush1.bf16.msra.mxu0 %v1194
    %1472 = vmatprep.subr.bf16.mxu0 %v1199
    %1473 = vmatpush1.bf16.msra.mxu0 %v1198
    %1474 = vmatprep.subr.bf16.mxu0 %v1203
    %1475 = vmatpush1.bf16.msra.mxu0 %v1202
    %1476 = vmatprep.subr.bf16.mxu0 %v1207
    %1477 = vmatpush1.bf16.msra.mxu0 %v1206
    %1478 = vmatprep.subr.bf16.mxu0 %v1211
    %1479 = vmatpush1.bf16.msra.mxu0 %v1210
    %1480 = vmatprep.subr.bf16.mxu0 %v1215
    %1481 = vmatpush1.bf16.msra.mxu0 %v1214
    %1482 = vmatprep.subr.bf16.mxu0 %v1219
    %1483 = vmatpush1.bf16.msra.mxu0 %v1218
    %1484 = vmatprep.subr.bf16.mxu0 %v1223
    %1485 = vmatpush1.bf16.msra.mxu0 %v1222
    %1486 = vmatprep.subr.bf16.mxu0 %v1227
    %1487 = vmatpush1.bf16.msra.mxu0 %v1226
    %1488 = vmatprep.subr.bf16.mxu0 %v1231
    %1489 = vmatpush1.bf16.msra.mxu0 %v1230
    %1490 = vmatprep.subr.bf16.mxu0 %v1235
    %1491 = vmatpush1.bf16.msra.mxu0 %v1234
    %1492 = vmatprep.mubr.bf16.mxu0 %v1432
    %1493 = vmatmul.mubr.bf16.gmra.mrb[0].mxu0 %v1431
    %v1494 = vpop.f32.mrb[0].mxu0
    %v1495 = vadd.f32 %v1443, %v1494
    %v1496 = vpop.f32.mrb[0].mxu0
    %v1497 = vadd.f32 %v1447, %v1496
    %v1498 = vpop.f32.mrb[0].mxu0
    %v1499 = vpop.f32.mrb[0].mxu0
    %1500 = vdwg.mxu0
    %1501 = vmatprep.subr.bf16.mxu0 %v1239
    %1502 = vmatpush1.bf16.msra.mxu0 %v1238
    %1503 = vmatprep.subr.bf16.mxu0 %v1243
    %1504 = vmatpush1.bf16.msra.mxu0 %v1242
    %1505 = vmatprep.subr.bf16.mxu0 %v1247
    %1506 = vmatpush1.bf16.msra.mxu0 %v1246
    %1507 = vmatprep.subr.bf16.mxu0 %v1251
    %1508 = vmatpush1.bf16.msra.mxu0 %v1250
    %1509 = vmatprep.subr.bf16.mxu0 %v1255
    %1510 = vmatpush1.bf16.msra.mxu0 %v1254
    %1511 = vmatprep.subr.bf16.mxu0 %v1259
    %1512 = vmatpush1.bf16.msra.mxu0 %v1258
    %1513 = vmatprep.subr.bf16.mxu0 %v1263
    %1514 = vmatpush1.bf16.msra.mxu0 %v1262
    %1515 = vmatprep.subr.bf16.mxu0 %v1267
    %1516 = vmatpush1.bf16.msra.mxu0 %v1266
    %1517 = vmatprep.subr.bf16.mxu0 %v1271
    %1518 = vmatpush1.bf16.msra.mxu0 %v1270
    %1519 = vmatprep.subr.bf16.mxu0 %v1275
    %1520 = vmatpush1.bf16.msra.mxu0 %v1274
    %1521 = vmatprep.subr.bf16.mxu0 %v1279
    %1522 = vmatpush1.bf16.msra.mxu0 %v1278
    %1523 = vmatprep.subr.bf16.mxu0 %v1283
    %1524 = vmatpush1.bf16.msra.mxu0 %v1282
    %1525 = vmatprep.subr.bf16.mxu0 %v1287
    %1526 = vmatpush1.bf16.msra.mxu0 %v1286
    %1527 = vmatprep.subr.bf16.mxu0 %v1291
    %1528 = vmatpush1.bf16.msra.mxu0 %v1290
    %1529 = vmatprep.subr.bf16.mxu0 %v1295
    %1530 = vmatpush1.bf16.msra.mxu0 %v1294
    %1531 = vmatprep.subr.bf16.mxu0 %v1299
    %1532 = vmatpush1.bf16.msra.mxu0 %v1298
    %1533 = vmatprep.mubr.bf16.mxu0 %v1434
    %1534 = vmatmul.mubr.bf16.gmra.mrb[0].mxu0 %v1433
    %v1535 = vpop.f32.mrb[0].mxu0
    %v1536 = vadd.f32 %v1495, %v1535
    %v1537 = vpop.f32.mrb[0].mxu0
    %v1538 = vadd.f32 %v1497, %v1537
    %v1539 = vpop.f32.mrb[0].mxu0
    %v1540 = vpop.f32.mrb[0].mxu0
    %1541 = vdwg.mxu0
    %1542 = vmatprep.subr.bf16.mxu0 %v1303
    %1543 = vmatpush1.bf16.msra.mxu0 %v1302
    %1544 = vmatprep.subr.bf16.mxu0 %v1307
    %1545 = vmatpush1.bf16.msra.mxu0 %v1306
    %1546 = vmatprep.subr.bf16.mxu0 %v1311
    %1547 = vmatpush1.bf16.msra.mxu0 %v1310
    %1548 = vmatprep.subr.bf16.mxu0 %v1315
    %1549 = vmatpush1.bf16.msra.mxu0 %v1314
    %1550 = vmatprep.subr.bf16.mxu0 %v1319
    %1551 = vmatpush1.bf16.msra.mxu0 %v1318
    %1552 = vmatprep.subr.bf16.mxu0 %v1323
    %1553 = vmatpush1.bf16.msra.mxu0 %v1322
    %1554 = vmatprep.subr.bf16.mxu0 %v1327
    %1555 = vmatpush1.bf16.msra.mxu0 %v1326
    %1556 = vmatprep.subr.bf16.mxu0 %v1331
    %1557 = vmatpush1.bf16.msra.mxu0 %v1330
    %1558 = vmatprep.subr.bf16.mxu0 %v1335
    %1559 = vmatpush1.bf16.msra.mxu0 %v1334
    %1560 = vmatprep.subr.bf16.mxu0 %v1339
    %1561 = vmatpush1.bf16.msra.mxu0 %v1338
    %1562 = vmatprep.subr.bf16.mxu0 %v1343
    %1563 = vmatpush1.bf16.msra.mxu0 %v1342
    %1564 = vmatprep.subr.bf16.mxu0 %v1347
    %1565 = vmatpush1.bf16.msra.mxu0 %v1346
    %1566 = vmatprep.subr.bf16.mxu0 %v1351
    %1567 = vmatpush1.bf16.msra.mxu0 %v1350
    %1568 = vmatprep.subr.bf16.mxu0 %v1355
    %1569 = vmatpush1.bf16.msra.mxu0 %v1354
    %1570 = vmatprep.subr.bf16.mxu0 %v1359
    %1571 = vmatpush1.bf16.msra.mxu0 %v1358
    %1572 = vmatprep.subr.bf16.mxu0 %v1363
    %1573 = vmatpush1.bf16.msra.mxu0 %v1362
    %1574 = vmatprep.mubr.bf16.mxu0 %v1436
    %1575 = vmatmul.mubr.bf16.gmra.mrb[0].mxu0 %v1435
    %v1576 = vpop.f32.mrb[0].mxu0
    %v1577 = vadd.f32 %v1536, %v1576
    %v1578 = vpop.f32.mrb[0].mxu0
    %v1579 = vadd.f32 %v1538, %v1578
    %v1580 = vpop.f32.mrb[0].mxu0
    %v1581 = vpop.f32.mrb[0].mxu0
    %1582 = vdwg.mxu0
    %1583 = vmatprep.subr.bf16.mxu0 %v1367
    %1584 = vmatpush1.bf16.msra.mxu0 %v1366
    %1585 = vmatprep.subr.bf16.mxu0 %v1371
    %1586 = vmatpush1.bf16.msra.mxu0 %v1370
    %1587 = vmatprep.subr.bf16.mxu0 %v1375
    %1588 = vmatpush1.bf16.msra.mxu0 %v1374
    %1589 = vmatprep.subr.bf16.mxu0 %v1379
    %1590 = vmatpush1.bf16.msra.mxu0 %v1378
    %1591 = vmatprep.subr.bf16.mxu0 %v1383
    %1592 = vmatpush1.bf16.msra.mxu0 %v1382
    %1593 = vmatprep.subr.bf16.mxu0 %v1387
    %1594 = vmatpush1.bf16.msra.mxu0 %v1386
    %1595 = vmatprep.subr.bf16.mxu0 %v1391
    %1596 = vmatpush1.bf16.msra.mxu0 %v1390
    %1597 = vmatprep.subr.bf16.mxu0 %v1395
    %1598 = vmatpush1.bf16.msra.mxu0 %v1394
    %1599 = vmatprep.subr.bf16.mxu0 %v1399
    %1600 = vmatpush1.bf16.msra.mxu0 %v1398
    %1601 = vmatprep.subr.bf16.mxu0 %v1403
    %1602 = vmatpush1.bf16.msra.mxu0 %v1402
    %1603 = vmatprep.subr.bf16.mxu0 %v1407
    %1604 = vmatpush1.bf16.msra.mxu0 %v1406
    %1605 = vmatprep.subr.bf16.mxu0 %v1411
    %1606 = vmatpush1.bf16.msra.mxu0 %v1410
    %1607 = vmatprep.subr.bf16.mxu0 %v1415
    %1608 = vmatpush1.bf16.msra.mxu0 %v1414
    %1609 = vmatprep.subr.bf16.mxu0 %v1419
    %1610 = vmatpush1.bf16.msra.mxu0 %v1418
    %1611 = vmatprep.subr.bf16.mxu0 %v1423
    %1612 = vmatpush1.bf16.msra.mxu0 %v1422
    %1613 = vmatprep.subr.bf16.mxu0 %v1427
    %1614 = vmatpush1.bf16.msra.mxu0 %v1426
    %1615 = vmatprep.mubr.bf16.mxu0 %v1438
    %1616 = vmatmul.mubr.bf16.gmra.mrb[0].mxu0 %v1437
    %v1617 = vpop.f32.mrb[0].mxu0
    %v1618 = vadd.f32 %v1577, %v1617
    %v1619 = vpop.f32.mrb[0].mxu0
    %v1620 = vadd.f32 %v1579, %v1619
    %v1621 = vpop.f32.mrb[0].mxu0
    %v1622 = vpop.f32.mrb[0].mxu0
    %1623 = vdwg.mxu0
    %1624 = vmatprep.subr.bf16.mxu0 %v1177
    %1625 = vmatpush1.bf16.msra.mxu0 %v1176
    %1626 = vmatprep.subr.bf16.mxu0 %v1181
    %1627 = vmatpush1.bf16.msra.mxu0 %v1180
    %1628 = vmatprep.subr.bf16.mxu0 %v1185
    %1629 = vmatpush1.bf16.msra.mxu0 %v1184
    %1630 = vmatprep.subr.bf16.mxu0 %v1189
    %1631 = vmatpush1.bf16.msra.mxu0 %v1188
    %1632 = vmatprep.subr.bf16.mxu0 %v1193
    %1633 = vmatpush1.bf16.msra.mxu0 %v1192
    %1634 = vmatprep.subr.bf16.mxu0 %v1197
    %1635 = vmatpush1.bf16.msra.mxu0 %v1196
    %1636 = vmatprep.subr.bf16.mxu0 %v1201
    %1637 = vmatpush1.bf16.msra.mxu0 %v1200
    %1638 = vmatprep.subr.bf16.mxu0 %v1205
    %1639 = vmatpush1.bf16.msra.mxu0 %v1204
    %1640 = vmatprep.subr.bf16.mxu0 %v1209
    %1641 = vmatpush1.bf16.msra.mxu0 %v1208
    %1642 = vmatprep.subr.bf16.mxu0 %v1213
    %1643 = vmatpush1.bf16.msra.mxu0 %v1212
    %1644 = vmatprep.subr.bf16.mxu0 %v1217
    %1645 = vmatpush1.bf16.msra.mxu0 %v1216
    %1646 = vmatprep.subr.bf16.mxu0 %v1221
    %1647 = vmatpush1.bf16.msra.mxu0 %v1220
    %1648 = vmatprep.subr.bf16.mxu0 %v1225
    %1649 = vmatpush1.bf16.msra.mxu0 %v1224
    %1650 = vmatprep.subr.bf16.mxu0 %v1229
    %1651 = vmatpush1.bf16.msra.mxu0 %v1228
    %1652 = vmatprep.subr.bf16.mxu0 %v1233
    %1653 = vmatpush1.bf16.msra.mxu0 %v1232
    %1654 = vmatprep.subr.bf16.mxu0 %v1237
    %1655 = vmatpush1.bf16.msra.mxu0 %v1236
    %1656 = vmatprep.mubr.bf16.mxu0 %v1432
    %1657 = vmatmul.mubr.bf16.gmra.mrb[0].mxu0 %v1431
    %v1658 = vpop.f32.mrb[0].mxu0
    %v1659 = vadd.f32 %v1451, %v1658
    %v1660 = vpop.f32.mrb[0].mxu0
    %v1661 = vadd.f32 %v1455, %v1660
    %v1662 = vpop.f32.mrb[0].mxu0
    %v1663 = vpop.f32.mrb[0].mxu0
    %1664 = vdwg.mxu0
    %1665 = vmatprep.subr.bf16.mxu0 %v1241
    %1666 = vmatpush1.bf16.msra.mxu0 %v1240
    %1667 = vmatprep.subr.bf16.mxu0 %v1245
    %1668 = vmatpush1.bf16.msra.mxu0 %v1244
    %1669 = vmatprep.subr.bf16.mxu0 %v1249
    %1670 = vmatpush1.bf16.msra.mxu0 %v1248
    %1671 = vmatprep.subr.bf16.mxu0 %v1253
    %1672 = vmatpush1.bf16.msra.mxu0 %v1252
    %1673 = vmatprep.subr.bf16.mxu0 %v1257
    %1674 = vmatpush1.bf16.msra.mxu0 %v1256
    %1675 = vmatprep.subr.bf16.mxu0 %v1261
    %1676 = vmatpush1.bf16.msra.mxu0 %v1260
    %1677 = vmatprep.subr.bf16.mxu0 %v1265
    %1678 = vmatpush1.bf16.msra.mxu0 %v1264
    %1679 = vmatprep.subr.bf16.mxu0 %v1269
    %1680 = vmatpush1.bf16.msra.mxu0 %v1268
    %1681 = vmatprep.subr.bf16.mxu0 %v1273
    %1682 = vmatpush1.bf16.msra.mxu0 %v1272
    %1683 = vmatprep.subr.bf16.mxu0 %v1277
    %1684 = vmatpush1.bf16.msra.mxu0 %v1276
    %1685 = vmatprep.subr.bf16.mxu0 %v1281
    %1686 = vmatpush1.bf16.msra.mxu0 %v1280
    %1687 = vmatprep.subr.bf16.mxu0 %v1285
    %1688 = vmatpush1.bf16.msra.mxu0 %v1284
    %1689 = vmatprep.subr.bf16.mxu0 %v1289
    %1690 = vmatpush1.bf16.msra.mxu0 %v1288
    %1691 = vmatprep.subr.bf16.mxu0 %v1293
    %1692 = vmatpush1.bf16.msra.mxu0 %v1292
    %1693 = vmatprep.subr.bf16.mxu0 %v1297
    %1694 = vmatpush1.bf16.msra.mxu0 %v1296
    %1695 = vmatprep.subr.bf16.mxu0 %v1301
    %1696 = vmatpush1.bf16.msra.mxu0 %v1300
    %1697 = vmatprep.mubr.bf16.mxu0 %v1434
    %1698 = vmatmul.mubr.bf16.gmra.mrb[0].mxu0 %v1433
    %v1699 = vpop.f32.mrb[0].mxu0
    %v1700 = vadd.f32 %v1659, %v1699
    %v1701 = vpop.f32.mrb[0].mxu0
    %v1702 = vadd.f32 %v1661, %v1701
    %v1703 = vpop.f32.mrb[0].mxu0
    %v1704 = vpop.f32.mrb[0].mxu0
    %1705 = vdwg.mxu0
    %1706 = vmatprep.subr.bf16.mxu0 %v1305
    %1707 = vmatpush1.bf16.msra.mxu0 %v1304
    %1708 = vmatprep.subr.bf16.mxu0 %v1309
    %1709 = vmatpush1.bf16.msra.mxu0 %v1308
    %1710 = vmatprep.subr.bf16.mxu0 %v1313
    %1711 = vmatpush1.bf16.msra.mxu0 %v1312
    %1712 = vmatprep.subr.bf16.mxu0 %v1317
    %1713 = vmatpush1.bf16.msra.mxu0 %v1316
    %1714 = vmatprep.subr.bf16.mxu0 %v1321
    %1715 = vmatpush1.bf16.msra.mxu0 %v1320
    %1716 = vmatprep.subr.bf16.mxu0 %v1325
    %1717 = vmatpush1.bf16.msra.mxu0 %v1324
    %1718 = vmatprep.subr.bf16.mxu0 %v1329
    %1719 = vmatpush1.bf16.msra.mxu0 %v1328
    %1720 = vmatprep.subr.bf16.mxu0 %v1333
    %1721 = vmatpush1.bf16.msra.mxu0 %v1332
    %1722 = vmatprep.subr.bf16.mxu0 %v1337
    %1723 = vmatpush1.bf16.msra.mxu0 %v1336
    %1724 = vmatprep.subr.bf16.mxu0 %v1341
    %1725 = vmatpush1.bf16.msra.mxu0 %v1340
    %1726 = vmatprep.subr.bf16.mxu0 %v1345
    %1727 = vmatpush1.bf16.msra.mxu0 %v1344
    %1728 = vmatprep.subr.bf16.mxu0 %v1349
    %1729 = vmatpush1.bf16.msra.mxu0 %v1348
    %1730 = vmatprep.subr.bf16.mxu0 %v1353
    %1731 = vmatpush1.bf16.msra.mxu0 %v1352
    %1732 = vmatprep.subr.bf16.mxu0 %v1357
    %1733 = vmatpush1.bf16.msra.mxu0 %v1356
    %1734 = vmatprep.subr.bf16.mxu0 %v1361
    %1735 = vmatpush1.bf16.msra.mxu0 %v1360
    %1736 = vmatprep.subr.bf16.mxu0 %v1365
    %1737 = vmatpush1.bf16.msra.mxu0 %v1364
    %1738 = vmatprep.mubr.bf16.mxu0 %v1436
    %1739 = vmatmul.mubr.bf16.gmra.mrb[0].mxu0 %v1435
    %v1740 = vpop.f32.mrb[0].mxu0
    %v1741 = vadd.f32 %v1700, %v1740
    %v1742 = vpop.f32.mrb[0].mxu0
    %v1743 = vadd.f32 %v1702, %v1742
    %v1744 = vpop.f32.mrb[0].mxu0
    %v1745 = vpop.f32.mrb[0].mxu0
    %1746 = vdwg.mxu0
    %1747 = vmatprep.subr.bf16.mxu0 %v1369
    %1748 = vmatpush1.bf16.msra.mxu0 %v1368
    %1749 = vmatprep.subr.bf16.mxu0 %v1373
    %1750 = vmatpush1.bf16.msra.mxu0 %v1372
    %1751 = vmatprep.subr.bf16.mxu0 %v1377
    %1752 = vmatpush1.bf16.msra.mxu0 %v1376
    %1753 = vmatprep.subr.bf16.mxu0 %v1381
    %1754 = vmatpush1.bf16.msra.mxu0 %v1380
    %1755 = vmatprep.subr.bf16.mxu0 %v1385
    %1756 = vmatpush1.bf16.msra.mxu0 %v1384
    %1757 = vmatprep.subr.bf16.mxu0 %v1389
    %1758 = vmatpush1.bf16.msra.mxu0 %v1388
    %1759 = vmatprep.subr.bf16.mxu0 %v1393
    %1760 = vmatpush1.bf16.msra.mxu0 %v1392
    %1761 = vmatprep.subr.bf16.mxu0 %v1397
    %1762 = vmatpush1.bf16.msra.mxu0 %v1396
    %1763 = vmatprep.subr.bf16.mxu0 %v1401
    %1764 = vmatpush1.bf16.msra.mxu0 %v1400
    %1765 = vmatprep.subr.bf16.mxu0 %v1405
    %1766 = vmatpush1.bf16.msra.mxu0 %v1404
    %1767 = vmatprep.subr.bf16.mxu0 %v1409
    %1768 = vmatpush1.bf16.msra.mxu0 %v1408
    %1769 = vmatprep.subr.bf16.mxu0 %v1413
    %1770 = vmatpush1.bf16.msra.mxu0 %v1412
    %1771 = vmatprep.subr.bf16.mxu0 %v1417
    %1772 = vmatpush1.bf16.msra.mxu0 %v1416
    %1773 = vmatprep.subr.bf16.mxu0 %v1421
    %1774 = vmatpush1.bf16.msra.mxu0 %v1420
    %1775 = vmatprep.subr.bf16.mxu0 %v1425
    %1776 = vmatpush1.bf16.msra.mxu0 %v1424
    %1777 = vmatprep.subr.bf16.mxu0 %v1429
    %1778 = vmatpush1.bf16.msra.mxu0 %v1428
    %1779 = vmatprep.mubr.bf16.mxu0 %v1438
    %1780 = vmatmul.mubr.bf16.gmra.mrb[0].mxu0 %v1437
    %v1781 = vpop.f32.mrb[0].mxu0
    %v1782 = vadd.f32 %v1741, %v1781
    %v1783 = vpop.f32.mrb[0].mxu0
    %v1784 = vadd.f32 %v1743, %v1783
    %v1785 = vpop.f32.mrb[0].mxu0
    %v1786 = vpop.f32.mrb[0].mxu0
    %1787 = vdwg.mxu0
    %s1788 = scalar_lea.vmem %s7, 1
    %v1789 = vld [vmem:[%s1788] ss:$4 sm:$0xf]
    %s1790 = scalar_lea.vmem %s7, 2
    %v1791 = vld [vmem:[%s1790] ss:$4 sm:$0xf]
    %v1792 = vrot.slane %v1618, 4
    %v1793 = vadd.f32 %v1618, %v1792
    %v1794 = vrot.slane %v1793, 2
    %v1795 = vadd.f32 %v1793, %v1794
    %v1796 = vrot.slane %v1795, 1
    %v1797 = vadd.f32 %v1795, %v1796
    %v1798 = vrot.slane %v1620, 4
    %v1799 = vadd.f32 %v1620, %v1798
    %v1800 = vrot.slane %v1799, 2
    %v1801 = vadd.f32 %v1799, %v1800
    %v1802 = vrot.slane %v1801, 1
    %v1803 = vadd.f32 %v1801, %v1802
    %v1804 = vrot.slane %v1782, 4
    %v1805 = vadd.f32 %v1782, %v1804
    %v1806 = vrot.slane %v1805, 2
    %v1807 = vadd.f32 %v1805, %v1806
    %v1808 = vrot.slane %v1807, 1
    %v1809 = vadd.f32 %v1807, %v1808
    %v1810 = vrot.slane %v1784, 4
    %v1811 = vadd.f32 %v1784, %v1810
    %v1812 = vrot.slane %v1811, 2
    %v1813 = vadd.f32 %v1811, %v1812
    %v1814 = vrot.slane %v1813, 1
    %v1815 = vadd.f32 %v1813, %v1814
    %v1816 = vmul.f32 %v1797, %v362
    %v1817 = vmul.f32 %v1803, %v362
    %v1818 = vmul.f32 %v1809, %v362
    %v1819 = vmul.f32 %v1815, %v362
    %v1820 = vmul.f32 %v1618, %v1618
    %v1821 = vmul.f32 %v1620, %v1620
    %v1822 = vmul.f32 %v1782, %v1782
    %v1823 = vmul.f32 %v1784, %v1784
    %v1824 = vrot.slane %v1820, 4
    %v1825 = vadd.f32 %v1820, %v1824
    %v1826 = vrot.slane %v1825, 2
    %v1827 = vadd.f32 %v1825, %v1826
    %v1828 = vrot.slane %v1827, 1
    %v1829 = vadd.f32 %v1827, %v1828
    %v1830 = vrot.slane %v1821, 4
    %v1831 = vadd.f32 %v1821, %v1830
    %v1832 = vrot.slane %v1831, 2
    %v1833 = vadd.f32 %v1831, %v1832
    %v1834 = vrot.slane %v1833, 1
    %v1835 = vadd.f32 %v1833, %v1834
    %v1836 = vrot.slane %v1822, 4
    %v1837 = vadd.f32 %v1822, %v1836
    %v1838 = vrot.slane %v1837, 2
    %v1839 = vadd.f32 %v1837, %v1838
    %v1840 = vrot.slane %v1839, 1
    %v1841 = vadd.f32 %v1839, %v1840
    %v1842 = vrot.slane %v1823, 4
    %v1843 = vadd.f32 %v1823, %v1842
    %v1844 = vrot.slane %v1843, 2
    %v1845 = vadd.f32 %v1843, %v1844
    %v1846 = vrot.slane %v1845, 1
    %v1847 = vadd.f32 %v1845, %v1846
    %v1848 = vmul.f32 %v1829, %v362
    %v1849 = vmul.f32 %v1835, %v362
    %v1850 = vmul.f32 %v1841, %v362
    %v1851 = vmul.f32 %v1847, %v362
    %v1852 = vmul.f32 %v1816, %v1816
    %v1853 = vmul.f32 %v1817, %v1817
    %v1854 = vmul.f32 %v1818, %v1818
    %v1855 = vmul.f32 %v1819, %v1819
    %v1856 = vsub.f32 %v1848, %v1852
    %v1857 = vsub.f32 %v1849, %v1853
    %v1858 = vsub.f32 %v1850, %v1854
    %v1859 = vsub.f32 %v1851, %v1855
    %v1860 = vadd.f32 %v1856, 1e-05
    %v1861 = vadd.f32 %v1857, 1e-05
    %v1862 = vadd.f32 %v1858, 1e-05
    %v1863 = vadd.f32 %v1859, 1e-05
    %v1864 = vrsqrt.pop %v1860
    %v1865 = vrsqrt.pop %v1861
    %v1866 = vrsqrt.pop %v1862
    %v1867 = vrsqrt.pop %v1863
    %v1872 = vcombine.low %v1864, %v1865
    %v1873 = vcombine.low %v1866, %v1867
    %v1875 = vunpack.c.l.s4 1966171168
    %v1876 = vunpack.c.0.s8 %v1875
    %v1877 = vlaneseq
    %v1878 = vshrl.u32 %v1877, 7
    %v1879 = vsub.s32 %v1876, %v1878
    %v1880 = vrot.slane %v1872, %v1879
    %v1882 = vunpack.c.l.s4 1966171168
    %v1883 = vunpack.c.0.s8 %v1882
    %v1884 = vlaneseq
    %v1885 = vshrl.u32 %v1884, 7
    %v1886 = vsub.s32 %v1883, %v1885
    %v1887 = vrot.slane %v1873, %v1886
    %v1888 = vcombine.low %v1880, %v1887
    %v1890 = vunpack.c.l.s4 1966171168
    %v1891 = vunpack.c.0.s8 %v1890
    %v1892 = vlaneseq
    %v1893 = vshrl.u32 %v1892, 7
    %v1894 = vsub.s32 %v1891, %v1893
    %v1895 = vrot.slane %v1888, %v1894
    %v1897 = vmul.f32 %v1789, %v1895
    %v1898 = vsub.f32 %v1618, %v1816
    %v1899 = vsub.f32 %v1620, %v1817
    %v1900 = vsub.f32 %v1782, %v1818
    %v1901 = vsub.f32 %v1784, %v1819
    %v1903 = vlaneseq
    %v1904 = vshrl.u32 %v1903, 7
    %v1905 = vsub.s32 0, %v1904
    %v1906 = vrot.slane %v1897, %v1905
    %v1907 = vlaneseq
    %v1908 = vshrl.u32 %v1907, 7
    %v1909 = vsub.s32 1, %v1908
    %v1910 = vrot.slane %v1897, %v1909
    %v1911 = vlaneseq
    %v1912 = vshrl.u32 %v1911, 7
    %v1913 = vsub.s32 2, %v1912
    %v1914 = vrot.slane %v1897, %v1913
    %v1915 = vlaneseq
    %v1916 = vshrl.u32 %v1915, 7
    %v1917 = vsub.s32 3, %v1916
    %v1918 = vrot.slane %v1897, %v1917
    %v1923 = vmul.f32 %v1898, %v1906
    %v1924 = vmul.f32 %v1899, %v1910
    %v1925 = vmul.f32 %v1900, %v1914
    %v1926 = vmul.f32 %v1901, %v1918
    %v1928 = vlaneseq
    %v1929 = vshrl.u32 %v1928, 7
    %v1930 = vsub.s32 0, %v1929
    %v1931 = vrot.slane %v1791, %v1930
    %v1932 = vlaneseq
    %v1933 = vshrl.u32 %v1932, 7
    %v1934 = vsub.s32 1, %v1933
    %v1935 = vrot.slane %v1791, %v1934
    %v1936 = vlaneseq
    %v1937 = vshrl.u32 %v1936, 7
    %v1938 = vsub.s32 2, %v1937
    %v1939 = vrot.slane %v1791, %v1938
    %v1940 = vlaneseq
    %v1941 = vshrl.u32 %v1940, 7
    %v1942 = vsub.s32 3, %v1941
    %v1943 = vrot.slane %v1791, %v1942
    %v1948 = vadd.f32 %v1923, %v1931
    %v1949 = vadd.f32 %v1924, %v1935
    %v1950 = vadd.f32 %v1925, %v1939
    %v1951 = vadd.f32 %v1926, %v1943
    %v1952 = vmax.f32 %v1948, 0.0
    %v1953 = vmax.f32 %v1949, 0.0
    %v1954 = vmax.f32 %v1950, 0.0
    %v1955 = vmax.f32 %v1951, 0.0
    %v1956 = vld [vmem:[#allocation10] sm:$0xff]
    %v1957 = vld [vmem:[#allocation10 + $0x8] sm:$0xff]
    %v1958 = vld [vmem:[#allocation10 + $0x10] sm:$0xff]
    %v1959 = vld [vmem:[#allocation10 + $0x18] sm:$0xff]
    %v1960 = vld [vmem:[#allocation10 + $0x20] sm:$0xff]
    %v1961 = vld [vmem:[#allocation10 + $0x28] sm:$0xff]
    %v1962 = vld [vmem:[#allocation10 + $0x30] sm:$0xff]
    %v1963 = vld [vmem:[#allocation10 + $0x38] sm:$0xff]
    %v1964 = vld [vmem:[#allocation10 + $0x40] sm:$0xff]
    %v1965 = vld [vmem:[#allocation10 + $0x48] sm:$0xff]
    %v1966 = vld [vmem:[#allocation10 + $0x50] sm:$0xff]
    %v1967 = vld [vmem:[#allocation10 + $0x58] sm:$0xff]
    %v1968 = vld [vmem:[#allocation10 + $0x60] sm:$0xff]
    %v1969 = vld [vmem:[#allocation10 + $0x68] sm:$0xff]
    %v1970 = vld [vmem:[#allocation10 + $0x70] sm:$0xff]
    %v1971 = vld [vmem:[#allocation10 + $0x78] sm:$0xff]
    %v1972 = vld [vmem:[#allocation10 + $0x80] sm:$0xff]
    %v1973 = vld [vmem:[#allocation10 + $0x88] sm:$0xff]
    %v1974 = vld [vmem:[#allocation10 + $0x90] sm:$0xff]
    %v1975 = vld [vmem:[#allocation10 + $0x98] sm:$0xff]
    %v1976 = vld [vmem:[#allocation10 + $0xa0] sm:$0xff]
    %v1977 = vld [vmem:[#allocation10 + $0xa8] sm:$0xff]
    %v1978 = vld [vmem:[#allocation10 + $0xb0] sm:$0xff]
    %v1979 = vld [vmem:[#allocation10 + $0xb8] sm:$0xff]
    %v1980 = vld [vmem:[#allocation10 + $0xc0] sm:$0xff]
    %v1981 = vld [vmem:[#allocation10 + $0xc8] sm:$0xff]
    %v1982 = vld [vmem:[#allocation10 + $0xd0] sm:$0xff]
    %v1983 = vld [vmem:[#allocation10 + $0xd8] sm:$0xff]
    %v1984 = vld [vmem:[#allocation10 + $0xe0] sm:$0xff]
    %v1985 = vld [vmem:[#allocation10 + $0xe8] sm:$0xff]
    %v1986 = vld [vmem:[#allocation10 + $0xf0] sm:$0xff]
    %v1987 = vld [vmem:[#allocation10 + $0xf8] sm:$0xff]
    %v1988 = vld [vmem:[#allocation10 + $0x100] sm:$0xff]
    %v1989 = vld [vmem:[#allocation10 + $0x108] sm:$0xff]
    %v1990 = vld [vmem:[#allocation10 + $0x110] sm:$0xff]
    %v1991 = vld [vmem:[#allocation10 + $0x118] sm:$0xff]
    %v1992 = vld [vmem:[#allocation10 + $0x120] sm:$0xff]
    %v1993 = vld [vmem:[#allocation10 + $0x128] sm:$0xff]
    %v1994 = vld [vmem:[#allocation10 + $0x130] sm:$0xff]
    %v1995 = vld [vmem:[#allocation10 + $0x138] sm:$0xff]
    %v1996 = vld [vmem:[#allocation10 + $0x140] sm:$0xff]
    %v1997 = vld [vmem:[#allocation10 + $0x148] sm:$0xff]
    %v1998 = vld [vmem:[#allocation10 + $0x150] sm:$0xff]
    %v1999 = vld [vmem:[#allocation10 + $0x158] sm:$0xff]
    %v2000 = vld [vmem:[#allocation10 + $0x160] sm:$0xff]
    %v2001 = vld [vmem:[#allocation10 + $0x168] sm:$0xff]
    %v2002 = vld [vmem:[#allocation10 + $0x170] sm:$0xff]
    %v2003 = vld [vmem:[#allocation10 + $0x178] sm:$0xff]
    %v2004 = vld [vmem:[#allocation10 + $0x180] sm:$0xff]
    %v2005 = vld [vmem:[#allocation10 + $0x188] sm:$0xff]
    %v2006 = vld [vmem:[#allocation10 + $0x190] sm:$0xff]
    %v2007 = vld [vmem:[#allocation10 + $0x198] sm:$0xff]
    %v2008 = vld [vmem:[#allocation10 + $0x1a0] sm:$0xff]
    %v2009 = vld [vmem:[#allocation10 + $0x1a8] sm:$0xff]
    %v2010 = vld [vmem:[#allocation10 + $0x1b0] sm:$0xff]
    %v2011 = vld [vmem:[#allocation10 + $0x1b8] sm:$0xff]
    %v2012 = vld [vmem:[#allocation10 + $0x1c0] sm:$0xff]
    %v2013 = vld [vmem:[#allocation10 + $0x1c8] sm:$0xff]
    %v2014 = vld [vmem:[#allocation10 + $0x1d0] sm:$0xff]
    %v2015 = vld [vmem:[#allocation10 + $0x1d8] sm:$0xff]
    %v2016 = vld [vmem:[#allocation10 + $0x1e0] sm:$0xff]
    %v2017 = vld [vmem:[#allocation10 + $0x1e8] sm:$0xff]
    %v2018 = vld [vmem:[#allocation10 + $0x1f0] sm:$0xff]
    %v2019 = vld [vmem:[#allocation10 + $0x1f8] sm:$0xff]
    %v2020 = vld [vmem:[#allocation14] ss:$4 sm:$0x3]
    %v2021 = vpack.c.bf16 %v1952, %v1952
    %v2022 = vpack.c.bf16 %v1953, %v1953
    %v2023 = vpack.c.bf16 %v1954, %v1954
    %v2024 = vpack.c.bf16 %v1955, %v1955
    %v2026 = vlaneseq
    %v2027 = vshrl.u32 %v2026, 7
    %v2028 = vsub.s32 0, %v2027
    %v2029 = vrot.slane %v2020, %v2028
    %v2030 = vlaneseq
    %v2031 = vshrl.u32 %v2030, 7
    %v2032 = vsub.s32 1, %v2031
    %v2033 = vrot.slane %v2020, %v2032
    %v2100 = vunpack.c.l.b16 %v1956
    %v2101 = vunpack.c.h.b16 %v1956
    %v2102 = vunpack.c.l.b16 %v1957
    %v2103 = vunpack.c.h.b16 %v1957
    %v2104 = vunpack.c.l.b16 %v1958
    %v2105 = vunpack.c.h.b16 %v1958
    %v2106 = vunpack.c.l.b16 %v1959
    %v2107 = vunpack.c.h.b16 %v1959
    %v2108 = vunpack.c.l.b16 %v1960
    %v2109 = vunpack.c.h.b16 %v1960
    %v2110 = vunpack.c.l.b16 %v1961
    %v2111 = vunpack.c.h.b16 %v1961
    %v2112 = vunpack.c.l.b16 %v1962
    %v2113 = vunpack.c.h.b16 %v1962
    %v2114 = vunpack.c.l.b16 %v1963
    %v2115 = vunpack.c.h.b16 %v1963
    %v2116 = vunpack.c.l.b16 %v1964
    %v2117 = vunpack.c.h.b16 %v1964
    %v2118 = vunpack.c.l.b16 %v1965
    %v2119 = vunpack.c.h.b16 %v1965
    %v2120 = vunpack.c.l.b16 %v1966
    %v2121 = vunpack.c.h.b16 %v1966
    %v2122 = vunpack.c.l.b16 %v1967
    %v2123 = vunpack.c.h.b16 %v1967
    %v2124 = vunpack.c.l.b16 %v1968
    %v2125 = vunpack.c.h.b16 %v1968
    %v2126 = vunpack.c.l.b16 %v1969
    %v2127 = vunpack.c.h.b16 %v1969
    %v2128 = vunpack.c.l.b16 %v1970
    %v2129 = vunpack.c.h.b16 %v1970
    %v2130 = vunpack.c.l.b16 %v1971
    %v2131 = vunpack.c.h.b16 %v1971
    %v2132 = vunpack.c.l.b16 %v1972
    %v2133 = vunpack.c.h.b16 %v1972
    %v2134 = vunpack.c.l.b16 %v1973
    %v2135 = vunpack.c.h.b16 %v1973
    %v2136 = vunpack.c.l.b16 %v1974
    %v2137 = vunpack.c.h.b16 %v1974
    %v2138 = vunpack.c.l.b16 %v1975
    %v2139 = vunpack.c.h.b16 %v1975
    %v2140 = vunpack.c.l.b16 %v1976
    %v2141 = vunpack.c.h.b16 %v1976
    %v2142 = vunpack.c.l.b16 %v1977
    %v2143 = vunpack.c.h.b16 %v1977
    %v2144 = vunpack.c.l.b16 %v1978
    %v2145 = vunpack.c.h.b16 %v1978
    %v2146 = vunpack.c.l.b16 %v1979
    %v2147 = vunpack.c.h.b16 %v1979
    %v2148 = vunpack.c.l.b16 %v1980
    %v2149 = vunpack.c.h.b16 %v1980
    %v2150 = vunpack.c.l.b16 %v1981
    %v2151 = vunpack.c.h.b16 %v1981
    %v2152 = vunpack.c.l.b16 %v1982
    %v2153 = vunpack.c.h.b16 %v1982
    %v2154 = vunpack.c.l.b16 %v1983
    %v2155 = vunpack.c.h.b16 %v1983
    %v2156 = vunpack.c.l.b16 %v1984
    %v2157 = vunpack.c.h.b16 %v1984
    %v2158 = vunpack.c.l.b16 %v1985
    %v2159 = vunpack.c.h.b16 %v1985
    %v2160 = vunpack.c.l.b16 %v1986
    %v2161 = vunpack.c.h.b16 %v1986
    %v2162 = vunpack.c.l.b16 %v1987
    %v2163 = vunpack.c.h.b16 %v1987
    %v2164 = vunpack.c.l.b16 %v1988
    %v2165 = vunpack.c.h.b16 %v1988
    %v2166 = vunpack.c.l.b16 %v1989
    %v2167 = vunpack.c.h.b16 %v1989
    %v2168 = vunpack.c.l.b16 %v1990
    %v2169 = vunpack.c.h.b16 %v1990
    %v2170 = vunpack.c.l.b16 %v1991
    %v2171 = vunpack.c.h.b16 %v1991
    %v2172 = vunpack.c.l.b16 %v1992
    %v2173 = vunpack.c.h.b16 %v1992
    %v2174 = vunpack.c.l.b16 %v1993
    %v2175 = vunpack.c.h.b16 %v1993
    %v2176 = vunpack.c.l.b16 %v1994
    %v2177 = vunpack.c.h.b16 %v1994
    %v2178 = vunpack.c.l.b16 %v1995
    %v2179 = vunpack.c.h.b16 %v1995
    %v2180 = vunpack.c.l.b16 %v1996
    %v2181 = vunpack.c.h.b16 %v1996
    %v2182 = vunpack.c.l.b16 %v1997
    %v2183 = vunpack.c.h.b16 %v1997
    %v2184 = vunpack.c.l.b16 %v1998
    %v2185 = vunpack.c.h.b16 %v1998
    %v2186 = vunpack.c.l.b16 %v1999
    %v2187 = vunpack.c.h.b16 %v1999
    %v2188 = vunpack.c.l.b16 %v2000
    %v2189 = vunpack.c.h.b16 %v2000
    %v2190 = vunpack.c.l.b16 %v2001
    %v2191 = vunpack.c.h.b16 %v2001
    %v2192 = vunpack.c.l.b16 %v2002
    %v2193 = vunpack.c.h.b16 %v2002
    %v2194 = vunpack.c.l.b16 %v2003
    %v2195 = vunpack.c.h.b16 %v2003
    %v2196 = vunpack.c.l.b16 %v2004
    %v2197 = vunpack.c.h.b16 %v2004
    %v2198 = vunpack.c.l.b16 %v2005
    %v2199 = vunpack.c.h.b16 %v2005
    %v2200 = vunpack.c.l.b16 %v2006
    %v2201 = vunpack.c.h.b16 %v2006
    %v2202 = vunpack.c.l.b16 %v2007
    %v2203 = vunpack.c.h.b16 %v2007
    %v2204 = vunpack.c.l.b16 %v2008
    %v2205 = vunpack.c.h.b16 %v2008
    %v2206 = vunpack.c.l.b16 %v2009
    %v2207 = vunpack.c.h.b16 %v2009
    %v2208 = vunpack.c.l.b16 %v2010
    %v2209 = vunpack.c.h.b16 %v2010
    %v2210 = vunpack.c.l.b16 %v2011
    %v2211 = vunpack.c.h.b16 %v2011
    %v2212 = vunpack.c.l.b16 %v2012
    %v2213 = vunpack.c.h.b16 %v2012
    %v2214 = vunpack.c.l.b16 %v2013
    %v2215 = vunpack.c.h.b16 %v2013
    %v2216 = vunpack.c.l.b16 %v2014
    %v2217 = vunpack.c.h.b16 %v2014
    %v2218 = vunpack.c.l.b16 %v2015
    %v2219 = vunpack.c.h.b16 %v2015
    %v2220 = vunpack.c.l.b16 %v2016
    %v2221 = vunpack.c.h.b16 %v2016
    %v2222 = vunpack.c.l.b16 %v2017
    %v2223 = vunpack.c.h.b16 %v2017
    %v2224 = vunpack.c.l.b16 %v2018
    %v2225 = vunpack.c.h.b16 %v2018
    %v2226 = vunpack.c.l.b16 %v2019
    %v2227 = vunpack.c.h.b16 %v2019
    %v2228 = vpack.c.b16 %v2102, %v2100
    %v2229 = vpack.c.b16 %v2103, %v2101
    %v2230 = vpack.c.b16 %v2106, %v2104
    %v2231 = vpack.c.b16 %v2107, %v2105
    %v2232 = vpack.c.b16 %v2110, %v2108
    %v2233 = vpack.c.b16 %v2111, %v2109
    %v2234 = vpack.c.b16 %v2114, %v2112
    %v2235 = vpack.c.b16 %v2115, %v2113
    %v2236 = vpack.c.b16 %v2118, %v2116
    %v2237 = vpack.c.b16 %v2119, %v2117
    %v2238 = vpack.c.b16 %v2122, %v2120
    %v2239 = vpack.c.b16 %v2123, %v2121
    %v2240 = vpack.c.b16 %v2126, %v2124
    %v2241 = vpack.c.b16 %v2127, %v2125
    %v2242 = vpack.c.b16 %v2130, %v2128
    %v2243 = vpack.c.b16 %v2131, %v2129
    %v2244 = vpack.c.b16 %v2134, %v2132
    %v2245 = vpack.c.b16 %v2135, %v2133
    %v2246 = vpack.c.b16 %v2138, %v2136
    %v2247 = vpack.c.b16 %v2139, %v2137
    %v2248 = vpack.c.b16 %v2142, %v2140
    %v2249 = vpack.c.b16 %v2143, %v2141
    %v2250 = vpack.c.b16 %v2146, %v2144
    %v2251 = vpack.c.b16 %v2147, %v2145
    %v2252 = vpack.c.b16 %v2150, %v2148
    %v2253 = vpack.c.b16 %v2151, %v2149
    %v2254 = vpack.c.b16 %v2154, %v2152
    %v2255 = vpack.c.b16 %v2155, %v2153
    %v2256 = vpack.c.b16 %v2158, %v2156
    %v2257 = vpack.c.b16 %v2159, %v2157
    %v2258 = vpack.c.b16 %v2162, %v2160
    %v2259 = vpack.c.b16 %v2163, %v2161
    %v2260 = vpack.c.b16 %v2166, %v2164
    %v2261 = vpack.c.b16 %v2167, %v2165
    %v2262 = vpack.c.b16 %v2170, %v2168
    %v2263 = vpack.c.b16 %v2171, %v2169
    %v2264 = vpack.c.b16 %v2174, %v2172
    %v2265 = vpack.c.b16 %v2175, %v2173
    %v2266 = vpack.c.b16 %v2178, %v2176
    %v2267 = vpack.c.b16 %v2179, %v2177
    %v2268 = vpack.c.b16 %v2182, %v2180
    %v2269 = vpack.c.b16 %v2183, %v2181
    %v2270 = vpack.c.b16 %v2186, %v2184
    %v2271 = vpack.c.b16 %v2187, %v2185
    %v2272 = vpack.c.b16 %v2190, %v2188
    %v2273 = vpack.c.b16 %v2191, %v2189
    %v2274 = vpack.c.b16 %v2194, %v2192
    %v2275 = vpack.c.b16 %v2195, %v2193
    %v2276 = vpack.c.b16 %v2198, %v2196
    %v2277 = vpack.c.b16 %v2199, %v2197
    %v2278 = vpack.c.b16 %v2202, %v2200
    %v2279 = vpack.c.b16 %v2203, %v2201
    %v2280 = vpack.c.b16 %v2206, %v2204
    %v2281 = vpack.c.b16 %v2207, %v2205
    %v2282 = vpack.c.b16 %v2210, %v2208
    %v2283 = vpack.c.b16 %v2211, %v2209
    %v2284 = vpack.c.b16 %v2214, %v2212
    %v2285 = vpack.c.b16 %v2215, %v2213
    %v2286 = vpack.c.b16 %v2218, %v2216
    %v2287 = vpack.c.b16 %v2219, %v2217
    %v2288 = vpack.c.b16 %v2222, %v2220
    %v2289 = vpack.c.b16 %v2223, %v2221
    %v2290 = vpack.c.b16 %v2226, %v2224
    %v2291 = vpack.c.b16 %v2227, %v2225
    %2356 = vmatprep.subr.bf16.mxu0 %v2229
    %2357 = vmatpush1.bf16.msra.mxu0 %v2228
    %2358 = vmatprep.subr.bf16.mxu0 %v2231
    %2359 = vmatpush1.bf16.msra.mxu0 %v2230
    %2360 = vmatprep.subr.bf16.mxu0 %v2233
    %2361 = vmatpush1.bf16.msra.mxu0 %v2232
    %2362 = vmatprep.subr.bf16.mxu0 %v2235
    %2363 = vmatpush1.bf16.msra.mxu0 %v2234
    %2364 = vmatprep.subr.bf16.mxu0 %v2237
    %2365 = vmatpush1.bf16.msra.mxu0 %v2236
    %2366 = vmatprep.subr.bf16.mxu0 %v2239
    %2367 = vmatpush1.bf16.msra.mxu0 %v2238
    %2368 = vmatprep.subr.bf16.mxu0 %v2241
    %2369 = vmatpush1.bf16.msra.mxu0 %v2240
    %2370 = vmatprep.subr.bf16.mxu0 %v2243
    %2371 = vmatpush1.bf16.msra.mxu0 %v2242
    %2372 = vmatprep.subr.bf16.mxu0 %v2245
    %2373 = vmatpush1.bf16.msra.mxu0 %v2244
    %2374 = vmatprep.subr.bf16.mxu0 %v2247
    %2375 = vmatpush1.bf16.msra.mxu0 %v2246
    %2376 = vmatprep.subr.bf16.mxu0 %v2249
    %2377 = vmatpush1.bf16.msra.mxu0 %v2248
    %2378 = vmatprep.subr.bf16.mxu0 %v2251
    %2379 = vmatpush1.bf16.msra.mxu0 %v2250
    %2380 = vmatprep.subr.bf16.mxu0 %v2253
    %2381 = vmatpush1.bf16.msra.mxu0 %v2252
    %2382 = vmatprep.subr.bf16.mxu0 %v2255
    %2383 = vmatpush1.bf16.msra.mxu0 %v2254
    %2384 = vmatprep.subr.bf16.mxu0 %v2257
    %2385 = vmatpush1.bf16.msra.mxu0 %v2256
    %2386 = vmatprep.subr.bf16.mxu0 %v2259
    %2387 = vmatpush1.bf16.msra.mxu0 %v2258
    %2388 = vmatprep.mubr.bf16.mxu0 %v2022
    %2389 = vmatmul.mubr.bf16.gmra.mrb[0].mxu0 %v2021
    %v2390 = vpop.f32.mrb[0].mxu0
    %v2391 = vadd.f32 %v2029, %v2390
    %v2392 = vpop.f32.mrb[0].mxu0
    %v2393 = vadd.f32 %v2033, %v2392
    %v2394 = vpop.f32.mrb[0].mxu0
    %v2395 = vpop.f32.mrb[0].mxu0
    %2396 = vdwg.mxu0
    %2397 = vmatprep.subr.bf16.mxu0 %v2261
    %2398 = vmatpush1.bf16.msra.mxu0 %v2260
    %2399 = vmatprep.subr.bf16.mxu0 %v2263
    %2400 = vmatpush1.bf16.msra.mxu0 %v2262
    %2401 = vmatprep.subr.bf16.mxu0 %v2265
    %2402 = vmatpush1.bf16.msra.mxu0 %v2264
    %2403 = vmatprep.subr.bf16.mxu0 %v2267
    %2404 = vmatpush1.bf16.msra.mxu0 %v2266
    %2405 = vmatprep.subr.bf16.mxu0 %v2269
    %2406 = vmatpush1.bf16.msra.mxu0 %v2268
    %2407 = vmatprep.subr.bf16.mxu0 %v2271
    %2408 = vmatpush1.bf16.msra.mxu0 %v2270
    %2409 = vmatprep.subr.bf16.mxu0 %v2273
    %2410 = vmatpush1.bf16.msra.mxu0 %v2272
    %2411 = vmatprep.subr.bf16.mxu0 %v2275
    %2412 = vmatpush1.bf16.msra.mxu0 %v2274
    %2413 = vmatprep.subr.bf16.mxu0 %v2277
    %2414 = vmatpush1.bf16.msra.mxu0 %v2276
    %2415 = vmatprep.subr.bf16.mxu0 %v2279
    %2416 = vmatpush1.bf16.msra.mxu0 %v2278
    %2417 = vmatprep.subr.bf16.mxu0 %v2281
    %2418 = vmatpush1.bf16.msra.mxu0 %v2280
    %2419 = vmatprep.subr.bf16.mxu0 %v2283
    %2420 = vmatpush1.bf16.msra.mxu0 %v2282
    %2421 = vmatprep.subr.bf16.mxu0 %v2285
    %2422 = vmatpush1.bf16.msra.mxu0 %v2284
    %2423 = vmatprep.subr.bf16.mxu0 %v2287
    %2424 = vmatpush1.bf16.msra.mxu0 %v2286
    %2425 = vmatprep.subr.bf16.mxu0 %v2289
    %2426 = vmatpush1.bf16.msra.mxu0 %v2288
    %2427 = vmatprep.subr.bf16.mxu0 %v2291
    %2428 = vmatpush1.bf16.msra.mxu0 %v2290
    %2429 = vmatprep.mubr.bf16.mxu0 %v2024
    %2430 = vmatmul.mubr.bf16.gmra.mrb[0].mxu0 %v2023
    %v2431 = vpop.f32.mrb[0].mxu0
    %v2432 = vadd.f32 %v2391, %v2431
    %v2433 = vpop.f32.mrb[0].mxu0
    %v2434 = vadd.f32 %v2393, %v2433
    %v2435 = vpop.f32.mrb[0].mxu0
    %v2436 = vpop.f32.mrb[0].mxu0
    %2437 = vdwg.mxu0
    %s2438 = scalar_lea.vmem [#allocation14], 1
    %v2439 = vld [vmem:[%s2438] ss:$4 sm:$0x3]
    %s2440 = scalar_lea.vmem [#allocation14], 2
    %v2441 = vld [vmem:[%s2440] ss:$4 sm:$0x3]
    %v2442 = vrot.slane %v2432, 4
    %v2443 = vadd.f32 %v2432, %v2442
    %v2444 = vrot.slane %v2443, 2
    %v2445 = vadd.f32 %v2443, %v2444
    %v2446 = vrot.slane %v2445, 1
    %v2447 = vadd.f32 %v2445, %v2446
    %v2448 = vrot.slane %v2434, 4
    %v2449 = vadd.f32 %v2434, %v2448
    %v2450 = vrot.slane %v2449, 2
    %v2451 = vadd.f32 %v2449, %v2450
    %v2452 = vrot.slane %v2451, 1
    %v2453 = vadd.f32 %v2451, %v2452
    %v2454 = vmul.f32 %v2447, %v362
    %v2455 = vmul.f32 %v2453, %v362
    %v2456 = vmul.f32 %v2432, %v2432
    %v2457 = vmul.f32 %v2434, %v2434
    %v2458 = vrot.slane %v2456, 4
    %v2459 = vadd.f32 %v2456, %v2458
    %v2460 = vrot.slane %v2459, 2
    %v2461 = vadd.f32 %v2459, %v2460
    %v2462 = vrot.slane %v2461, 1
    %v2463 = vadd.f32 %v2461, %v2462
    %v2464 = vrot.slane %v2457, 4
    %v2465 = vadd.f32 %v2457, %v2464
    %v2466 = vrot.slane %v2465, 2
    %v2467 = vadd.f32 %v2465, %v2466
    %v2468 = vrot.slane %v2467, 1
    %v2469 = vadd.f32 %v2467, %v2468
    %v2470 = vmul.f32 %v2463, %v362
    %v2471 = vmul.f32 %v2469, %v362
    %v2472 = vmul.f32 %v2454, %v2454
    %v2473 = vmul.f32 %v2455, %v2455
    %v2474 = vsub.f32 %v2470, %v2472
    %v2475 = vsub.f32 %v2471, %v2473
    %v2476 = vadd.f32 %v2474, 1e-05
    %v2477 = vadd.f32 %v2475, 1e-05
    %v2478 = vrsqrt.pop %v2476
    %v2479 = vrsqrt.pop %v2477
    %v2482 = vcombine.low %v2478, %v2479
    %v2484 = vunpack.c.l.s4 1966171168
    %v2485 = vunpack.c.0.s8 %v2484
    %v2486 = vlaneseq
    %v2487 = vshrl.u32 %v2486, 7
    %v2488 = vsub.s32 %v2485, %v2487
    %v2489 = vrot.slane %v2482, %v2488
    %v2491 = vunpack.c.l.s4 1966171168
    %v2492 = vunpack.c.0.s8 %v2491
    %v2493 = vlaneseq
    %v2494 = vshrl.u32 %v2493, 7
    %v2495 = vsub.s32 %v2492, %v2494
    %v2496 = vrot.slane %v2489, %v2495
    %v2498 = vmul.f32 %v2439, %v2496
    %v2499 = vsub.f32 %v2432, %v2454
    %v2500 = vsub.f32 %v2434, %v2455
    %v2502 = vlaneseq
    %v2503 = vshrl.u32 %v2502, 7
    %v2504 = vsub.s32 0, %v2503
    %v2505 = vrot.slane %v2498, %v2504
    %v2506 = vlaneseq
    %v2507 = vshrl.u32 %v2506, 7
    %v2508 = vsub.s32 1, %v2507
    %v2509 = vrot.slane %v2498, %v2508
    %v2512 = vmul.f32 %v2499, %v2505
    %v2513 = vmul.f32 %v2500, %v2509
    %v2515 = vlaneseq
    %v2516 = vshrl.u32 %v2515, 7
    %v2517 = vsub.s32 0, %v2516
    %v2518 = vrot.slane %v2441, %v2517
    %v2519 = vlaneseq
    %v2520 = vshrl.u32 %v2519, 7
    %v2521 = vsub.s32 1, %v2520
    %v2522 = vrot.slane %v2441, %v2521
    %v2525 = vadd.f32 %v2512, %v2518
    %v2526 = vadd.f32 %v2513, %v2522
    %v2527 = vmax.f32 %v2525, 0.0
    %v2528 = vmax.f32 %v2526, 0.0
    %v2529 = vld [vmem:[#allocation11] sm:$0xf]
    %v2530 = vld [vmem:[#allocation11 + $0x4] sm:$0xf]
    %v2531 = vld [vmem:[#allocation11 + $0x8] sm:$0xf]
    %v2532 = vld [vmem:[#allocation11 + $0xc] sm:$0xf]
    %v2533 = vld [vmem:[#allocation11 + $0x10] sm:$0xf]
    %v2534 = vld [vmem:[#allocation11 + $0x14] sm:$0xf]
    %v2535 = vld [vmem:[#allocation11 + $0x18] sm:$0xf]
    %v2536 = vld [vmem:[#allocation11 + $0x1c] sm:$0xf]
    %v2537 = vld [vmem:[#allocation11 + $0x20] sm:$0xf]
    %v2538 = vld [vmem:[#allocation11 + $0x24] sm:$0xf]
    %v2539 = vld [vmem:[#allocation11 + $0x28] sm:$0xf]
    %v2540 = vld [vmem:[#allocation11 + $0x2c] sm:$0xf]
    %v2541 = vld [vmem:[#allocation11 + $0x30] sm:$0xf]
    %v2542 = vld [vmem:[#allocation11 + $0x34] sm:$0xf]
    %v2543 = vld [vmem:[#allocation11 + $0x38] sm:$0xf]
    %v2544 = vld [vmem:[#allocation11 + $0x3c] sm:$0xf]
    %v2545 = vld [vmem:[#allocation11 + $0x40] sm:$0xf]
    %v2546 = vld [vmem:[#allocation11 + $0x44] sm:$0xf]
    %v2547 = vld [vmem:[#allocation11 + $0x48] sm:$0xf]
    %v2548 = vld [vmem:[#allocation11 + $0x4c] sm:$0xf]
    %v2549 = vld [vmem:[#allocation11 + $0x50] sm:$0xf]
    %v2550 = vld [vmem:[#allocation11 + $0x54] sm:$0xf]
    %v2551 = vld [vmem:[#allocation11 + $0x58] sm:$0xf]
    %v2552 = vld [vmem:[#allocation11 + $0x5c] sm:$0xf]
    %v2553 = vld [vmem:[#allocation11 + $0x60] sm:$0xf]
    %v2554 = vld [vmem:[#allocation11 + $0x64] sm:$0xf]
    %v2555 = vld [vmem:[#allocation11 + $0x68] sm:$0xf]
    %v2556 = vld [vmem:[#allocation11 + $0x6c] sm:$0xf]
    %v2557 = vld [vmem:[#allocation11 + $0x70] sm:$0xf]
    %v2558 = vld [vmem:[#allocation11 + $0x74] sm:$0xf]
    %v2559 = vld [vmem:[#allocation11 + $0x78] sm:$0xf]
    %v2560 = vld [vmem:[#allocation11 + $0x7c] sm:$0xf]
    %v2561 = vld [vmem:[%s9] sm:$0x1]
    %v2562 = vpack.c.bf16 %v2527, %v2527
    %v2563 = vpack.c.bf16 %v2528, %v2528
    %v2564 = vlaneseq
    %v2565 = vshrl.u32 %v2564, 7
    %v2566 = vsub.s32 0, %v2565
    %v2567 = vrot.slane %v2561, %v2566
    %v2600 = vunpack.c.l.b16 %v2529
    %v2601 = vunpack.c.l.b16 %v2530
    %v2602 = vunpack.c.l.b16 %v2531
    %v2603 = vunpack.c.l.b16 %v2532
    %v2604 = vunpack.c.l.b16 %v2533
    %v2605 = vunpack.c.l.b16 %v2534
    %v2606 = vunpack.c.l.b16 %v2535
    %v2607 = vunpack.c.l.b16 %v2536
    %v2608 = vunpack.c.l.b16 %v2537
    %v2609 = vunpack.c.l.b16 %v2538
    %v2610 = vunpack.c.l.b16 %v2539
    %v2611 = vunpack.c.l.b16 %v2540
    %v2612 = vunpack.c.l.b16 %v2541
    %v2613 = vunpack.c.l.b16 %v2542
    %v2614 = vunpack.c.l.b16 %v2543
    %v2615 = vunpack.c.l.b16 %v2544
    %v2616 = vunpack.c.l.b16 %v2545
    %v2617 = vunpack.c.l.b16 %v2546
    %v2618 = vunpack.c.l.b16 %v2547
    %v2619 = vunpack.c.l.b16 %v2548
    %v2620 = vunpack.c.l.b16 %v2549
    %v2621 = vunpack.c.l.b16 %v2550
    %v2622 = vunpack.c.l.b16 %v2551
    %v2623 = vunpack.c.l.b16 %v2552
    %v2624 = vunpack.c.l.b16 %v2553
    %v2625 = vunpack.c.l.b16 %v2554
    %v2626 = vunpack.c.l.b16 %v2555
    %v2627 = vunpack.c.l.b16 %v2556
    %v2628 = vunpack.c.l.b16 %v2557
    %v2629 = vunpack.c.l.b16 %v2558
    %v2630 = vunpack.c.l.b16 %v2559
    %v2631 = vunpack.c.l.b16 %v2560
    %v2632 = vpack.c.b16 %v2601, %v2600
    %v2633 = vpack.c.b16 %v2603, %v2602
    %v2634 = vpack.c.b16 %v2605, %v2604
    %v2635 = vpack.c.b16 %v2607, %v2606
    %v2636 = vpack.c.b16 %v2609, %v2608
    %v2637 = vpack.c.b16 %v2611, %v2610
    %v2638 = vpack.c.b16 %v2613, %v2612
    %v2639 = vpack.c.b16 %v2615, %v2614
    %v2640 = vpack.c.b16 %v2617, %v2616
    %v2641 = vpack.c.b16 %v2619, %v2618
    %v2642 = vpack.c.b16 %v2621, %v2620
    %v2643 = vpack.c.b16 %v2623, %v2622
    %v2644 = vpack.c.b16 %v2625, %v2624
    %v2645 = vpack.c.b16 %v2627, %v2626
    %v2646 = vpack.c.b16 %v2629, %v2628
    %v2647 = vpack.c.b16 %v2631, %v2630
    %2664 = vmatprep.subr.bf16.mxu0 0
    %2665 = vmatpush1.bf16.msra.mxu0 %v2632
    %2666 = vmatprep.subr.bf16.mxu0 0
    %2667 = vmatpush1.bf16.msra.mxu0 %v2633
    %2668 = vmatprep.subr.bf16.mxu0 0
    %2669 = vmatpush1.bf16.msra.mxu0 %v2634
    %2670 = vmatprep.subr.bf16.mxu0 0
    %2671 = vmatpush1.bf16.msra.mxu0 %v2635
    %2672 = vmatprep.subr.bf16.mxu0 0
    %2673 = vmatpush1.bf16.msra.mxu0 %v2636
    %2674 = vmatprep.subr.bf16.mxu0 0
    %2675 = vmatpush1.bf16.msra.mxu0 %v2637
    %2676 = vmatprep.subr.bf16.mxu0 0
    %2677 = vmatpush1.bf16.msra.mxu0 %v2638
    %2678 = vmatprep.subr.bf16.mxu0 0
    %2679 = vmatpush1.bf16.msra.mxu0 %v2639
    %2680 = vmatprep.subr.bf16.mxu0 0
    %2681 = vmatpush1.bf16.msra.mxu0 %v2640
    %2682 = vmatprep.subr.bf16.mxu0 0
    %2683 = vmatpush1.bf16.msra.mxu0 %v2641
    %2684 = vmatprep.subr.bf16.mxu0 0
    %2685 = vmatpush1.bf16.msra.mxu0 %v2642
    %2686 = vmatprep.subr.bf16.mxu0 0
    %2687 = vmatpush1.bf16.msra.mxu0 %v2643
    %2688 = vmatprep.subr.bf16.mxu0 0
    %2689 = vmatpush1.bf16.msra.mxu0 %v2644
    %2690 = vmatprep.subr.bf16.mxu0 0
    %2691 = vmatpush1.bf16.msra.mxu0 %v2645
    %2692 = vmatprep.subr.bf16.mxu0 0
    %2693 = vmatpush1.bf16.msra.mxu0 %v2646
    %2694 = vmatprep.subr.bf16.mxu0 0
    %2695 = vmatpush1.bf16.msra.mxu0 %v2647
    %2696 = vmatprep.mubr.bf16.mxu0 %v2563
    %2697 = vmatmul.mubr.bf16.gmra.mrb[0].mxu0 %v2562
    %v2698 = vpop.f32.mrb[0].mxu0
    %v2699 = vadd.f32 %v2567, %v2698
    %v2700 = vpop.f32.mrb[0].mxu0
    %v2701 = vpop.f32.mrb[0].mxu0
    %v2702 = vpop.f32.mrb[0].mxu0
    %2703 = vdwg.mxu0
    %v2704 = vadd.f32 %v2699, %v494
    %v2705 = vmax.f32 %v2704, 0.0
    %v2706 = vld [vmem:[#allocation11 + $0x140] sm:$0xf]
    %v2707 = vld [vmem:[#allocation11 + $0x144] sm:$0xf]
    %v2708 = vld [vmem:[#allocation11 + $0x148] sm:$0xf]
    %v2709 = vld [vmem:[#allocation11 + $0x14c] sm:$0xf]
    %v2710 = vld [vmem:[#allocation11 + $0x150] sm:$0xf]
    %v2711 = vld [vmem:[#allocation11 + $0x154] sm:$0xf]
    %v2712 = vld [vmem:[#allocation11 + $0x158] sm:$0xf]
    %v2713 = vld [vmem:[#allocation11 + $0x15c] sm:$0xf]
    %v2714 = vld [vmem:[#allocation11 + $0x160] sm:$0xf]
    %v2715 = vld [vmem:[#allocation11 + $0x164] sm:$0xf]
    %v2716 = vld [vmem:[#allocation11 + $0x168] sm:$0xf]
    %v2717 = vld [vmem:[#allocation11 + $0x16c] sm:$0xf]
    %v2718 = vld [vmem:[#allocation11 + $0x170] sm:$0xf]
    %v2719 = vld [vmem:[#allocation11 + $0x174] sm:$0xf]
    %v2720 = vld [vmem:[#allocation11 + $0x178] sm:$0xf]
    %v2721 = vld [vmem:[#allocation11 + $0x17c] sm:$0xf]
    %v2722 = vld [vmem:[%s9 + $0x5] sm:$0x1]
    %v2723 = vpack.c.bf16 %v2705, %v2705
    %v2724 = vlaneseq
    %v2725 = vshrl.u32 %v2724, 7
    %v2726 = vsub.s32 0, %v2725
    %v2727 = vrot.slane %v2722, %v2726
    %v2744 = vunpack.c.l.b16 %v2706
    %v2745 = vunpack.c.l.b16 %v2707
    %v2746 = vunpack.c.l.b16 %v2708
    %v2747 = vunpack.c.l.b16 %v2709
    %v2748 = vunpack.c.l.b16 %v2710
    %v2749 = vunpack.c.l.b16 %v2711
    %v2750 = vunpack.c.l.b16 %v2712
    %v2751 = vunpack.c.l.b16 %v2713
    %v2752 = vunpack.c.l.b16 %v2714
    %v2753 = vunpack.c.l.b16 %v2715
    %v2754 = vunpack.c.l.b16 %v2716
    %v2755 = vunpack.c.l.b16 %v2717
    %v2756 = vunpack.c.l.b16 %v2718
    %v2757 = vunpack.c.l.b16 %v2719
    %v2758 = vunpack.c.l.b16 %v2720
    %v2759 = vunpack.c.l.b16 %v2721
    %v2760 = vpack.c.b16 %v2745, %v2744
    %v2761 = vpack.c.b16 %v2747, %v2746
    %v2762 = vpack.c.b16 %v2749, %v2748
    %v2763 = vpack.c.b16 %v2751, %v2750
    %v2764 = vpack.c.b16 %v2753, %v2752
    %v2765 = vpack.c.b16 %v2755, %v2754
    %v2766 = vpack.c.b16 %v2757, %v2756
    %v2767 = vpack.c.b16 %v2759, %v2758
    %2776 = vmatprep.subr.bf16.mxu0 0
    %2777 = vmatpush1.bf16.msra.mxu0 %v2760
    %2778 = vmatprep.subr.bf16.mxu0 0
    %2779 = vmatpush1.bf16.msra.mxu0 %v2761
    %2780 = vmatprep.subr.bf16.mxu0 0
    %2781 = vmatpush1.bf16.msra.mxu0 %v2762
    %2782 = vmatprep.subr.bf16.mxu0 0
    %2783 = vmatpush1.bf16.msra.mxu0 %v2763
    %2784 = vmatprep.subr.bf16.mxu0 0
    %2785 = vmatpush1.bf16.msra.mxu0 %v2764
    %2786 = vmatprep.subr.bf16.mxu0 0
    %2787 = vmatpush1.bf16.msra.mxu0 %v2765
    %2788 = vmatprep.subr.bf16.mxu0 0
    %2789 = vmatpush1.bf16.msra.mxu0 %v2766
    %2790 = vmatprep.subr.bf16.mxu0 0
    %2791 = vmatpush1.bf16.msra.mxu0 %v2767
    %2792 = vmatprep.subr.bf16.mxu0 0
    %2793 = vmatpush1.bf16.msra.mxu0 0
    %2794 = vmatprep.subr.bf16.mxu0 0
    %2795 = vmatpush1.bf16.msra.mxu0 0
    %2796 = vmatprep.subr.bf16.mxu0 0
    %2797 = vmatpush1.bf16.msra.mxu0 0
    %2798 = vmatprep.subr.bf16.mxu0 0
    %2799 = vmatpush1.bf16.msra.mxu0 0
    %2800 = vmatprep.subr.bf16.mxu0 0
    %2801 = vmatpush1.bf16.msra.mxu0 0
    %2802 = vmatprep.subr.bf16.mxu0 0
    %2803 = vmatpush1.bf16.msra.mxu0 0
    %2804 = vmatprep.subr.bf16.mxu0 0
    %2805 = vmatpush1.bf16.msra.mxu0 0
    %2806 = vmatprep.subr.bf16.mxu0 0
    %2807 = vmatpush1.bf16.msra.mxu0 0
    %2808 = vmatprep.mubr.bf16.mxu0 0
    %2809 = vmatmul.mubr.bf16.gmra.mrb[0].mxu0 %v2723
    %v2810 = vpop.f32.mrb[0].mxu0
    %v2811 = vadd.f32 %v2727, %v2810
    %v2812 = vpop.f32.mrb[0].mxu0
    %v2813 = vpop.f32.mrb[0].mxu0
    %v2814 = vpop.f32.mrb[0].mxu0
    %2815 = vdwg.mxu0
    %v2816 = vld [vmem:[%s9 + $0x6] sm:$0x1]
    %v2817 = vld [vmem:[%s9 + $0x7] sm:$0x1]
    %v2818 = vrot.slane %v2811, 4
    %v2819 = vadd.f32 %v2811, %v2818
    %v2820 = vrot.slane %v2819, 2
    %v2821 = vadd.f32 %v2819, %v2820
    %v2822 = vrot.slane %v2821, 1
    %v2823 = vadd.f32 %v2821, %v2822
    %v2824 = vmul.f32 %v2823, %v362
    %v2825 = vmul.f32 %v2811, %v2811
    %v2826 = vrot.slane %v2825, 4
    %v2827 = vadd.f32 %v2825, %v2826
    %v2828 = vrot.slane %v2827, 2
    %v2829 = vadd.f32 %v2827, %v2828
    %v2830 = vrot.slane %v2829, 1
    %v2831 = vadd.f32 %v2829, %v2830
    %v2832 = vmul.f32 %v2831, %v362
    %v2833 = vmul.f32 %v2824, %v2824
    %v2834 = vsub.f32 %v2832, %v2833
    %v2835 = vadd.f32 %v2834, 1e-05
    %v2836 = vrsqrt.pop %v2835
    %v2837 = vmul.f32 %v2816, %v2836
    %v2838 = vsub.f32 %v2811, %v2824
    %v2839 = vlaneseq
    %v2840 = vshrl.u32 %v2839, 7
    %v2841 = vsub.s32 0, %v2840
    %v2842 = vrot.slane %v2837, %v2841
    %v2843 = vmul.f32 %v2838, %v2842
    %v2844 = vlaneseq
    %v2845 = vshrl.u32 %v2844, 7
    %v2846 = vsub.s32 0, %v2845
    %v2847 = vrot.slane %v2817, %v2846
    %v2848 = vadd.f32 %v2843, %v2847
    %v2849 = vmax.f32 %v2848, 0.0
    %v2850 = vld [vmem:[#allocation11 + $0x180] sm:$0xf]
    %v2851 = vld [vmem:[#allocation11 + $0x184] sm:$0xf]
    %v2852 = vld [vmem:[#allocation11 + $0x188] sm:$0xf]
    %v2853 = vld [vmem:[#allocation11 + $0x18c] sm:$0xf]
    %v2854 = vld [vmem:[#allocation11 + $0x190] sm:$0xf]
    %v2855 = vld [vmem:[#allocation11 + $0x194] sm:$0xf]
    %v2856 = vld [vmem:[#allocation11 + $0x198] sm:$0xf]
    %v2857 = vld [vmem:[#allocation11 + $0x19c] sm:$0xf]
    %v2858 = vld [vmem:[#allocation11 + $0x1a0] sm:$0xf]
    %v2859 = vld [vmem:[#allocation11 + $0x1a4] sm:$0xf]
    %v2860 = vld [vmem:[#allocation11 + $0x1a8] sm:$0xf]
    %v2861 = vld [vmem:[#allocation11 + $0x1ac] sm:$0xf]
    %v2862 = vld [vmem:[#allocation11 + $0x1b0] sm:$0xf]
    %v2863 = vld [vmem:[#allocation11 + $0x1b4] sm:$0xf]
    %v2864 = vld [vmem:[#allocation11 + $0x1b8] sm:$0xf]
    %v2865 = vld [vmem:[#allocation11 + $0x1bc] sm:$0xf]
    %v2866 = vld [vmem:[%s9 + $0x8] sm:$0x1]
    %v2867 = vpack.c.bf16 %v2849, %v2849
    %v2868 = vlaneseq
    %v2869 = vshrl.u32 %v2868, 7
    %v2870 = vsub.s32 0, %v2869
    %v2871 = vrot.slane %v2866, %v2870
    %v2888 = vunpack.c.l.b16 %v2850
    %v2889 = vunpack.c.l.b16 %v2851
    %v2890 = vunpack.c.l.b16 %v2852
    %v2891 = vunpack.c.l.b16 %v2853
    %v2892 = vunpack.c.l.b16 %v2854
    %v2893 = vunpack.c.l.b16 %v2855
    %v2894 = vunpack.c.l.b16 %v2856
    %v2895 = vunpack.c.l.b16 %v2857
    %v2896 = vunpack.c.l.b16 %v2858
    %v2897 = vunpack.c.l.b16 %v2859
    %v2898 = vunpack.c.l.b16 %v2860
    %v2899 = vunpack.c.l.b16 %v2861
    %v2900 = vunpack.c.l.b16 %v2862
    %v2901 = vunpack.c.l.b16 %v2863
    %v2902 = vunpack.c.l.b16 %v2864
    %v2903 = vunpack.c.l.b16 %v2865
    %v2904 = vpack.c.b16 %v2889, %v2888
    %v2905 = vpack.c.b16 %v2891, %v2890
    %v2906 = vpack.c.b16 %v2893, %v2892
    %v2907 = vpack.c.b16 %v2895, %v2894
    %v2908 = vpack.c.b16 %v2897, %v2896
    %v2909 = vpack.c.b16 %v2899, %v2898
    %v2910 = vpack.c.b16 %v2901, %v2900
    %v2911 = vpack.c.b16 %v2903, %v2902
    %2920 = vmatprep.subr.bf16.mxu0 0
    %2921 = vmatpush1.bf16.msra.mxu0 %v2904
    %2922 = vmatprep.subr.bf16.mxu0 0
    %2923 = vmatpush1.bf16.msra.mxu0 %v2905
    %2924 = vmatprep.subr.bf16.mxu0 0
    %2925 = vmatpush1.bf16.msra.mxu0 %v2906
    %2926 = vmatprep.subr.bf16.mxu0 0
    %2927 = vmatpush1.bf16.msra.mxu0 %v2907
    %2928 = vmatprep.subr.bf16.mxu0 0
    %2929 = vmatpush1.bf16.msra.mxu0 %v2908
    %2930 = vmatprep.subr.bf16.mxu0 0
    %2931 = vmatpush1.bf16.msra.mxu0 %v2909
    %2932 = vmatprep.subr.bf16.mxu0 0
    %2933 = vmatpush1.bf16.msra.mxu0 %v2910
    %2934 = vmatprep.subr.bf16.mxu0 0
    %2935 = vmatpush1.bf16.msra.mxu0 %v2911
    %2936 = vmatprep.subr.bf16.mxu0 0
    %2937 = vmatpush1.bf16.msra.mxu0 0
    %2938 = vmatprep.subr.bf16.mxu0 0
    %2939 = vmatpush1.bf16.msra.mxu0 0
    %2940 = vmatprep.subr.bf16.mxu0 0
    %2941 = vmatpush1.bf16.msra.mxu0 0
    %2942 = vmatprep.subr.bf16.mxu0 0
    %2943 = vmatpush1.bf16.msra.mxu0 0
    %2944 = vmatprep.subr.bf16.mxu0 0
    %2945 = vmatpush1.bf16.msra.mxu0 0
    %2946 = vmatprep.subr.bf16.mxu0 0
    %2947 = vmatpush1.bf16.msra.mxu0 0
    %2948 = vmatprep.subr.bf16.mxu0 0
    %2949 = vmatpush1.bf16.msra.mxu0 0
    %2950 = vmatprep.subr.bf16.mxu0 0
    %2951 = vmatpush1.bf16.msra.mxu0 0
    %2952 = vmatprep.mubr.bf16.mxu0 0
    %2953 = vmatmul.mubr.bf16.gmra.mrb[0].mxu0 %v2867
    %v2954 = vpop.f32.mrb[0].mxu0
    %v2955 = vadd.f32 %v2871, %v2954
    %v2956 = vpop.f32.mrb[0].mxu0
    %v2957 = vpop.f32.mrb[0].mxu0
    %v2958 = vpop.f32.mrb[0].mxu0
    %2959 = vdwg.mxu0
    %v2960 = vld [vmem:[%s9 + $0x9] sm:$0x1]
    %v2961 = vld [vmem:[%s9 + $0xa] sm:$0x1]
    %v2962 = vrot.slane %v2955, 4
    %v2963 = vadd.f32 %v2955, %v2962
    %v2964 = vrot.slane %v2963, 2
    %v2965 = vadd.f32 %v2963, %v2964
    %v2966 = vrot.slane %v2965, 1
    %v2967 = vadd.f32 %v2965, %v2966
    %v2968 = vmul.f32 %v2967, %v362
    %v2969 = vmul.f32 %v2955, %v2955
    %v2970 = vrot.slane %v2969, 4
    %v2971 = vadd.f32 %v2969, %v2970
    %v2972 = vrot.slane %v2971, 2
    %v2973 = vadd.f32 %v2971, %v2972
    %v2974 = vrot.slane %v2973, 1
    %v2975 = vadd.f32 %v2973, %v2974
    %v2976 = vmul.f32 %v2975, %v362
    %v2977 = vmul.f32 %v2968, %v2968
    %v2978 = vsub.f32 %v2976, %v2977
    %v2979 = vadd.f32 %v2978, 1e-05
    %v2980 = vrsqrt.pop %v2979
    %v2981 = vmul.f32 %v2960, %v2980
    %v2982 = vsub.f32 %v2955, %v2968
    %v2983 = vlaneseq
    %v2984 = vshrl.u32 %v2983, 7
    %v2985 = vsub.s32 0, %v2984
    %v2986 = vrot.slane %v2981, %v2985
    %v2987 = vmul.f32 %v2982, %v2986
    %v2988 = vlaneseq
    %v2989 = vshrl.u32 %v2988, 7
    %v2990 = vsub.s32 0, %v2989
    %v2991 = vrot.slane %v2961, %v2990
    %v2992 = vadd.f32 %v2987, %v2991
    %v2993 = vmax.f32 %v2992, 0.0
    %v2994 = vld [vmem:[#allocation11 + $0x1c0] sm:$0xf]
    %v2995 = vld [vmem:[#allocation11 + $0x1c4] sm:$0xf]
    %v2996 = vld [vmem:[#allocation11 + $0x1c8] sm:$0xf]
    %v2997 = vld [vmem:[#allocation11 + $0x1cc] sm:$0xf]
    %v2998 = vld [vmem:[#allocation11 + $0x1d0] sm:$0xf]
    %v2999 = vld [vmem:[#allocation11 + $0x1d4] sm:$0xf]
    %v3000 = vld [vmem:[#allocation11 + $0x1d8] sm:$0xf]
    %v3001 = vld [vmem:[#allocation11 + $0x1dc] sm:$0xf]
    %v3002 = vld [vmem:[#allocation11 + $0x1e0] sm:$0xf]
    %v3003 = vld [vmem:[#allocation11 + $0x1e4] sm:$0xf]
    %v3004 = vld [vmem:[#allocation11 + $0x1e8] sm:$0xf]
    %v3005 = vld [vmem:[#allocation11 + $0x1ec] sm:$0xf]
    %v3006 = vld [vmem:[#allocation11 + $0x1f0] sm:$0xf]
    %v3007 = vld [vmem:[#allocation11 + $0x1f4] sm:$0xf]
    %v3008 = vld [vmem:[#allocation11 + $0x1f8] sm:$0xf]
    %v3009 = vld [vmem:[#allocation11 + $0x1fc] sm:$0xf]
    %v3010 = vld [vmem:[%s9 + $0xb] sm:$0x1]
    %v3011 = vpack.c.bf16 %v2993, %v2993
    %v3012 = vlaneseq
    %v3013 = vshrl.u32 %v3012, 7
    %v3014 = vsub.s32 0, %v3013
    %v3015 = vrot.slane %v3010, %v3014
    %v3032 = vunpack.c.l.b16 %v2994
    %v3033 = vunpack.c.l.b16 %v2995
    %v3034 = vunpack.c.l.b16 %v2996
    %v3035 = vunpack.c.l.b16 %v2997
    %v3036 = vunpack.c.l.b16 %v2998
    %v3037 = vunpack.c.l.b16 %v2999
    %v3038 = vunpack.c.l.b16 %v3000
    %v3039 = vunpack.c.l.b16 %v3001
    %v3040 = vunpack.c.l.b16 %v3002
    %v3041 = vunpack.c.l.b16 %v3003
    %v3042 = vunpack.c.l.b16 %v3004
    %v3043 = vunpack.c.l.b16 %v3005
    %v3044 = vunpack.c.l.b16 %v3006
    %v3045 = vunpack.c.l.b16 %v3007
    %v3046 = vunpack.c.l.b16 %v3008
    %v3047 = vunpack.c.l.b16 %v3009
    %v3048 = vpack.c.b16 %v3033, %v3032
    %v3049 = vpack.c.b16 %v3035, %v3034
    %v3050 = vpack.c.b16 %v3037, %v3036
    %v3051 = vpack.c.b16 %v3039, %v3038
    %v3052 = vpack.c.b16 %v3041, %v3040
    %v3053 = vpack.c.b16 %v3043, %v3042
    %v3054 = vpack.c.b16 %v3045, %v3044
    %v3055 = vpack.c.b16 %v3047, %v3046
    %3064 = vmatprep.subr.bf16.mxu0 0
    %3065 = vmatpush1.bf16.msra.mxu0 %v3048
    %3066 = vmatprep.subr.bf16.mxu0 0
    %3067 = vmatpush1.bf16.msra.mxu0 %v3049
    %3068 = vmatprep.subr.bf16.mxu0 0
    %3069 = vmatpush1.bf16.msra.mxu0 %v3050
    %3070 = vmatprep.subr.bf16.mxu0 0
    %3071 = vmatpush1.bf16.msra.mxu0 %v3051
    %3072 = vmatprep.subr.bf16.mxu0 0
    %3073 = vmatpush1.bf16.msra.mxu0 %v3052
    %3074 = vmatprep.subr.bf16.mxu0 0
    %3075 = vmatpush1.bf16.msra.mxu0 %v3053
    %3076 = vmatprep.subr.bf16.mxu0 0
    %3077 = vmatpush1.bf16.msra.mxu0 %v3054
    %3078 = vmatprep.subr.bf16.mxu0 0
    %3079 = vmatpush1.bf16.msra.mxu0 %v3055
    %3080 = vmatprep.subr.bf16.mxu0 0
    %3081 = vmatpush1.bf16.msra.mxu0 0
    %3082 = vmatprep.subr.bf16.mxu0 0
    %3083 = vmatpush1.bf16.msra.mxu0 0
    %3084 = vmatprep.subr.bf16.mxu0 0
    %3085 = vmatpush1.bf16.msra.mxu0 0
    %3086 = vmatprep.subr.bf16.mxu0 0
    %3087 = vmatpush1.bf16.msra.mxu0 0
    %3088 = vmatprep.subr.bf16.mxu0 0
    %3089 = vmatpush1.bf16.msra.mxu0 0
    %3090 = vmatprep.subr.bf16.mxu0 0
    %3091 = vmatpush1.bf16.msra.mxu0 0
    %3092 = vmatprep.subr.bf16.mxu0 0
    %3093 = vmatpush1.bf16.msra.mxu0 0
    %3094 = vmatprep.subr.bf16.mxu0 0
    %3095 = vmatpush1.bf16.msra.mxu0 0
    %3096 = vmatprep.mubr.bf16.mxu0 0
    %3097 = vmatmul.mubr.bf16.gmra.mrb[0].mxu0 %v3011
    %v3098 = vpop.f32.mrb[0].mxu0
    %v3099 = vadd.f32 %v3015, %v3098
    %v3100 = vpop.f32.mrb[0].mxu0
    %v3101 = vpop.f32.mrb[0].mxu0
    %v3102 = vpop.f32.mrb[0].mxu0
    %3103 = vdwg.mxu0
    %3104 = vst [vmem:[#allocation16] sm:$0xff] %v3099
    // Predicated region
    $region58: #{tpu_custom_call.1} parent=1 // pred_check
      _
    $region59: #{tpu_custom_call.1} parent=1 // pred_check_branch
      %3106 = sbr.rel (0) target = $region61
    $region60: #{tpu_custom_call.1} parent=1 // pred_region
      %s3108 = ssub.s32 128, 128
      %3109 = vsyncadd [#allocation7], %s3108
      %s3111 = sshll.u32 [#allocation16], 4
      %s3112 = int_to_ptr.vmem [resolvable:$true] %s3111
      %3114 = dma.vmem_to_hbm [thread:$0]  %s3112, 128, %s10, [#allocation7]
    $region61: #{tpu_custom_call.1} parent=1 // pred_fallthru
      _
    // Predicated region
    $region62: #{tpu_custom_call.1} parent=1 // pred_check
      _
    $region63: #{tpu_custom_call.1} parent=1 // pred_check_branch
      %3116 = sbr.rel (0) target = $region65
    $region64: #{tpu_custom_call.1} parent=1 // pred_region
      %3117 = dma.done [#allocation7], 128
    $region65: #{tpu_custom_call.1} parent=1 // pred_fallthru
      _
    %3118 = vsyncpa [#allocation6], 1
    %3119 = vsyncpa [#allocation9], 1
    %3120 = vsyncpa [#allocation12], 1
    %3121 = vsyncpa [#allocation15], 1
    %3122 = vsyncpa [#allocation7], 1
  %3123 = vsyncmov [#allocation4]
  %s3124 = vpop.sfrf %3123
  %p3125 = scmp.eq.s32.totalorder %s3124, 0
  %p3126 = pneg %p3125
  %3128 = shalt.err (%p3126)
  %s3129 = scalar_lea.sflag [#allocation4], 1
  %3130 = vsyncmov %s3129
  %s3131 = vpop.sfrf %3130
  %p3132 = scmp.eq.s32.totalorder %s3131, 0
  %p3133 = pneg %p3132
  %3135 = shalt.err (%p3133)

</llo_original>
